<compile_context>
chip_gen: v5e
topology: v5e:2x2
jax: 0.10.0
libtpu: 0.0.40
codegen_flags: <defaults>
</compile_context>

<pallas_src>
import jax
import jax.numpy as jnp
from jax.experimental import pallas as pl
from jax.experimental.pallas import tpu as pltpu


def _qnet_kernel(x_ref, w1_ref, b1_ref, w2_ref, b2_ref, w3_ref, b3_ref,
                 w4_ref, b4_ref, o_ref):
    """Whole forward pass for one batch tile, fully resident in VMEM.

    x/weight refs are bf16; biases are f32. Every dot accumulates in f32 on the
    MXU; bias+ReLU run in f32 on the VPU and the activation is downcast to bf16
    only when it feeds the next MXU pass.
    """
    h = jnp.dot(x_ref[...], w1_ref[...], preferred_element_type=jnp.float32)
    h = jnp.maximum(h + b1_ref[...], 0.0).astype(jnp.bfloat16)

    h = jnp.dot(h, w2_ref[...], preferred_element_type=jnp.float32)
    h = jnp.maximum(h + b2_ref[...], 0.0).astype(jnp.bfloat16)

    h = jnp.dot(h, w3_ref[...], preferred_element_type=jnp.float32)
    h = jnp.maximum(h + b3_ref[...], 0.0).astype(jnp.bfloat16)

    out = jnp.dot(h, w4_ref[...], preferred_element_type=jnp.float32) + b4_ref[...]
    o_ref[...] = out.astype(o_ref.dtype)


def qnetwork_forward(state, params, *, batch_tile=256):
    """Run the QNetwork forward pass via pallas_call.

    state: (B, state_size) float32
    params: dict with w1..w4 stored as (in_features, out_features) and b1..b4
            stored as (1, out_features).
    Returns (B, action_size) float32 Q-values.
    """
    B, S = state.shape
    H = params["w1"].shape[1]
    A = params["w4"].shape[1]

    # MXU-friendly operand dtypes: bf16 activations/weights, f32 biases.
    x_bf16 = state.astype(jnp.bfloat16)
    w1, w2, w3, w4 = (params[f"w{i}"].astype(jnp.bfloat16) for i in (1, 2, 3, 4))
    b1, b2, b3, b4 = (params[f"b{i}"].astype(jnp.float32) for i in (1, 2, 3, 4))

    # Batch tile: as large as possible up to `batch_tile` (256 == v6e/v7x MXU
    # height), clamped to B and kept a multiple of 8 (sublane granularity).
    tb = min(batch_tile, B)
    tb = max(8, ((tb + 7) // 8) * 8)
    grid = (pl.cdiv(B, tb),)

    flops = 2 * B * (S * H + 2 * H * H + H * A)
    bytes_accessed = (
        2 * (S * H + 2 * H * H + H * A)   # bf16 weights
        + 4 * (3 * H + A)                 # f32 biases
        + 2 * B * S                       # bf16 states in
        + 4 * B * A                       # f32 Q-values out
    )
    cost = pl.CostEstimate(flops=flops, transcendentals=0,
                           bytes_accessed=bytes_accessed)

    def build(single_buffer_weights):
        def full(arr):
            # Grid-invariant operand: whole array every step.
            kwargs = {}
            if single_buffer_weights:
                kwargs["pipeline_mode"] = pl.Buffered(1)
            return pl.BlockSpec(arr.shape, lambda i: (0,) * arr.ndim, **kwargs)

        return pl.pallas_call(
            _qnet_kernel,
            out_shape=jax.ShapeDtypeStruct((B, A), jnp.float32),
            grid_spec=pltpu.PrefetchScalarGridSpec(
                num_scalar_prefetch=0,
                grid=grid,
                in_specs=[
                    pl.BlockSpec((tb, S), lambda i: (i, 0)),   # state tile
                    full(w1), full(b1),
                    full(w2), full(b2),
                    full(w3), full(b3),
                    full(w4), full(b4),
                ],
                out_specs=pl.BlockSpec((tb, A), lambda i: (i, 0)),
            ),
            compiler_params=pltpu.CompilerParams(
                dimension_semantics=("parallel",)),  # megacore-shardable on v7x
            cost_estimate=cost,
        )

    args = (x_bf16, w1, b1, w2, b2, w3, b3, w4, b4)
    try:
        return build(single_buffer_weights=True)(*args)
    except Exception:
        # pl.Buffered(1) not accepted by this JAX/Mosaic version; fall back to
        # default double-buffering (~0.6 MiB extra VMEM, otherwise identical).
        return build(single_buffer_weights=False)(*args)


def init_qnetwork_params(key, state_size, action_size, hidden=256):
    """Deterministic init matching PyTorch nn.Linear default:
    U(-1/sqrt(fan_in), 1/sqrt(fan_in)) for both weight and bias.
    Weights stored as (in_features, out_features); biases as (1, out)."""
    dims = [(state_size, hidden), (hidden, hidden), (hidden, hidden),
            (hidden, action_size)]
    params = {}
    for idx, (fan_in, fan_out) in enumerate(dims, start=1):
        key, kw, kb = jax.random.split(key, 3)
        bound = 1.0 / jnp.sqrt(jnp.float32(fan_in))
        params[f"w{idx}"] = jax.random.uniform(
            kw, (fan_in, fan_out), jnp.float32, minval=-bound, maxval=bound)
        params[f"b{idx}"] = jax.random.uniform(
            kb, (1, fan_out), jnp.float32, minval=-bound, maxval=bound)
    return params


def qnetwork_reference(state, params, compute_dtype=jnp.float32):
    """Pure-JAX reference. compute_dtype=bfloat16 mimics the kernel's MXU
    operand precision (accumulation is always f32)."""
    cast = lambda a: a.astype(compute_dtype)
    h = state
    for i in (1, 2, 3):
        h = jnp.dot(cast(h), cast(params[f"w{i}"]),
                    preferred_element_type=jnp.float32) + params[f"b{i}"]
        h = jnp.maximum(h, 0.0)
    return jnp.dot(cast(h), cast(params["w4"]),
                   preferred_element_type=jnp.float32) + params["b4"]


if __name__ == "__main__":
    # Small but MXU-meaningful shapes: two 256-row batch tiles (grid length 2,
    # so the "parallel" axis can shard across v7x's two TensorCores),
    # state_size=32, action_size=4 — a typical DQN replay minibatch.
    B, STATE_SIZE, ACTION_SIZE = 512, 32, 4

    key = jax.random.PRNGKey(0)
    key, kp, kx = jax.random.split(key, 3)

    params = init_qnetwork_params(kp, STATE_SIZE, ACTION_SIZE)
    state = jax.random.normal(kx, (B, STATE_SIZE), jnp.float32)

    out = jax.block_until_ready(qnetwork_forward(state, params))
    assert out.shape == (B, ACTION_SIZE)
    assert out.dtype == jnp.float32

    # Matched-precision reference (bf16 operands, f32 accumulation): tight.
    ref_bf16 = qnetwork_reference(state, params, compute_dtype=jnp.bfloat16)
    assert jnp.allclose(out, ref_bf16, atol=5e-3, rtol=5e-3)

    # Full-f32 reference: loose tolerance to absorb bf16 operand quantization.
    ref_f32 = qnetwork_reference(state, params)
    assert jnp.allclose(out, ref_f32, atol=5e-2, rtol=5e-2)

    print("KERNEL_OK")
</pallas_src>

<mosaic_0001>
module attributes {stable_mosaic.version = 11 : i64} {
  func.func @_qnet_kernel(%arg0: i32, %arg1: memref<256x32xbf16, #tpu.memory_space<vmem>>, %arg2: memref<32x256xbf16, #tpu.memory_space<vmem>>, %arg3: memref<1x256xf32, #tpu.memory_space<vmem>>, %arg4: memref<256x256xbf16, #tpu.memory_space<vmem>>, %arg5: memref<1x256xf32, #tpu.memory_space<vmem>>, %arg6: memref<256x256xbf16, #tpu.memory_space<vmem>>, %arg7: memref<1x256xf32, #tpu.memory_space<vmem>>, %arg8: memref<256x4xbf16, #tpu.memory_space<vmem>>, %arg9: memref<1x4xf32, #tpu.memory_space<vmem>>, %arg10: memref<256x4xf32, #tpu.memory_space<vmem>>) attributes {dimension_semantics = [#tpu.dimension_semantics<parallel>], iteration_bounds = array<i64: 2>, scalar_prefetch = 0 : i64, scratch_operands = 0 : i64, tpu.core_type = #tpu.core_type<tc>, window_params = [{transform_indices = @transform_0, window_bounds = array<i64: 256, 32>}, {pipeline_mode = #tpu.pipeline_mode<synchronous>, transform_indices = @transform_1, window_bounds = array<i64: 32, 256>}, {pipeline_mode = #tpu.pipeline_mode<synchronous>, transform_indices = @transform_2, window_bounds = array<i64: 1, 256>}, {pipeline_mode = #tpu.pipeline_mode<synchronous>, transform_indices = @transform_3, window_bounds = array<i64: 256, 256>}, {pipeline_mode = #tpu.pipeline_mode<synchronous>, transform_indices = @transform_4, window_bounds = array<i64: 1, 256>}, {pipeline_mode = #tpu.pipeline_mode<synchronous>, transform_indices = @transform_5, window_bounds = array<i64: 256, 256>}, {pipeline_mode = #tpu.pipeline_mode<synchronous>, transform_indices = @transform_6, window_bounds = array<i64: 1, 256>}, {pipeline_mode = #tpu.pipeline_mode<synchronous>, transform_indices = @transform_7, window_bounds = array<i64: 256, 4>}, {pipeline_mode = #tpu.pipeline_mode<synchronous>, transform_indices = @transform_8, window_bounds = array<i64: 1, 4>}, {transform_indices = @transform_9, window_bounds = array<i64: 256, 4>}]} {
    %c0 = arith.constant 0 : index
    %c0_0 = arith.constant 0 : index
    %0 = vector.load %arg1[%c0, %c0_0] : memref<256x32xbf16, #tpu.memory_space<vmem>>, vector<256x32xbf16>
    %c0_1 = arith.constant 0 : index
    %c0_2 = arith.constant 0 : index
    %1 = vector.load %arg2[%c0_1, %c0_2] : memref<32x256xbf16, #tpu.memory_space<vmem>>, vector<32x256xbf16>
    %cst = arith.constant dense<0.000000e+00> : vector<256x256xf32>
    %2 = tpu.matmul %0, %1, %cst {dimension_numbers = #tpu.dot_dimension_numbers<[1], [0], [0], [1], [0, 0, 1, 1], [], []>} : vector<256x32xbf16>, vector<32x256xbf16>, vector<256x256xf32> -> vector<256x256xf32>
    %c0_3 = arith.constant 0 : index
    %c0_4 = arith.constant 0 : index
    %3 = vector.load %arg3[%c0_3, %c0_4] : memref<1x256xf32, #tpu.memory_space<vmem>>, vector<1x256xf32>
    %4 = vector.broadcast %3 : vector<1x256xf32> to vector<256x256xf32>
    %5 = arith.addf %2, %4 : vector<256x256xf32>
    %cst_5 = arith.constant 0.000000e+00 : f32
    %6 = vector.broadcast %cst_5 : f32 to vector<256x256xf32>
    %7 = arith.maximumf %5, %6 : vector<256x256xf32>
    %8 = arith.truncf %7 : vector<256x256xf32> to vector<256x256xbf16>
    %c0_6 = arith.constant 0 : index
    %c0_7 = arith.constant 0 : index
    %9 = vector.load %arg4[%c0_6, %c0_7] : memref<256x256xbf16, #tpu.memory_space<vmem>>, vector<256x256xbf16>
    %cst_8 = arith.constant dense<0.000000e+00> : vector<256x256xf32>
    %10 = tpu.matmul %8, %9, %cst_8 {dimension_numbers = #tpu.dot_dimension_numbers<[1], [0], [0], [1], [0, 0, 1, 1], [], []>} : vector<256x256xbf16>, vector<256x256xbf16>, vector<256x256xf32> -> vector<256x256xf32>
    %c0_9 = arith.constant 0 : index
    %c0_10 = arith.constant 0 : index
    %11 = vector.load %arg5[%c0_9, %c0_10] : memref<1x256xf32, #tpu.memory_space<vmem>>, vector<1x256xf32>
    %12 = vector.broadcast %11 : vector<1x256xf32> to vector<256x256xf32>
    %13 = arith.addf %10, %12 : vector<256x256xf32>
    %cst_11 = arith.constant 0.000000e+00 : f32
    %14 = vector.broadcast %cst_11 : f32 to vector<256x256xf32>
    %15 = arith.maximumf %13, %14 : vector<256x256xf32>
    %16 = arith.truncf %15 : vector<256x256xf32> to vector<256x256xbf16>
    %c0_12 = arith.constant 0 : index
    %c0_13 = arith.constant 0 : index
    %17 = vector.load %arg6[%c0_12, %c0_13] : memref<256x256xbf16, #tpu.memory_space<vmem>>, vector<256x256xbf16>
    %cst_14 = arith.constant dense<0.000000e+00> : vector<256x256xf32>
    %18 = tpu.matmul %16, %17, %cst_14 {dimension_numbers = #tpu.dot_dimension_numbers<[1], [0], [0], [1], [0, 0, 1, 1], [], []>} : vector<256x256xbf16>, vector<256x256xbf16>, vector<256x256xf32> -> vector<256x256xf32>
    %c0_15 = arith.constant 0 : index
    %c0_16 = arith.constant 0 : index
    %19 = vector.load %arg7[%c0_15, %c0_16] : memref<1x256xf32, #tpu.memory_space<vmem>>, vector<1x256xf32>
    %20 = vector.broadcast %19 : vector<1x256xf32> to vector<256x256xf32>
    %21 = arith.addf %18, %20 : vector<256x256xf32>
    %cst_17 = arith.constant 0.000000e+00 : f32
    %22 = vector.broadcast %cst_17 : f32 to vector<256x256xf32>
    %23 = arith.maximumf %21, %22 : vector<256x256xf32>
    %24 = arith.truncf %23 : vector<256x256xf32> to vector<256x256xbf16>
    %c0_18 = arith.constant 0 : index
    %c0_19 = arith.constant 0 : index
    %25 = vector.load %arg8[%c0_18, %c0_19] : memref<256x4xbf16, #tpu.memory_space<vmem>>, vector<256x4xbf16>
    %cst_20 = arith.constant dense<0.000000e+00> : vector<256x4xf32>
    %26 = tpu.matmul %24, %25, %cst_20 {dimension_numbers = #tpu.dot_dimension_numbers<[1], [0], [0], [1], [0, 0, 1, 1], [], []>} : vector<256x256xbf16>, vector<256x4xbf16>, vector<256x4xf32> -> vector<256x4xf32>
    %c0_21 = arith.constant 0 : index
    %c0_22 = arith.constant 0 : index
    %27 = vector.load %arg9[%c0_21, %c0_22] : memref<1x4xf32, #tpu.memory_space<vmem>>, vector<1x4xf32>
    %28 = vector.broadcast %27 : vector<1x4xf32> to vector<256x4xf32>
    %29 = arith.addf %26, %28 : vector<256x4xf32>
    %c0_23 = arith.constant 0 : index
    %c0_24 = arith.constant 0 : index
    %30 = vector.load %arg10[%c0_23, %c0_24] : memref<256x4xf32, #tpu.memory_space<vmem>>, vector<256x4xf32>
    tpu.vector_store %arg10[%c0_23, %c0_24], %29 {strides = array<i32>} : memref<256x4xf32, #tpu.memory_space<vmem>>, vector<256x4xf32>,
    return
  }
  func.func @transform_0(%arg0: i32) -> (i32, i32) {
    %c0_i32 = arith.constant 0 : i32
    %c0_i32_0 = arith.constant 0 : i32
    return %arg0, %c0_i32 : i32, i32
  }
  func.func @transform_1(%arg0: i32) -> (i32, i32) {
    %c0_i32 = arith.constant 0 : i32
    %c0_i32_0 = arith.constant 0 : i32
    %c0_i32_1 = arith.constant 0 : i32
    return %c0_i32, %c0_i32_0 : i32, i32
  }
  func.func @transform_2(%arg0: i32) -> (i32, i32) {
    %c0_i32 = arith.constant 0 : i32
    %c0_i32_0 = arith.constant 0 : i32
    %c0_i32_1 = arith.constant 0 : i32
    return %c0_i32, %c0_i32_0 : i32, i32
  }
  func.func @transform_3(%arg0: i32) -> (i32, i32) {
    %c0_i32 = arith.constant 0 : i32
    %c0_i32_0 = arith.constant 0 : i32
    %c0_i32_1 = arith.constant 0 : i32
    return %c0_i32, %c0_i32_0 : i32, i32
  }
  func.func @transform_4(%arg0: i32) -> (i32, i32) {
    %c0_i32 = arith.constant 0 : i32
    %c0_i32_0 = arith.constant 0 : i32
    %c0_i32_1 = arith.constant 0 : i32
    return %c0_i32, %c0_i32_0 : i32, i32
  }
  func.func @transform_5(%arg0: i32) -> (i32, i32) {
    %c0_i32 = arith.constant 0 : i32
    %c0_i32_0 = arith.constant 0 : i32
    %c0_i32_1 = arith.constant 0 : i32
    return %c0_i32, %c0_i32_0 : i32, i32
  }
  func.func @transform_6(%arg0: i32) -> (i32, i32) {
    %c0_i32 = arith.constant 0 : i32
    %c0_i32_0 = arith.constant 0 : i32
    %c0_i32_1 = arith.constant 0 : i32
    return %c0_i32, %c0_i32_0 : i32, i32
  }
  func.func @transform_7(%arg0: i32) -> (i32, i32) {
    %c0_i32 = arith.constant 0 : i32
    %c0_i32_0 = arith.constant 0 : i32
    %c0_i32_1 = arith.constant 0 : i32
    return %c0_i32, %c0_i32_0 : i32, i32
  }
  func.func @transform_8(%arg0: i32) -> (i32, i32) {
    %c0_i32 = arith.constant 0 : i32
    %c0_i32_0 = arith.constant 0 : i32
    %c0_i32_1 = arith.constant 0 : i32
    return %c0_i32, %c0_i32_0 : i32, i32
  }
  func.func @transform_9(%arg0: i32) -> (i32, i32) {
    %c0_i32 = arith.constant 0 : i32
    %c0_i32_0 = arith.constant 0 : i32
    return %arg0, %c0_i32 : i32, i32
  }
}

module attributes {stable_mosaic.version = 11 : i64} {
  func.func @_qnet_kernel(%arg0: i32, %arg1: memref<256x32xbf16, #tpu.memory_space<vmem>>, %arg2: memref<32x256xbf16, #tpu.memory_space<vmem>>, %arg3: memref<1x256xf32, #tpu.memory_space<vmem>>, %arg4: memref<256x256xbf16, #tpu.memory_space<vmem>>, %arg5: memref<1x256xf32, #tpu.memory_space<vmem>>, %arg6: memref<256x256xbf16, #tpu.memory_space<vmem>>, %arg7: memref<1x256xf32, #tpu.memory_space<vmem>>, %arg8: memref<256x4xbf16, #tpu.memory_space<vmem>>, %arg9: memref<1x4xf32, #tpu.memory_space<vmem>>, %arg10: memref<256x4xf32, #tpu.memory_space<vmem>>) attributes {dimension_semantics = [#tpu.dimension_semantics<parallel>], iteration_bounds = array<i64: 2>, scalar_prefetch = 0 : i64, scratch_operands = 0 : i64, tpu.core_type = #tpu.core_type<tc>, window_params = [{transform_indices = @transform_0, window_bounds = array<i64: 256, 32>}, {pipeline_mode = #tpu.pipeline_mode<synchronous>, transform_indices = @transform_1, window_bounds = array<i64: 32, 256>}, {pipeline_mode = #tpu.pipeline_mode<synchronous>, transform_indices = @transform_2, window_bounds = array<i64: 1, 256>}, {pipeline_mode = #tpu.pipeline_mode<synchronous>, transform_indices = @transform_3, window_bounds = array<i64: 256, 256>}, {pipeline_mode = #tpu.pipeline_mode<synchronous>, transform_indices = @transform_4, window_bounds = array<i64: 1, 256>}, {pipeline_mode = #tpu.pipeline_mode<synchronous>, transform_indices = @transform_5, window_bounds = array<i64: 256, 256>}, {pipeline_mode = #tpu.pipeline_mode<synchronous>, transform_indices = @transform_6, window_bounds = array<i64: 1, 256>}, {pipeline_mode = #tpu.pipeline_mode<synchronous>, transform_indices = @transform_7, window_bounds = array<i64: 256, 4>}, {pipeline_mode = #tpu.pipeline_mode<synchronous>, transform_indices = @transform_8, window_bounds = array<i64: 1, 4>}, {transform_indices = @transform_9, window_bounds = array<i64: 256, 4>}]} {
    %c0 = arith.constant 0 : index
    %c0_0 = arith.constant 0 : index
    %0 = vector.load %arg1[%c0, %c0_0] : memref<256x32xbf16, #tpu.memory_space<vmem>>, vector<256x32xbf16>
    %c0_1 = arith.constant 0 : index
    %c0_2 = arith.constant 0 : index
    %1 = vector.load %arg2[%c0_1, %c0_2] : memref<32x256xbf16, #tpu.memory_space<vmem>>, vector<32x256xbf16>
    %cst = arith.constant dense<0.000000e+00> : vector<256x256xf32>
    %2 = tpu.matmul %0, %1, %cst {dimension_numbers = #tpu.dot_dimension_numbers<[1], [0], [0], [1], [0, 0, 1, 1], [], []>} : vector<256x32xbf16>, vector<32x256xbf16>, vector<256x256xf32> -> vector<256x256xf32>
    %c0_3 = arith.constant 0 : index
    %c0_4 = arith.constant 0 : index
    %3 = vector.load %arg3[%c0_3, %c0_4] : memref<1x256xf32, #tpu.memory_space<vmem>>, vector<1x256xf32>
    %4 = vector.broadcast %3 : vector<1x256xf32> to vector<256x256xf32>
    %5 = arith.addf %2, %4 : vector<256x256xf32>
    %cst_5 = arith.constant 0.000000e+00 : f32
    %6 = vector.broadcast %cst_5 : f32 to vector<256x256xf32>
    %7 = arith.maximumf %5, %6 : vector<256x256xf32>
    %8 = arith.truncf %7 : vector<256x256xf32> to vector<256x256xbf16>
    %c0_6 = arith.constant 0 : index
    %c0_7 = arith.constant 0 : index
    %9 = vector.load %arg4[%c0_6, %c0_7] : memref<256x256xbf16, #tpu.memory_space<vmem>>, vector<256x256xbf16>
    %cst_8 = arith.constant dense<0.000000e+00> : vector<256x256xf32>
    %10 = tpu.matmul %8, %9, %cst_8 {dimension_numbers = #tpu.dot_dimension_numbers<[1], [0], [0], [1], [0, 0, 1, 1], [], []>} : vector<256x256xbf16>, vector<256x256xbf16>, vector<256x256xf32> -> vector<256x256xf32>
    %c0_9 = arith.constant 0 : index
    %c0_10 = arith.constant 0 : index
    %11 = vector.load %arg5[%c0_9, %c0_10] : memref<1x256xf32, #tpu.memory_space<vmem>>, vector<1x256xf32>
    %12 = vector.broadcast %11 : vector<1x256xf32> to vector<256x256xf32>
    %13 = arith.addf %10, %12 : vector<256x256xf32>
    %cst_11 = arith.constant 0.000000e+00 : f32
    %14 = vector.broadcast %cst_11 : f32 to vector<256x256xf32>
    %15 = arith.maximumf %13, %14 : vector<256x256xf32>
    %16 = arith.truncf %15 : vector<256x256xf32> to vector<256x256xbf16>
    %c0_12 = arith.constant 0 : index
    %c0_13 = arith.constant 0 : index
    %17 = vector.load %arg6[%c0_12, %c0_13] : memref<256x256xbf16, #tpu.memory_space<vmem>>, vector<256x256xbf16>
    %cst_14 = arith.constant dense<0.000000e+00> : vector<256x256xf32>
    %18 = tpu.matmul %16, %17, %cst_14 {dimension_numbers = #tpu.dot_dimension_numbers<[1], [0], [0], [1], [0, 0, 1, 1], [], []>} : vector<256x256xbf16>, vector<256x256xbf16>, vector<256x256xf32> -> vector<256x256xf32>
    %c0_15 = arith.constant 0 : index
    %c0_16 = arith.constant 0 : index
    %19 = vector.load %arg7[%c0_15, %c0_16] : memref<1x256xf32, #tpu.memory_space<vmem>>, vector<1x256xf32>
    %20 = vector.broadcast %19 : vector<1x256xf32> to vector<256x256xf32>
    %21 = arith.addf %18, %20 : vector<256x256xf32>
    %cst_17 = arith.constant 0.000000e+00 : f32
    %22 = vector.broadcast %cst_17 : f32 to vector<256x256xf32>
    %23 = arith.maximumf %21, %22 : vector<256x256xf32>
    %24 = arith.truncf %23 : vector<256x256xf32> to vector<256x256xbf16>
    %c0_18 = arith.constant 0 : index
    %c0_19 = arith.constant 0 : index
    %25 = vector.load %arg8[%c0_18, %c0_19] : memref<256x4xbf16, #tpu.memory_space<vmem>>, vector<256x4xbf16>
    %cst_20 = arith.constant dense<0.000000e+00> : vector<256x4xf32>
    %26 = tpu.matmul %24, %25, %cst_20 {dimension_numbers = #tpu.dot_dimension_numbers<[1], [0], [0], [1], [0, 0, 1, 1], [], []>} : vector<256x256xbf16>, vector<256x4xbf16>, vector<256x4xf32> -> vector<256x4xf32>
    %c0_21 = arith.constant 0 : index
    %c0_22 = arith.constant 0 : index
    %27 = vector.load %arg9[%c0_21, %c0_22] : memref<1x4xf32, #tpu.memory_space<vmem>>, vector<1x4xf32>
    %28 = vector.broadcast %27 : vector<1x4xf32> to vector<256x4xf32>
    %29 = arith.addf %26, %28 : vector<256x4xf32>
    %c0_23 = arith.constant 0 : index
    %c0_24 = arith.constant 0 : index
    %30 = vector.load %arg10[%c0_23, %c0_24] : memref<256x4xf32, #tpu.memory_space<vmem>>, vector<256x4xf32>
    tpu.vector_store %arg10[%c0_23, %c0_24], %29 {strides = array<i32>} : memref<256x4xf32, #tpu.memory_space<vmem>>, vector<256x4xf32>,
    return
  }
  func.func @transform_0(%arg0: i32) -> (i32, i32) {
    %c0_i32 = arith.constant 0 : i32
    %c0_i32_0 = arith.constant 0 : i32
    return %arg0, %c0_i32 : i32, i32
  }
  func.func @transform_1(%arg0: i32) -> (i32, i32) {
    %c0_i32 = arith.constant 0 : i32
    %c0_i32_0 = arith.constant 0 : i32
    %c0_i32_1 = arith.constant 0 : i32
    return %c0_i32, %c0_i32_0 : i32, i32
  }
  func.func @transform_2(%arg0: i32) -> (i32, i32) {
    %c0_i32 = arith.constant 0 : i32
    %c0_i32_0 = arith.constant 0 : i32
    %c0_i32_1 = arith.constant 0 : i32
    return %c0_i32, %c0_i32_0 : i32, i32
  }
  func.func @transform_3(%arg0: i32) -> (i32, i32) {
    %c0_i32 = arith.constant 0 : i32
    %c0_i32_0 = arith.constant 0 : i32
    %c0_i32_1 = arith.constant 0 : i32
    return %c0_i32, %c0_i32_0 : i32, i32
  }
  func.func @transform_4(%arg0: i32) -> (i32, i32) {
    %c0_i32 = arith.constant 0 : i32
    %c0_i32_0 = arith.constant 0 : i32
    %c0_i32_1 = arith.constant 0 : i32
    return %c0_i32, %c0_i32_0 : i32, i32
  }
  func.func @transform_5(%arg0: i32) -> (i32, i32) {
    %c0_i32 = arith.constant 0 : i32
    %c0_i32_0 = arith.constant 0 : i32
    %c0_i32_1 = arith.constant 0 : i32
    return %c0_i32, %c0_i32_0 : i32, i32
  }
  func.func @transform_6(%arg0: i32) -> (i32, i32) {
    %c0_i32 = arith.constant 0 : i32
    %c0_i32_0 = arith.constant 0 : i32
    %c0_i32_1 = arith.constant 0 : i32
    return %c0_i32, %c0_i32_0 : i32, i32
  }
  func.func @transform_7(%arg0: i32) -> (i32, i32) {
    %c0_i32 = arith.constant 0 : i32
    %c0_i32_0 = arith.constant 0 : i32
    %c0_i32_1 = arith.constant 0 : i32
    return %c0_i32, %c0_i32_0 : i32, i32
  }
  func.func @transform_8(%arg0: i32) -> (i32, i32) {
    %c0_i32 = arith.constant 0 : i32
    %c0_i32_0 = arith.constant 0 : i32
    %c0_i32_1 = arith.constant 0 : i32
    return %c0_i32, %c0_i32_0 : i32, i32
  }
  func.func @transform_9(%arg0: i32) -> (i32, i32) {
    %c0_i32 = arith.constant 0 : i32
    %c0_i32_0 = arith.constant 0 : i32
    return %arg0, %c0_i32 : i32, i32
  }
}

</mosaic_0001>

<llo_original>
// kernel: tpu_custom_call.1
$region0: #{tpu_custom_call.1}
  #allocation0 [shape = 'u32[]', space=smem, size = 0x4, offset = 0x4, fixed_abs, tag = 'smem constant byte address 0x4 - core index']
  #allocation1 [shape = 'u32[72,128]{1,0:T(1,128)}', space=vmem, size = 0x9000, scoped, tag = 'internal scratch']
  %s0 = inlined_call_operand.vmem [shape: bf16[512,32], index: 0, kind: input, shape index: {}]
  %s1 = inlined_call_operand.vmem [shape: bf16[32,256], index: 1, kind: input, shape index: {}]
  %s2 = inlined_call_operand.vmem [shape: f32[1,256], index: 2, kind: input, shape index: {}]
  %s3 = inlined_call_operand.vmem [shape: bf16[256,256], index: 3, kind: input, shape index: {}]
  %s4 = inlined_call_operand.vmem [shape: f32[1,256], index: 4, kind: input, shape index: {}]
  %s5 = inlined_call_operand.hbm [shape: bf16[256,256], index: 5, kind: input, shape index: {}]
  %s6 = inlined_call_operand.vmem [shape: f32[1,256], index: 6, kind: input, shape index: {}]
  %s7 = inlined_call_operand.vmem [shape: bf16[256,4], index: 7, kind: input, shape index: {}]
  %s8 = inlined_call_operand.vmem [shape: f32[1,4], index: 8, kind: input, shape index: {}]
  %s9 = inlined_call_operand.vmem [shape: f32[512,4], index: 9, kind: output, shape index: {}]
  %s10 = sld [smem:[#allocation0]]
  $region73: #{tpu_custom_call.1} parent=0
    _
  %s12 = ssub.s32 1, %s10
  %s13 = scalar_select 0, %s12, %s10
  $region1: #{tpu_custom_call.1} parent=0
    #allocation2 [shape = 'u8[131072]{0}', space=vmem, size = 0x20000, scoped, tag = 'input window, operand 5, single buffered']
    #allocation3 [shape = 's32[2]{0}', space=sflag, size = 0x8, scoped, tag = 'scoped memory for tpu_custom_call.1']
    %14 = vsyncpa [#allocation3], 0
    loop: start=0, step=1, limit=4
    $region2: #{tpu_custom_call.1} parent=1 // loop_pre_header
      _
    $region3: #{tpu_custom_call.1} parent=1 // loop_header
      %s16 = sphi 0, %s20
      %p17 = scmp.ge.s32.totalorder %s16, 4
      %s26 = sphi 0, %s28
      %s29 = sphi 0, %s26
      %s30 = sphi 0, %s29
      %s46 = sphi 0, %s30
      %s50 = sphi 0, %s50
      %s52 = sphi 0, %s50
      %s53 = sphi 0, %s52
      %s67 = sphi 0, %s53
      %s71 = sphi 0, %s71
      %s73 = sphi 0, %s71
      %s74 = sphi 0, %s73
      %s88 = sphi 0, %s74
      %s92 = sphi 0, %s92
      %s94 = sphi 0, %s92
      %s95 = sphi 0, %s94
      %s109 = sphi 0, %s95
      %s113 = sphi 0, %s113
      %s115 = sphi 0, %s113
      %s116 = sphi 0, %s115
      %s130 = sphi 0, %s116
      %s134 = sphi 0, %s134
      %s136 = sphi 0, %s134
      %s137 = sphi 0, %s136
      %s151 = sphi 0, %s137
      %s155 = sphi 0, %s155
      %s157 = sphi 0, %s155
      %s158 = sphi 0, %s157
      %s172 = sphi 0, %s158
      %s176 = sphi 0, %s176
      %s178 = sphi 0, %s176
      %s179 = sphi 0, %s178
      %s193 = sphi 0, %s179
      %s197 = sphi 0, %s197
      %s199 = sphi 0, %s197
      %s200 = sphi 0, %s199
      %s214 = sphi 0, %s200
      %s220 = sphi 0, %s222
      %s223 = sphi 0, %s220
      %s224 = sphi 0, %s223
      %s240 = sphi 0, %s224
    $region4: #{tpu_custom_call.1} parent=1 // loop_header_branch
      %19 = sbr.rel (%p17) target = $region8
    $region5: #{tpu_custom_call.1} parent=1 // loop_body
      %s21 = ssub.s32 %s16, 1
      %s22 = ssub.s32 %s16, 2
      %s23 = sadd.s32 %s16, 1
      %s24 = ssub.s32 %s16, %s23
      %p25 = scmp.eq.s32.totalorder %s24, 0
      %s27 = sadd.s32 %s26, 1
      %s28 = scalar_select %p25, %s26, %s27
      %p31 = pneg %p25
      %p32 = scmp.eq.s32.totalorder %s16, 1
      %p33 = por %p31, %p32
      %p34 = scmp.ne.s32.totalorder %s26, %s29
      %p35 = scmp.eq.s32.totalorder %s16, 0
      %p36 = por %p34, %p35
      %p37 = scmp.ne.s32.totalorder %s26, %s29
      %p38 = scmp.eq.s32.totalorder %s21, 1
      %p39 = por %p37, %p38
      %p40 = scmp.ne.s32.totalorder %s29, %s30
      %p41 = scmp.eq.s32.totalorder %s21, 0
      %p42 = por %p40, %p41
      %p43 = scmp.ne.s32.totalorder %s29, %s30
      %p44 = scmp.eq.s32.totalorder %s22, 1
      %p45 = por %p43, %p44
      %p47 = scmp.ne.s32.totalorder %s30, %s46
      %p48 = scmp.eq.s32.totalorder %s22, 0
      %p49 = por %p47, %p48
      %s51 = sadd.s32 %s50, 1
      %p54 = scmp.eq.s32.totalorder %s16, 1
      %p55 = scmp.ne.s32.totalorder %s50, %s52
      %p56 = scmp.eq.s32.totalorder %s16, 0
      %p57 = por %p55, %p56
      %p58 = scmp.ne.s32.totalorder %s50, %s52
      %p59 = scmp.eq.s32.totalorder %s21, 1
      %p60 = por %p58, %p59
      %p61 = scmp.ne.s32.totalorder %s52, %s53
      %p62 = scmp.eq.s32.totalorder %s21, 0
      %p63 = por %p61, %p62
      %p64 = scmp.ne.s32.totalorder %s52, %s53
      %p65 = scmp.eq.s32.totalorder %s22, 1
      %p66 = por %p64, %p65
      %p68 = scmp.ne.s32.totalorder %s53, %s67
      %p69 = scmp.eq.s32.totalorder %s22, 0
      %p70 = por %p68, %p69
      %s72 = sadd.s32 %s71, 1
      %p75 = scmp.eq.s32.totalorder %s16, 1
      %p76 = scmp.ne.s32.totalorder %s71, %s73
      %p77 = scmp.eq.s32.totalorder %s16, 0
      %p78 = por %p76, %p77
      %p79 = scmp.ne.s32.totalorder %s71, %s73
      %p80 = scmp.eq.s32.totalorder %s21, 1
      %p81 = por %p79, %p80
      %p82 = scmp.ne.s32.totalorder %s73, %s74
      %p83 = scmp.eq.s32.totalorder %s21, 0
      %p84 = por %p82, %p83
      %p85 = scmp.ne.s32.totalorder %s73, %s74
      %p86 = scmp.eq.s32.totalorder %s22, 1
      %p87 = por %p85, %p86
      %p89 = scmp.ne.s32.totalorder %s74, %s88
      %p90 = scmp.eq.s32.totalorder %s22, 0
      %p91 = por %p89, %p90
      %s93 = sadd.s32 %s92, 1
      %p96 = scmp.eq.s32.totalorder %s16, 1
      %p97 = scmp.ne.s32.totalorder %s92, %s94
      %p98 = scmp.eq.s32.totalorder %s16, 0
      %p99 = por %p97, %p98
      %p100 = scmp.ne.s32.totalorder %s92, %s94
      %p101 = scmp.eq.s32.totalorder %s21, 1
      %p102 = por %p100, %p101
      %p103 = scmp.ne.s32.totalorder %s94, %s95
      %p104 = scmp.eq.s32.totalorder %s21, 0
      %p105 = por %p103, %p104
      %p106 = scmp.ne.s32.totalorder %s94, %s95
      %p107 = scmp.eq.s32.totalorder %s22, 1
      %p108 = por %p106, %p107
      %p110 = scmp.ne.s32.totalorder %s95, %s109
      %p111 = scmp.eq.s32.totalorder %s22, 0
      %p112 = por %p110, %p111
      %s114 = sadd.s32 %s113, 1
      %p117 = scmp.eq.s32.totalorder %s16, 1
      %p118 = scmp.ne.s32.totalorder %s113, %s115
      %p119 = scmp.eq.s32.totalorder %s16, 0
      %p120 = por %p118, %p119
      %p121 = scmp.ne.s32.totalorder %s113, %s115
      %p122 = scmp.eq.s32.totalorder %s21, 1
      %p123 = por %p121, %p122
      %p124 = scmp.ne.s32.totalorder %s115, %s116
      %p125 = scmp.eq.s32.totalorder %s21, 0
      %p126 = por %p124, %p125
      %p127 = scmp.ne.s32.totalorder %s115, %s116
      %p128 = scmp.eq.s32.totalorder %s22, 1
      %p129 = por %p127, %p128
      %p131 = scmp.ne.s32.totalorder %s116, %s130
      %p132 = scmp.eq.s32.totalorder %s22, 0
      %p133 = por %p131, %p132
      %s135 = sadd.s32 %s134, 1
      %p138 = scmp.eq.s32.totalorder %s16, 1
      %p139 = scmp.ne.s32.totalorder %s134, %s136
      %p140 = scmp.eq.s32.totalorder %s16, 0
      %p141 = por %p139, %p140
      %p142 = scmp.ne.s32.totalorder %s134, %s136
      %p143 = scmp.eq.s32.totalorder %s21, 1
      %p144 = por %p142, %p143
      %p145 = scmp.ne.s32.totalorder %s136, %s137
      %p146 = scmp.eq.s32.totalorder %s21, 0
      %p147 = por %p145, %p146
      %p148 = scmp.ne.s32.totalorder %s136, %s137
      %p149 = scmp.eq.s32.totalorder %s22, 1
      %p150 = por %p148, %p149
      %p152 = scmp.ne.s32.totalorder %s137, %s151
      %p153 = scmp.eq.s32.totalorder %s22, 0
      %p154 = por %p152, %p153
      %s156 = sadd.s32 %s155, 1
      %p159 = scmp.eq.s32.totalorder %s16, 1
      %p160 = scmp.ne.s32.totalorder %s155, %s157
      %p161 = scmp.eq.s32.totalorder %s16, 0
      %p162 = por %p160, %p161
      %p163 = scmp.ne.s32.totalorder %s155, %s157
      %p164 = scmp.eq.s32.totalorder %s21, 1
      %p165 = por %p163, %p164
      %p166 = scmp.ne.s32.totalorder %s157, %s158
      %p167 = scmp.eq.s32.totalorder %s21, 0
      %p168 = por %p166, %p167
      %p169 = scmp.ne.s32.totalorder %s157, %s158
      %p170 = scmp.eq.s32.totalorder %s22, 1
      %p171 = por %p169, %p170
      %p173 = scmp.ne.s32.totalorder %s158, %s172
      %p174 = scmp.eq.s32.totalorder %s22, 0
      %p175 = por %p173, %p174
      %s177 = sadd.s32 %s176, 1
      %p180 = scmp.eq.s32.totalorder %s16, 1
      %p181 = scmp.ne.s32.totalorder %s176, %s178
      %p182 = scmp.eq.s32.totalorder %s16, 0
      %p183 = por %p181, %p182
      %p184 = scmp.ne.s32.totalorder %s176, %s178
      %p185 = scmp.eq.s32.totalorder %s21, 1
      %p186 = por %p184, %p185
      %p187 = scmp.ne.s32.totalorder %s178, %s179
      %p188 = scmp.eq.s32.totalorder %s21, 0
      %p189 = por %p187, %p188
      %p190 = scmp.ne.s32.totalorder %s178, %s179
      %p191 = scmp.eq.s32.totalorder %s22, 1
      %p192 = por %p190, %p191
      %p194 = scmp.ne.s32.totalorder %s179, %s193
      %p195 = scmp.eq.s32.totalorder %s22, 0
      %p196 = por %p194, %p195
      %s198 = sadd.s32 %s197, 1
      %p201 = scmp.eq.s32.totalorder %s16, 1
      %p202 = scmp.ne.s32.totalorder %s197, %s199
      %p203 = scmp.eq.s32.totalorder %s16, 0
      %p204 = por %p202, %p203
      %p205 = scmp.ne.s32.totalorder %s197, %s199
      %p206 = scmp.eq.s32.totalorder %s21, 1
      %p207 = por %p205, %p206
      %p208 = scmp.ne.s32.totalorder %s199, %s200
      %p209 = scmp.eq.s32.totalorder %s21, 0
      %p210 = por %p208, %p209
      %p211 = scmp.ne.s32.totalorder %s199, %s200
      %p212 = scmp.eq.s32.totalorder %s22, 1
      %p213 = por %p211, %p212
      %p215 = scmp.ne.s32.totalorder %s200, %s214
      %p216 = scmp.eq.s32.totalorder %s22, 0
      %p217 = por %p215, %p216
      %s218 = ssub.s32 %s16, %s23
      %p219 = scmp.eq.s32.totalorder %s218, 0
      %s221 = sadd.s32 %s220, 1
      %s222 = scalar_select %p219, %s220, %s221
      %p225 = pneg %p219
      %p226 = scmp.eq.s32.totalorder %s16, 1
      %p227 = por %p225, %p226
      %p228 = scmp.ne.s32.totalorder %s220, %s223
      %p229 = scmp.eq.s32.totalorder %s16, 0
      %p230 = por %p228, %p229
      %p231 = scmp.ne.s32.totalorder %s220, %s223
      %p232 = scmp.eq.s32.totalorder %s21, 1
      %p233 = por %p231, %p232
      %p234 = scmp.ne.s32.totalorder %s223, %s224
      %p235 = scmp.eq.s32.totalorder %s21, 0
      %p236 = por %p234, %p235
      %p237 = scmp.ne.s32.totalorder %s223, %s224
      %p238 = scmp.eq.s32.totalorder %s22, 1
      %p239 = por %p237, %p238
      %p241 = scmp.ne.s32.totalorder %s224, %s240
      %p242 = scmp.eq.s32.totalorder %s22, 0
      %p243 = por %p241, %p242
      %p244 = scmp.le.s32.totalorder 1, %s16
      %p245 = scmp.lt.s32.totalorder %s16, 3
      %p246 = pnand %p244, %p245
      %p247 = pneg %p246
      // Predicated region
      $region9: #{tpu_custom_call.1} parent=5 // pred_check
        _
      $region10: #{tpu_custom_call.1} parent=5 // pred_check_branch
        %249 = sbr.rel (%p246) target = $region12
      $region11: #{tpu_custom_call.1} parent=5 // pred_region
        %s250 = ssub.s32 %s16, 1
        // Predicated region
        $region13: #{tpu_custom_call.1} parent=11 // pred_check
          %p251 = pneg %p63
        $region14: #{tpu_custom_call.1} parent=11 // pred_check_branch
          %253 = sbr.rel (%p251) target = $region16
        $region15: #{tpu_custom_call.1} parent=11 // pred_region
          _
        $region16: #{tpu_custom_call.1} parent=11 // pred_fallthru
          _
        // Predicated region
        $region17: #{tpu_custom_call.1} parent=11 // pred_check
          %p254 = pneg %p84
        $region18: #{tpu_custom_call.1} parent=11 // pred_check_branch
          %256 = sbr.rel (%p254) target = $region20
        $region19: #{tpu_custom_call.1} parent=11 // pred_region
          _
        $region20: #{tpu_custom_call.1} parent=11 // pred_fallthru
          _
        // Predicated region
        $region21: #{tpu_custom_call.1} parent=11 // pred_check
          %p257 = pneg %p105
        $region22: #{tpu_custom_call.1} parent=11 // pred_check_branch
          %259 = sbr.rel (%p257) target = $region24
        $region23: #{tpu_custom_call.1} parent=11 // pred_region
          _
        $region24: #{tpu_custom_call.1} parent=11 // pred_fallthru
          _
        // Predicated region
        $region25: #{tpu_custom_call.1} parent=11 // pred_check
          %p260 = pneg %p126
        $region26: #{tpu_custom_call.1} parent=11 // pred_check_branch
          %262 = sbr.rel (%p260) target = $region28
        $region27: #{tpu_custom_call.1} parent=11 // pred_region
          _
        $region28: #{tpu_custom_call.1} parent=11 // pred_fallthru
          _
        // Predicated region
        $region29: #{tpu_custom_call.1} parent=11 // pred_check
          %p263 = pneg %p147
        $region30: #{tpu_custom_call.1} parent=11 // pred_check_branch
          %265 = sbr.rel (%p263) target = $region32
        $region31: #{tpu_custom_call.1} parent=11 // pred_region
          %267 = vsyncadd [#allocation3], 0
          %s268 = sshll.u32 %s5, 4
          %s269 = int_to_ptr.hbm [resolvable:$true] %s268
          %s270 = sshll.u32 [#allocation2], 4
          %s271 = int_to_ptr.vmem [resolvable:$true] %s270
          %276 = dma.hbm_to_vmem [thread:$0]  %s269, 4096, %s271, [#allocation3], 128, 128, 8
        $region32: #{tpu_custom_call.1} parent=11 // pred_fallthru
          _
        // Predicated region
        $region33: #{tpu_custom_call.1} parent=11 // pred_check
          %p277 = pneg %p168
        $region34: #{tpu_custom_call.1} parent=11 // pred_check_branch
          %279 = sbr.rel (%p277) target = $region36
        $region35: #{tpu_custom_call.1} parent=11 // pred_region
          _
        $region36: #{tpu_custom_call.1} parent=11 // pred_fallthru
          _
        // Predicated region
        $region37: #{tpu_custom_call.1} parent=11 // pred_check
          %p280 = pneg %p189
        $region38: #{tpu_custom_call.1} parent=11 // pred_check_branch
          %282 = sbr.rel (%p280) target = $region40
        $region39: #{tpu_custom_call.1} parent=11 // pred_region
          _
        $region40: #{tpu_custom_call.1} parent=11 // pred_fallthru
          _
        // Predicated region
        $region41: #{tpu_custom_call.1} parent=11 // pred_check
          %p283 = pneg %p210
        $region42: #{tpu_custom_call.1} parent=11 // pred_check_branch
          %285 = sbr.rel (%p283) target = $region44
        $region43: #{tpu_custom_call.1} parent=11 // pred_region
          _
        $region44: #{tpu_custom_call.1} parent=11 // pred_fallthru
          _
      $region12: #{tpu_custom_call.1} parent=5 // pred_fallthru
        _
      %p286 = scmp.lt.s32.totalorder %s16, 2
      // Predicated region
      $region45: #{tpu_custom_call.1} parent=5 // pred_check
        %p287 = pneg %p286
      $region46: #{tpu_custom_call.1} parent=5 // pred_check_branch
        %289 = sbr.rel (%p287) target = $region48
      $region47: #{tpu_custom_call.1} parent=5 // pred_region
        // Predicated region
        $region49: #{tpu_custom_call.1} parent=47 // pred_check
          %p290 = pneg %p36
        $region50: #{tpu_custom_call.1} parent=47 // pred_check_branch
          %292 = sbr.rel (%p290) target = $region52
        $region51: #{tpu_custom_call.1} parent=47 // pred_region
          %s293 = smul.u32 32, %s16
          %p294 = scmp.lt.s32.totalorder %s293, 63
          %s295 = scalar_select %p294, %s293, 63
          %s296 = smul.addr %s295, 4
          %s297 = scalar_lea.vmem %s0, %s296
          %s298 = smul.u32 32, %s16
        $region52: #{tpu_custom_call.1} parent=47 // pred_fallthru
          _
      $region48: #{tpu_custom_call.1} parent=5 // pred_fallthru
        _
      %p299 = scmp.le.s32.totalorder 1, %s16
      %p300 = scmp.lt.s32.totalorder %s16, 3
      %p301 = pnand %p299, %p300
      %p302 = pneg %p301
      // Predicated region
      $region53: #{tpu_custom_call.1} parent=5 // pred_check
        _
      $region54: #{tpu_custom_call.1} parent=5 // pred_check_branch
        %304 = sbr.rel (%p301) target = $region56
      $region55: #{tpu_custom_call.1} parent=5 // pred_region
        %s305 = ssub.s32 %s16, 1
        // Predicated region
        $region57: #{tpu_custom_call.1} parent=55 // pred_check
          %p306 = pneg %p147
        $region58: #{tpu_custom_call.1} parent=55 // pred_check_branch
          %308 = sbr.rel (%p306) target = $region60
        $region59: #{tpu_custom_call.1} parent=55 // pred_region
          %310 = dma.done [#allocation3], 4096
        $region60: #{tpu_custom_call.1} parent=55 // pred_fallthru
          _
        %s311 = smul.u32 32, %s21
        %p312 = scmp.lt.s32.totalorder %s311, 63
        %s313 = scalar_select %p312, %s311, 63
        %s314 = smul.addr %s313, 4
        %s315 = scalar_lea.vmem %s0, %s314
        %p316 = pneg %p42
        %p317 = pneg %p39
        %p318 = pneg %p63
        %p319 = pneg %p60
        %p320 = pneg %p84
        %p321 = pneg %p81
        %p322 = pneg %p105
        %p323 = pneg %p102
        %p324 = pneg %p126
        %p325 = pneg %p123
        %p326 = pneg %p147
        %p327 = pneg %p144
        %p328 = pneg %p168
        %p329 = pneg %p165
        %p330 = pneg %p189
        %p331 = pneg %p186
        %p332 = pneg %p210
        %p333 = pneg %p207
        %p334 = pneg %p236
        %p335 = pneg %p233
        %s336 = smul.u32 32, %s21
        %p337 = scmp.lt.s32.totalorder %s336, 63
        %s338 = scalar_select %p337, %s336, 63
        %s339 = smul.addr %s338, 8
        %s340 = scalar_lea.vmem %s9, %s339
        %s341 = smul.u32 32, %s21
        %p342 = scmp.lt.s32.totalorder %s341, 63
        %s343 = scalar_select %p342, %s341, 63
        %s344 = smul.addr %s343, 4
        %s345 = scalar_lea.vmem %s0, %s344
        %s346 = smul.u32 32, %s21
        %s347 = smul.u32 32, %s21
        %p348 = scmp.lt.s32.totalorder %s347, 63
        %s349 = scalar_select %p348, %s347, 63
        %s350 = smul.addr %s349, 8
        %s351 = scalar_lea.vmem %s9, %s350
        %s352 = smul.u32 32, %s21
        %v354 = vld [vmem:[%s345] sm:$0xf]
        %v355 = vld [vmem:[%s345 + $0x4] sm:$0xf]
        %v356 = vld [vmem:[%s345 + $0x8] sm:$0xf]
        %v357 = vld [vmem:[%s345 + $0xc] sm:$0xf]
        %v358 = vld [vmem:[%s345 + $0x10] sm:$0xf]
        %v359 = vld [vmem:[%s345 + $0x14] sm:$0xf]
        %v360 = vld [vmem:[%s345 + $0x18] sm:$0xf]
        %v361 = vld [vmem:[%s345 + $0x1c] sm:$0xf]
        %v362 = vld [vmem:[%s345 + $0x20] sm:$0xf]
        %v363 = vld [vmem:[%s345 + $0x24] sm:$0xf]
        %v364 = vld [vmem:[%s345 + $0x28] sm:$0xf]
        %v365 = vld [vmem:[%s345 + $0x2c] sm:$0xf]
        %v366 = vld [vmem:[%s345 + $0x30] sm:$0xf]
        %v367 = vld [vmem:[%s345 + $0x34] sm:$0xf]
        %v368 = vld [vmem:[%s345 + $0x38] sm:$0xf]
        %v369 = vld [vmem:[%s345 + $0x3c] sm:$0xf]
        %v370 = vld [vmem:[%s345 + $0x40] sm:$0xf]
        %v371 = vld [vmem:[%s345 + $0x44] sm:$0xf]
        %v372 = vld [vmem:[%s345 + $0x48] sm:$0xf]
        %v373 = vld [vmem:[%s345 + $0x4c] sm:$0xf]
        %v374 = vld [vmem:[%s345 + $0x50] sm:$0xf]
        %v375 = vld [vmem:[%s345 + $0x54] sm:$0xf]
        %v376 = vld [vmem:[%s345 + $0x58] sm:$0xf]
        %v377 = vld [vmem:[%s345 + $0x5c] sm:$0xf]
        %v378 = vld [vmem:[%s345 + $0x60] sm:$0xf]
        %v379 = vld [vmem:[%s345 + $0x64] sm:$0xf]
        %v380 = vld [vmem:[%s345 + $0x68] sm:$0xf]
        %v381 = vld [vmem:[%s345 + $0x6c] sm:$0xf]
        %v382 = vld [vmem:[%s345 + $0x70] sm:$0xf]
        %v383 = vld [vmem:[%s345 + $0x74] sm:$0xf]
        %v384 = vld [vmem:[%s345 + $0x78] sm:$0xf]
        %v385 = vld [vmem:[%s345 + $0x7c] sm:$0xf]
        %v386 = vld [vmem:[%s1] sm:$0xff]
        %v387 = vld [vmem:[%s1 + $0x8] sm:$0xff]
        %v388 = vld [vmem:[%s1 + $0x10] sm:$0xff]
        %v389 = vld [vmem:[%s1 + $0x18] sm:$0xff]
        %v390 = vld [vmem:[%s2] sm:$0x3]
        %v392 = vperm.slane %v390, 0
        %v393 = vperm.slane %v390, 1
        %v428 = vunpack.c.l.b16 %v354
        %v429 = vunpack.c.l.b16 %v355
        %v430 = vunpack.c.l.b16 %v356
        %v431 = vunpack.c.l.b16 %v357
        %v432 = vunpack.c.l.b16 %v358
        %v433 = vunpack.c.l.b16 %v359
        %v434 = vunpack.c.l.b16 %v360
        %v435 = vunpack.c.l.b16 %v361
        %v436 = vunpack.c.l.b16 %v362
        %v437 = vunpack.c.l.b16 %v363
        %v438 = vunpack.c.l.b16 %v364
        %v439 = vunpack.c.l.b16 %v365
        %v440 = vunpack.c.l.b16 %v366
        %v441 = vunpack.c.l.b16 %v367
        %v442 = vunpack.c.l.b16 %v368
        %v443 = vunpack.c.l.b16 %v369
        %v444 = vunpack.c.l.b16 %v370
        %v445 = vunpack.c.l.b16 %v371
        %v446 = vunpack.c.l.b16 %v372
        %v447 = vunpack.c.l.b16 %v373
        %v448 = vunpack.c.l.b16 %v374
        %v449 = vunpack.c.l.b16 %v375
        %v450 = vunpack.c.l.b16 %v376
        %v451 = vunpack.c.l.b16 %v377
        %v452 = vunpack.c.l.b16 %v378
        %v453 = vunpack.c.l.b16 %v379
        %v454 = vunpack.c.l.b16 %v380
        %v455 = vunpack.c.l.b16 %v381
        %v456 = vunpack.c.l.b16 %v382
        %v457 = vunpack.c.l.b16 %v383
        %v458 = vunpack.c.l.b16 %v384
        %v459 = vunpack.c.l.b16 %v385
        %v460 = vpack.c.b16 %v429, %v428
        %v461 = vpack.c.b16 %v431, %v430
        %v462 = vpack.c.b16 %v433, %v432
        %v463 = vpack.c.b16 %v435, %v434
        %v464 = vpack.c.b16 %v437, %v436
        %v465 = vpack.c.b16 %v439, %v438
        %v466 = vpack.c.b16 %v441, %v440
        %v467 = vpack.c.b16 %v443, %v442
        %v468 = vpack.c.b16 %v445, %v444
        %v469 = vpack.c.b16 %v447, %v446
        %v470 = vpack.c.b16 %v449, %v448
        %v471 = vpack.c.b16 %v451, %v450
        %v472 = vpack.c.b16 %v453, %v452
        %v473 = vpack.c.b16 %v455, %v454
        %v474 = vpack.c.b16 %v457, %v456
        %v475 = vpack.c.b16 %v459, %v458
        %v480 = vunpack.c.l.b16 %v386
        %v481 = vunpack.c.h.b16 %v386
        %v482 = vunpack.c.l.b16 %v387
        %v483 = vunpack.c.h.b16 %v387
        %v484 = vunpack.c.l.b16 %v388
        %v485 = vunpack.c.h.b16 %v388
        %v486 = vunpack.c.l.b16 %v389
        %v487 = vunpack.c.h.b16 %v389
        %v488 = vpack.c.b16 %v482, %v480
        %v489 = vpack.c.b16 %v483, %v481
        %v490 = vpack.c.b16 %v486, %v484
        %v491 = vpack.c.b16 %v487, %v485
        %vm496 = vcmask 261120
        %v498 = vsel %vm496, %v460, 0
        %v501 = vsel %vm496, %v461, 0
        %v504 = vsel %vm496, %v462, 0
        %v507 = vsel %vm496, %v463, 0
        %v510 = vsel %vm496, %v464, 0
        %v513 = vsel %vm496, %v465, 0
        %v516 = vsel %vm496, %v466, 0
        %v519 = vsel %vm496, %v467, 0
        %v522 = vsel %vm496, %v468, 0
        %v525 = vsel %vm496, %v469, 0
        %v528 = vsel %vm496, %v470, 0
        %v531 = vsel %vm496, %v471, 0
        %v534 = vsel %vm496, %v472, 0
        %v537 = vsel %vm496, %v473, 0
        %v540 = vsel %vm496, %v474, 0
        %v543 = vsel %vm496, %v475, 0
        %545 = vmatpush.bf16.msra.mxu0 0
        %546 = vmatpush.bf16.msra.mxu0 0
        %547 = vmatpush.bf16.msra.mxu0 0
        %548 = vmatpush.bf16.msra.mxu0 0
        %549 = vmatpush.bf16.msra.mxu0 0
        %550 = vmatpush.bf16.msra.mxu0 0
        %551 = vmatpush.bf16.msra.mxu0 %v490
        %552 = vmatpush.bf16.msra.mxu0 %v488
        %553 = vmatmul.bf16.gmra.mxu0 %v498
        %v554 = vpop.f32.mrf.mxu0
        %v555 = vadd.f32 %v392, %v554
        %v556 = vpop.f32.mrf.mxu0
        %v557 = vadd.f32 %v392, %v556
        %558 = vmatmul.bf16.gmra.mxu0 %v501
        %v559 = vpop.f32.mrf.mxu0
        %v560 = vadd.f32 %v392, %v559
        %v561 = vpop.f32.mrf.mxu0
        %v562 = vadd.f32 %v392, %v561
        %563 = vmatmul.bf16.gmra.mxu0 %v504
        %v564 = vpop.f32.mrf.mxu0
        %v565 = vadd.f32 %v392, %v564
        %v566 = vpop.f32.mrf.mxu0
        %v567 = vadd.f32 %v392, %v566
        %568 = vmatmul.bf16.gmra.mxu0 %v507
        %v569 = vpop.f32.mrf.mxu0
        %v570 = vadd.f32 %v392, %v569
        %v571 = vpop.f32.mrf.mxu0
        %v572 = vadd.f32 %v392, %v571
        %573 = vmatmul.bf16.gmra.mxu0 %v510
        %v574 = vpop.f32.mrf.mxu0
        %v575 = vadd.f32 %v392, %v574
        %v576 = vpop.f32.mrf.mxu0
        %v577 = vadd.f32 %v392, %v576
        %578 = vmatmul.bf16.gmra.mxu0 %v513
        %v579 = vpop.f32.mrf.mxu0
        %v580 = vadd.f32 %v392, %v579
        %v581 = vpop.f32.mrf.mxu0
        %v582 = vadd.f32 %v392, %v581
        %583 = vmatmul.bf16.gmra.mxu0 %v516
        %v584 = vpop.f32.mrf.mxu0
        %v585 = vadd.f32 %v392, %v584
        %v586 = vpop.f32.mrf.mxu0
        %v587 = vadd.f32 %v392, %v586
        %588 = vmatmul.bf16.gmra.mxu0 %v519
        %v589 = vpop.f32.mrf.mxu0
        %v590 = vadd.f32 %v392, %v589
        %v591 = vpop.f32.mrf.mxu0
        %v592 = vadd.f32 %v392, %v591
        %593 = vmatmul.bf16.gmra.mxu0 %v522
        %v594 = vpop.f32.mrf.mxu0
        %v595 = vadd.f32 %v392, %v594
        %v596 = vpop.f32.mrf.mxu0
        %v597 = vadd.f32 %v392, %v596
        %598 = vmatmul.bf16.gmra.mxu0 %v525
        %v599 = vpop.f32.mrf.mxu0
        %v600 = vadd.f32 %v392, %v599
        %v601 = vpop.f32.mrf.mxu0
        %v602 = vadd.f32 %v392, %v601
        %603 = vmatmul.bf16.gmra.mxu0 %v528
        %v604 = vpop.f32.mrf.mxu0
        %v605 = vadd.f32 %v392, %v604
        %v606 = vpop.f32.mrf.mxu0
        %v607 = vadd.f32 %v392, %v606
        %608 = vmatmul.bf16.gmra.mxu0 %v531
        %v609 = vpop.f32.mrf.mxu0
        %v610 = vadd.f32 %v392, %v609
        %v611 = vpop.f32.mrf.mxu0
        %v612 = vadd.f32 %v392, %v611
        %613 = vmatmul.bf16.gmra.mxu0 %v534
        %v614 = vpop.f32.mrf.mxu0
        %v615 = vadd.f32 %v392, %v614
        %v616 = vpop.f32.mrf.mxu0
        %v617 = vadd.f32 %v392, %v616
        %618 = vmatmul.bf16.gmra.mxu0 %v537
        %v619 = vpop.f32.mrf.mxu0
        %v620 = vadd.f32 %v392, %v619
        %v621 = vpop.f32.mrf.mxu0
        %v622 = vadd.f32 %v392, %v621
        %623 = vmatmul.bf16.gmra.mxu0 %v540
        %v624 = vpop.f32.mrf.mxu0
        %v625 = vadd.f32 %v392, %v624
        %v626 = vpop.f32.mrf.mxu0
        %v627 = vadd.f32 %v392, %v626
        %628 = vmatmul.bf16.gmra.mxu0 %v543
        %v629 = vpop.f32.mrf.mxu0
        %v630 = vadd.f32 %v392, %v629
        %v631 = vpop.f32.mrf.mxu0
        %v632 = vadd.f32 %v392, %v631
        %633 = vdwg.mxu0
        %634 = vmatpush.bf16.msra.mxu0 0
        %635 = vmatpush.bf16.msra.mxu0 0
        %636 = vmatpush.bf16.msra.mxu0 0
        %637 = vmatpush.bf16.msra.mxu0 0
        %638 = vmatpush.bf16.msra.mxu0 0
        %639 = vmatpush.bf16.msra.mxu0 0
        %640 = vmatpush.bf16.msra.mxu0 %v491
        %641 = vmatpush.bf16.msra.mxu0 %v489
        %642 = vmatmul.bf16.gmra.mxu0 %v498
        %v643 = vpop.f32.mrf.mxu0
        %v644 = vadd.f32 %v393, %v643
        %v645 = vpop.f32.mrf.mxu0
        %v646 = vadd.f32 %v393, %v645
        %647 = vmatmul.bf16.gmra.mxu0 %v501
        %v648 = vpop.f32.mrf.mxu0
        %v649 = vadd.f32 %v393, %v648
        %v650 = vpop.f32.mrf.mxu0
        %v651 = vadd.f32 %v393, %v650
        %652 = vmatmul.bf16.gmra.mxu0 %v504
        %v653 = vpop.f32.mrf.mxu0
        %v654 = vadd.f32 %v393, %v653
        %v655 = vpop.f32.mrf.mxu0
        %v656 = vadd.f32 %v393, %v655
        %657 = vmatmul.bf16.gmra.mxu0 %v507
        %v658 = vpop.f32.mrf.mxu0
        %v659 = vadd.f32 %v393, %v658
        %v660 = vpop.f32.mrf.mxu0
        %v661 = vadd.f32 %v393, %v660
        %662 = vmatmul.bf16.gmra.mxu0 %v510
        %v663 = vpop.f32.mrf.mxu0
        %v664 = vadd.f32 %v393, %v663
        %v665 = vpop.f32.mrf.mxu0
        %v666 = vadd.f32 %v393, %v665
        %667 = vmatmul.bf16.gmra.mxu0 %v513
        %v668 = vpop.f32.mrf.mxu0
        %v669 = vadd.f32 %v393, %v668
        %v670 = vpop.f32.mrf.mxu0
        %v671 = vadd.f32 %v393, %v670
        %672 = vmatmul.bf16.gmra.mxu0 %v516
        %v673 = vpop.f32.mrf.mxu0
        %v674 = vadd.f32 %v393, %v673
        %v675 = vpop.f32.mrf.mxu0
        %v676 = vadd.f32 %v393, %v675
        %677 = vmatmul.bf16.gmra.mxu0 %v519
        %v678 = vpop.f32.mrf.mxu0
        %v679 = vadd.f32 %v393, %v678
        %v680 = vpop.f32.mrf.mxu0
        %v681 = vadd.f32 %v393, %v680
        %682 = vmatmul.bf16.gmra.mxu0 %v522
        %v683 = vpop.f32.mrf.mxu0
        %v684 = vadd.f32 %v393, %v683
        %v685 = vpop.f32.mrf.mxu0
        %v686 = vadd.f32 %v393, %v685
        %687 = vmatmul.bf16.gmra.mxu0 %v525
        %v688 = vpop.f32.mrf.mxu0
        %v689 = vadd.f32 %v393, %v688
        %v690 = vpop.f32.mrf.mxu0
        %v691 = vadd.f32 %v393, %v690
        %692 = vmatmul.bf16.gmra.mxu0 %v528
        %v693 = vpop.f32.mrf.mxu0
        %v694 = vadd.f32 %v393, %v693
        %v695 = vpop.f32.mrf.mxu0
        %v696 = vadd.f32 %v393, %v695
        %697 = vmatmul.bf16.gmra.mxu0 %v531
        %v698 = vpop.f32.mrf.mxu0
        %v699 = vadd.f32 %v393, %v698
        %v700 = vpop.f32.mrf.mxu0
        %v701 = vadd.f32 %v393, %v700
        %702 = vmatmul.bf16.gmra.mxu0 %v534
        %v703 = vpop.f32.mrf.mxu0
        %v704 = vadd.f32 %v393, %v703
        %v705 = vpop.f32.mrf.mxu0
        %v706 = vadd.f32 %v393, %v705
        %707 = vmatmul.bf16.gmra.mxu0 %v537
        %v708 = vpop.f32.mrf.mxu0
        %v709 = vadd.f32 %v393, %v708
        %v710 = vpop.f32.mrf.mxu0
        %v711 = vadd.f32 %v393, %v710
        %712 = vmatmul.bf16.gmra.mxu0 %v540
        %v713 = vpop.f32.mrf.mxu0
        %v714 = vadd.f32 %v393, %v713
        %v715 = vpop.f32.mrf.mxu0
        %v716 = vadd.f32 %v393, %v715
        %717 = vmatmul.bf16.gmra.mxu0 %v543
        %v718 = vpop.f32.mrf.mxu0
        %v719 = vadd.f32 %v393, %v718
        %v720 = vpop.f32.mrf.mxu0
        %v721 = vadd.f32 %v393, %v720
        %722 = vdwg.mxu0
        %v723 = vmax.f32 %v555, 0.0
        %v724 = vmax.f32 %v644, 0.0
        %v725 = vmax.f32 %v557, 0.0
        %v726 = vmax.f32 %v646, 0.0
        %v727 = vmax.f32 %v560, 0.0
        %v728 = vmax.f32 %v649, 0.0
        %v729 = vmax.f32 %v562, 0.0
        %v730 = vmax.f32 %v651, 0.0
        %v731 = vmax.f32 %v565, 0.0
        %v732 = vmax.f32 %v654, 0.0
        %v733 = vmax.f32 %v567, 0.0
        %v734 = vmax.f32 %v656, 0.0
        %v735 = vmax.f32 %v570, 0.0
        %v736 = vmax.f32 %v659, 0.0
        %v737 = vmax.f32 %v572, 0.0
        %v738 = vmax.f32 %v661, 0.0
        %v739 = vmax.f32 %v575, 0.0
        %v740 = vmax.f32 %v664, 0.0
        %v741 = vmax.f32 %v577, 0.0
        %v742 = vmax.f32 %v666, 0.0
        %v743 = vmax.f32 %v580, 0.0
        %v744 = vmax.f32 %v669, 0.0
        %v745 = vmax.f32 %v582, 0.0
        %v746 = vmax.f32 %v671, 0.0
        %v747 = vmax.f32 %v585, 0.0
        %v748 = vmax.f32 %v674, 0.0
        %v749 = vmax.f32 %v587, 0.0
        %v750 = vmax.f32 %v676, 0.0
        %v751 = vmax.f32 %v590, 0.0
        %v752 = vmax.f32 %v679, 0.0
        %v753 = vmax.f32 %v592, 0.0
        %v754 = vmax.f32 %v681, 0.0
        %v755 = vmax.f32 %v595, 0.0
        %v756 = vmax.f32 %v684, 0.0
        %v757 = vmax.f32 %v597, 0.0
        %v758 = vmax.f32 %v686, 0.0
        %v759 = vmax.f32 %v600, 0.0
        %v760 = vmax.f32 %v689, 0.0
        %v761 = vmax.f32 %v602, 0.0
        %v762 = vmax.f32 %v691, 0.0
        %v763 = vmax.f32 %v605, 0.0
        %v764 = vmax.f32 %v694, 0.0
        %v765 = vmax.f32 %v607, 0.0
        %v766 = vmax.f32 %v696, 0.0
        %v767 = vmax.f32 %v610, 0.0
        %v768 = vmax.f32 %v699, 0.0
        %v769 = vmax.f32 %v612, 0.0
        %v770 = vmax.f32 %v701, 0.0
        %v771 = vmax.f32 %v615, 0.0
        %v772 = vmax.f32 %v704, 0.0
        %v773 = vmax.f32 %v617, 0.0
        %v774 = vmax.f32 %v706, 0.0
        %v775 = vmax.f32 %v620, 0.0
        %v776 = vmax.f32 %v709, 0.0
        %v777 = vmax.f32 %v622, 0.0
        %v778 = vmax.f32 %v711, 0.0
        %v779 = vmax.f32 %v625, 0.0
        %v780 = vmax.f32 %v714, 0.0
        %v781 = vmax.f32 %v627, 0.0
        %v782 = vmax.f32 %v716, 0.0
        %v783 = vmax.f32 %v630, 0.0
        %v784 = vmax.f32 %v719, 0.0
        %v785 = vmax.f32 %v632, 0.0
        %v786 = vmax.f32 %v721, 0.0
        %v787 = vpack.c.bf16 %v725, %v723
        %v788 = vpack.c.bf16 %v726, %v724
        %v789 = vpack.c.bf16 %v729, %v727
        %v790 = vpack.c.bf16 %v730, %v728
        %v791 = vpack.c.bf16 %v733, %v731
        %v792 = vpack.c.bf16 %v734, %v732
        %v793 = vpack.c.bf16 %v737, %v735
        %v794 = vpack.c.bf16 %v738, %v736
        %v795 = vpack.c.bf16 %v741, %v739
        %v796 = vpack.c.bf16 %v742, %v740
        %v797 = vpack.c.bf16 %v745, %v743
        %v798 = vpack.c.bf16 %v746, %v744
        %v799 = vpack.c.bf16 %v749, %v747
        %v800 = vpack.c.bf16 %v750, %v748
        %v801 = vpack.c.bf16 %v753, %v751
        %v802 = vpack.c.bf16 %v754, %v752
        %v803 = vpack.c.bf16 %v757, %v755
        %v804 = vpack.c.bf16 %v758, %v756
        %v805 = vpack.c.bf16 %v761, %v759
        %v806 = vpack.c.bf16 %v762, %v760
        %v807 = vpack.c.bf16 %v765, %v763
        %v808 = vpack.c.bf16 %v766, %v764
        %v809 = vpack.c.bf16 %v769, %v767
        %v810 = vpack.c.bf16 %v770, %v768
        %v811 = vpack.c.bf16 %v773, %v771
        %v812 = vpack.c.bf16 %v774, %v772
        %v813 = vpack.c.bf16 %v777, %v775
        %v814 = vpack.c.bf16 %v778, %v776
        %v815 = vpack.c.bf16 %v781, %v779
        %v816 = vpack.c.bf16 %v782, %v780
        %v817 = vpack.c.bf16 %v785, %v783
        %v818 = vpack.c.bf16 %v786, %v784
        %v819 = vld [vmem:[%s3] sm:$0xff]
        %v820 = vld [vmem:[%s3 + $0x8] sm:$0xff]
        %v821 = vld [vmem:[%s3 + $0x10] sm:$0xff]
        %v822 = vld [vmem:[%s3 + $0x18] sm:$0xff]
        %v823 = vld [vmem:[%s3 + $0x20] sm:$0xff]
        %v824 = vld [vmem:[%s3 + $0x28] sm:$0xff]
        %v825 = vld [vmem:[%s3 + $0x30] sm:$0xff]
        %v826 = vld [vmem:[%s3 + $0x38] sm:$0xff]
        %v827 = vld [vmem:[%s3 + $0x40] sm:$0xff]
        %v828 = vld [vmem:[%s3 + $0x48] sm:$0xff]
        %v829 = vld [vmem:[%s3 + $0x50] sm:$0xff]
        %v830 = vld [vmem:[%s3 + $0x58] sm:$0xff]
        %v831 = vld [vmem:[%s3 + $0x60] sm:$0xff]
        %v832 = vld [vmem:[%s3 + $0x68] sm:$0xff]
        %v833 = vld [vmem:[%s3 + $0x70] sm:$0xff]
        %v834 = vld [vmem:[%s3 + $0x78] sm:$0xff]
        %v835 = vld [vmem:[%s3 + $0x80] sm:$0xff]
        %v836 = vld [vmem:[%s3 + $0x88] sm:$0xff]
        %v837 = vld [vmem:[%s3 + $0x90] sm:$0xff]
        %v838 = vld [vmem:[%s3 + $0x98] sm:$0xff]
        %v839 = vld [vmem:[%s3 + $0xa0] sm:$0xff]
        %v840 = vld [vmem:[%s3 + $0xa8] sm:$0xff]
        %v841 = vld [vmem:[%s3 + $0xb0] sm:$0xff]
        %v842 = vld [vmem:[%s3 + $0xb8] sm:$0xff]
        %v843 = vld [vmem:[%s3 + $0xc0] sm:$0xff]
        %v844 = vld [vmem:[%s3 + $0xc8] sm:$0xff]
        %v845 = vld [vmem:[%s3 + $0xd0] sm:$0xff]
        %v846 = vld [vmem:[%s3 + $0xd8] sm:$0xff]
        %v847 = vld [vmem:[%s3 + $0xe0] sm:$0xff]
        %v848 = vld [vmem:[%s3 + $0xe8] sm:$0xff]
        %v849 = vld [vmem:[%s3 + $0xf0] sm:$0xff]
        %v850 = vld [vmem:[%s3 + $0xf8] sm:$0xff]
        %v851 = vld [vmem:[%s4] sm:$0x3]
        %v853 = vperm.slane %v851, 0
        %v854 = vperm.slane %v851, 1
        %v889 = vunpack.c.l.b16 %v819
        %v890 = vunpack.c.h.b16 %v819
        %v891 = vunpack.c.l.b16 %v820
        %v892 = vunpack.c.h.b16 %v820
        %v893 = vunpack.c.l.b16 %v821
        %v894 = vunpack.c.h.b16 %v821
        %v895 = vunpack.c.l.b16 %v822
        %v896 = vunpack.c.h.b16 %v822
        %v897 = vunpack.c.l.b16 %v823
        %v898 = vunpack.c.h.b16 %v823
        %v899 = vunpack.c.l.b16 %v824
        %v900 = vunpack.c.h.b16 %v824
        %v901 = vunpack.c.l.b16 %v825
        %v902 = vunpack.c.h.b16 %v825
        %v903 = vunpack.c.l.b16 %v826
        %v904 = vunpack.c.h.b16 %v826
        %v905 = vunpack.c.l.b16 %v827
        %v906 = vunpack.c.h.b16 %v827
        %v907 = vunpack.c.l.b16 %v828
        %v908 = vunpack.c.h.b16 %v828
        %v909 = vunpack.c.l.b16 %v829
        %v910 = vunpack.c.h.b16 %v829
        %v911 = vunpack.c.l.b16 %v830
        %v912 = vunpack.c.h.b16 %v830
        %v913 = vunpack.c.l.b16 %v831
        %v914 = vunpack.c.h.b16 %v831
        %v915 = vunpack.c.l.b16 %v832
        %v916 = vunpack.c.h.b16 %v832
        %v917 = vunpack.c.l.b16 %v833
        %v918 = vunpack.c.h.b16 %v833
        %v919 = vunpack.c.l.b16 %v834
        %v920 = vunpack.c.h.b16 %v834
        %v921 = vunpack.c.l.b16 %v835
        %v922 = vunpack.c.h.b16 %v835
        %v923 = vunpack.c.l.b16 %v836
        %v924 = vunpack.c.h.b16 %v836
        %v925 = vunpack.c.l.b16 %v837
        %v926 = vunpack.c.h.b16 %v837
        %v927 = vunpack.c.l.b16 %v838
        %v928 = vunpack.c.h.b16 %v838
        %v929 = vunpack.c.l.b16 %v839
        %v930 = vunpack.c.h.b16 %v839
        %v931 = vunpack.c.l.b16 %v840
        %v932 = vunpack.c.h.b16 %v840
        %v933 = vunpack.c.l.b16 %v841
        %v934 = vunpack.c.h.b16 %v841
        %v935 = vunpack.c.l.b16 %v842
        %v936 = vunpack.c.h.b16 %v842
        %v937 = vunpack.c.l.b16 %v843
        %v938 = vunpack.c.h.b16 %v843
        %v939 = vunpack.c.l.b16 %v844
        %v940 = vunpack.c.h.b16 %v844
        %v941 = vunpack.c.l.b16 %v845
        %v942 = vunpack.c.h.b16 %v845
        %v943 = vunpack.c.l.b16 %v846
        %v944 = vunpack.c.h.b16 %v846
        %v945 = vunpack.c.l.b16 %v847
        %v946 = vunpack.c.h.b16 %v847
        %v947 = vunpack.c.l.b16 %v848
        %v948 = vunpack.c.h.b16 %v848
        %v949 = vunpack.c.l.b16 %v849
        %v950 = vunpack.c.h.b16 %v849
        %v951 = vunpack.c.l.b16 %v850
        %v952 = vunpack.c.h.b16 %v850
        %v953 = vpack.c.b16 %v891, %v889
        %v954 = vpack.c.b16 %v892, %v890
        %v955 = vpack.c.b16 %v895, %v893
        %v956 = vpack.c.b16 %v896, %v894
        %v957 = vpack.c.b16 %v899, %v897
        %v958 = vpack.c.b16 %v900, %v898
        %v959 = vpack.c.b16 %v903, %v901
        %v960 = vpack.c.b16 %v904, %v902
        %v961 = vpack.c.b16 %v907, %v905
        %v962 = vpack.c.b16 %v908, %v906
        %v963 = vpack.c.b16 %v911, %v909
        %v964 = vpack.c.b16 %v912, %v910
        %v965 = vpack.c.b16 %v915, %v913
        %v966 = vpack.c.b16 %v916, %v914
        %v967 = vpack.c.b16 %v919, %v917
        %v968 = vpack.c.b16 %v920, %v918
        %v969 = vpack.c.b16 %v923, %v921
        %v970 = vpack.c.b16 %v924, %v922
        %v971 = vpack.c.b16 %v927, %v925
        %v972 = vpack.c.b16 %v928, %v926
        %v973 = vpack.c.b16 %v931, %v929
        %v974 = vpack.c.b16 %v932, %v930
        %v975 = vpack.c.b16 %v935, %v933
        %v976 = vpack.c.b16 %v936, %v934
        %v977 = vpack.c.b16 %v939, %v937
        %v978 = vpack.c.b16 %v940, %v938
        %v979 = vpack.c.b16 %v943, %v941
        %v980 = vpack.c.b16 %v944, %v942
        %v981 = vpack.c.b16 %v947, %v945
        %v982 = vpack.c.b16 %v948, %v946
        %v983 = vpack.c.b16 %v951, %v949
        %v984 = vpack.c.b16 %v952, %v950
        %1017 = vmatpush.bf16.msra.mxu0 %v967
        %1018 = vmatpush.bf16.msra.mxu0 %v965
        %1019 = vmatpush.bf16.msra.mxu0 %v963
        %1020 = vmatpush.bf16.msra.mxu0 %v961
        %1021 = vmatpush.bf16.msra.mxu0 %v959
        %1022 = vmatpush.bf16.msra.mxu0 %v957
        %1023 = vmatpush.bf16.msra.mxu0 %v955
        %1024 = vmatpush.bf16.msra.mxu0 %v953
        %1025 = vmatmul.bf16.gmra.mxu0 %v787
        %v1026 = vpop.f32.mrf.mxu0
        %v1027 = vadd.f32 %v853, %v1026
        %v1028 = vpop.f32.mrf.mxu0
        %v1029 = vadd.f32 %v853, %v1028
        %1030 = vmatmul.bf16.gmra.mxu0 %v789
        %v1031 = vpop.f32.mrf.mxu0
        %v1032 = vadd.f32 %v853, %v1031
        %v1033 = vpop.f32.mrf.mxu0
        %v1034 = vadd.f32 %v853, %v1033
        %1035 = vmatmul.bf16.gmra.mxu0 %v791
        %v1036 = vpop.f32.mrf.mxu0
        %v1037 = vadd.f32 %v853, %v1036
        %v1038 = vpop.f32.mrf.mxu0
        %v1039 = vadd.f32 %v853, %v1038
        %1040 = vmatmul.bf16.gmra.mxu0 %v793
        %v1041 = vpop.f32.mrf.mxu0
        %v1042 = vadd.f32 %v853, %v1041
        %v1043 = vpop.f32.mrf.mxu0
        %v1044 = vadd.f32 %v853, %v1043
        %1045 = vmatmul.bf16.gmra.mxu0 %v795
        %v1046 = vpop.f32.mrf.mxu0
        %v1047 = vadd.f32 %v853, %v1046
        %v1048 = vpop.f32.mrf.mxu0
        %v1049 = vadd.f32 %v853, %v1048
        %1050 = vmatmul.bf16.gmra.mxu0 %v797
        %v1051 = vpop.f32.mrf.mxu0
        %v1052 = vadd.f32 %v853, %v1051
        %v1053 = vpop.f32.mrf.mxu0
        %v1054 = vadd.f32 %v853, %v1053
        %1055 = vmatmul.bf16.gmra.mxu0 %v799
        %v1056 = vpop.f32.mrf.mxu0
        %v1057 = vadd.f32 %v853, %v1056
        %v1058 = vpop.f32.mrf.mxu0
        %v1059 = vadd.f32 %v853, %v1058
        %1060 = vmatmul.bf16.gmra.mxu0 %v801
        %v1061 = vpop.f32.mrf.mxu0
        %v1062 = vadd.f32 %v853, %v1061
        %v1063 = vpop.f32.mrf.mxu0
        %v1064 = vadd.f32 %v853, %v1063
        %1065 = vmatmul.bf16.gmra.mxu0 %v803
        %v1066 = vpop.f32.mrf.mxu0
        %v1067 = vadd.f32 %v853, %v1066
        %v1068 = vpop.f32.mrf.mxu0
        %v1069 = vadd.f32 %v853, %v1068
        %1070 = vmatmul.bf16.gmra.mxu0 %v805
        %v1071 = vpop.f32.mrf.mxu0
        %v1072 = vadd.f32 %v853, %v1071
        %v1073 = vpop.f32.mrf.mxu0
        %v1074 = vadd.f32 %v853, %v1073
        %1075 = vmatmul.bf16.gmra.mxu0 %v807
        %v1076 = vpop.f32.mrf.mxu0
        %v1077 = vadd.f32 %v853, %v1076
        %v1078 = vpop.f32.mrf.mxu0
        %v1079 = vadd.f32 %v853, %v1078
        %1080 = vmatmul.bf16.gmra.mxu0 %v809
        %v1081 = vpop.f32.mrf.mxu0
        %v1082 = vadd.f32 %v853, %v1081
        %v1083 = vpop.f32.mrf.mxu0
        %v1084 = vadd.f32 %v853, %v1083
        %1085 = vmatmul.bf16.gmra.mxu0 %v811
        %v1086 = vpop.f32.mrf.mxu0
        %v1087 = vadd.f32 %v853, %v1086
        %v1088 = vpop.f32.mrf.mxu0
        %v1089 = vadd.f32 %v853, %v1088
        %1090 = vmatmul.bf16.gmra.mxu0 %v813
        %v1091 = vpop.f32.mrf.mxu0
        %v1092 = vadd.f32 %v853, %v1091
        %v1093 = vpop.f32.mrf.mxu0
        %v1094 = vadd.f32 %v853, %v1093
        %1095 = vmatmul.bf16.gmra.mxu0 %v815
        %v1096 = vpop.f32.mrf.mxu0
        %v1097 = vadd.f32 %v853, %v1096
        %v1098 = vpop.f32.mrf.mxu0
        %v1099 = vadd.f32 %v853, %v1098
        %1100 = vmatmul.bf16.gmra.mxu0 %v817
        %v1101 = vpop.f32.mrf.mxu0
        %v1102 = vadd.f32 %v853, %v1101
        %v1103 = vpop.f32.mrf.mxu0
        %v1104 = vadd.f32 %v853, %v1103
        %1105 = vdwg.mxu0
        %1106 = vmatpush.bf16.msra.mxu0 %v983
        %1107 = vmatpush.bf16.msra.mxu0 %v981
        %1108 = vmatpush.bf16.msra.mxu0 %v979
        %1109 = vmatpush.bf16.msra.mxu0 %v977
        %1110 = vmatpush.bf16.msra.mxu0 %v975
        %1111 = vmatpush.bf16.msra.mxu0 %v973
        %1112 = vmatpush.bf16.msra.mxu0 %v971
        %1113 = vmatpush.bf16.msra.mxu0 %v969
        %1114 = vmatmul.bf16.gmra.mxu0 %v788
        %v1115 = vpop.f32.mrf.mxu0
        %v1116 = vadd.f32 %v1027, %v1115
        %v1117 = vpop.f32.mrf.mxu0
        %v1118 = vadd.f32 %v1029, %v1117
        %1119 = vmatmul.bf16.gmra.mxu0 %v790
        %v1120 = vpop.f32.mrf.mxu0
        %v1121 = vadd.f32 %v1032, %v1120
        %v1122 = vpop.f32.mrf.mxu0
        %v1123 = vadd.f32 %v1034, %v1122
        %1124 = vmatmul.bf16.gmra.mxu0 %v792
        %v1125 = vpop.f32.mrf.mxu0
        %v1126 = vadd.f32 %v1037, %v1125
        %v1127 = vpop.f32.mrf.mxu0
        %v1128 = vadd.f32 %v1039, %v1127
        %1129 = vmatmul.bf16.gmra.mxu0 %v794
        %v1130 = vpop.f32.mrf.mxu0
        %v1131 = vadd.f32 %v1042, %v1130
        %v1132 = vpop.f32.mrf.mxu0
        %v1133 = vadd.f32 %v1044, %v1132
        %1134 = vmatmul.bf16.gmra.mxu0 %v796
        %v1135 = vpop.f32.mrf.mxu0
        %v1136 = vadd.f32 %v1047, %v1135
        %v1137 = vpop.f32.mrf.mxu0
        %v1138 = vadd.f32 %v1049, %v1137
        %1139 = vmatmul.bf16.gmra.mxu0 %v798
        %v1140 = vpop.f32.mrf.mxu0
        %v1141 = vadd.f32 %v1052, %v1140
        %v1142 = vpop.f32.mrf.mxu0
        %v1143 = vadd.f32 %v1054, %v1142
        %1144 = vmatmul.bf16.gmra.mxu0 %v800
        %v1145 = vpop.f32.mrf.mxu0
        %v1146 = vadd.f32 %v1057, %v1145
        %v1147 = vpop.f32.mrf.mxu0
        %v1148 = vadd.f32 %v1059, %v1147
        %1149 = vmatmul.bf16.gmra.mxu0 %v802
        %v1150 = vpop.f32.mrf.mxu0
        %v1151 = vadd.f32 %v1062, %v1150
        %v1152 = vpop.f32.mrf.mxu0
        %v1153 = vadd.f32 %v1064, %v1152
        %1154 = vmatmul.bf16.gmra.mxu0 %v804
        %v1155 = vpop.f32.mrf.mxu0
        %v1156 = vadd.f32 %v1067, %v1155
        %v1157 = vpop.f32.mrf.mxu0
        %v1158 = vadd.f32 %v1069, %v1157
        %1159 = vmatmul.bf16.gmra.mxu0 %v806
        %v1160 = vpop.f32.mrf.mxu0
        %v1161 = vadd.f32 %v1072, %v1160
        %v1162 = vpop.f32.mrf.mxu0
        %v1163 = vadd.f32 %v1074, %v1162
        %1164 = vmatmul.bf16.gmra.mxu0 %v808
        %v1165 = vpop.f32.mrf.mxu0
        %v1166 = vadd.f32 %v1077, %v1165
        %v1167 = vpop.f32.mrf.mxu0
        %v1168 = vadd.f32 %v1079, %v1167
        %1169 = vmatmul.bf16.gmra.mxu0 %v810
        %v1170 = vpop.f32.mrf.mxu0
        %v1171 = vadd.f32 %v1082, %v1170
        %v1172 = vpop.f32.mrf.mxu0
        %v1173 = vadd.f32 %v1084, %v1172
        %1174 = vmatmul.bf16.gmra.mxu0 %v812
        %v1175 = vpop.f32.mrf.mxu0
        %v1176 = vadd.f32 %v1087, %v1175
        %v1177 = vpop.f32.mrf.mxu0
        %v1178 = vadd.f32 %v1089, %v1177
        %1179 = vmatmul.bf16.gmra.mxu0 %v814
        %v1180 = vpop.f32.mrf.mxu0
        %v1181 = vadd.f32 %v1092, %v1180
        %v1182 = vpop.f32.mrf.mxu0
        %v1183 = vadd.f32 %v1094, %v1182
        %1184 = vmatmul.bf16.gmra.mxu0 %v816
        %v1185 = vpop.f32.mrf.mxu0
        %v1186 = vadd.f32 %v1097, %v1185
        %v1187 = vpop.f32.mrf.mxu0
        %v1188 = vadd.f32 %v1099, %v1187
        %1189 = vmatmul.bf16.gmra.mxu0 %v818
        %v1190 = vpop.f32.mrf.mxu0
        %v1191 = vadd.f32 %v1102, %v1190
        %v1192 = vpop.f32.mrf.mxu0
        %v1193 = vadd.f32 %v1104, %v1192
        %1194 = vdwg.mxu0
        %1195 = vmatpush.bf16.msra.mxu0 %v968
        %1196 = vmatpush.bf16.msra.mxu0 %v966
        %1197 = vmatpush.bf16.msra.mxu0 %v964
        %1198 = vmatpush.bf16.msra.mxu0 %v962
        %1199 = vmatpush.bf16.msra.mxu0 %v960
        %1200 = vmatpush.bf16.msra.mxu0 %v958
        %1201 = vmatpush.bf16.msra.mxu0 %v956
        %1202 = vmatpush.bf16.msra.mxu0 %v954
        %1203 = vmatmul.bf16.gmra.mxu0 %v787
        %v1204 = vpop.f32.mrf.mxu0
        %v1205 = vadd.f32 %v854, %v1204
        %v1206 = vpop.f32.mrf.mxu0
        %v1207 = vadd.f32 %v854, %v1206
        %1208 = vmatmul.bf16.gmra.mxu0 %v789
        %v1209 = vpop.f32.mrf.mxu0
        %v1210 = vadd.f32 %v854, %v1209
        %v1211 = vpop.f32.mrf.mxu0
        %v1212 = vadd.f32 %v854, %v1211
        %1213 = vmatmul.bf16.gmra.mxu0 %v791
        %v1214 = vpop.f32.mrf.mxu0
        %v1215 = vadd.f32 %v854, %v1214
        %v1216 = vpop.f32.mrf.mxu0
        %v1217 = vadd.f32 %v854, %v1216
        %1218 = vmatmul.bf16.gmra.mxu0 %v793
        %v1219 = vpop.f32.mrf.mxu0
        %v1220 = vadd.f32 %v854, %v1219
        %v1221 = vpop.f32.mrf.mxu0
        %v1222 = vadd.f32 %v854, %v1221
        %1223 = vmatmul.bf16.gmra.mxu0 %v795
        %v1224 = vpop.f32.mrf.mxu0
        %v1225 = vadd.f32 %v854, %v1224
        %v1226 = vpop.f32.mrf.mxu0
        %v1227 = vadd.f32 %v854, %v1226
        %1228 = vmatmul.bf16.gmra.mxu0 %v797
        %v1229 = vpop.f32.mrf.mxu0
        %v1230 = vadd.f32 %v854, %v1229
        %v1231 = vpop.f32.mrf.mxu0
        %v1232 = vadd.f32 %v854, %v1231
        %1233 = vmatmul.bf16.gmra.mxu0 %v799
        %v1234 = vpop.f32.mrf.mxu0
        %v1235 = vadd.f32 %v854, %v1234
        %v1236 = vpop.f32.mrf.mxu0
        %v1237 = vadd.f32 %v854, %v1236
        %1238 = vmatmul.bf16.gmra.mxu0 %v801
        %v1239 = vpop.f32.mrf.mxu0
        %v1240 = vadd.f32 %v854, %v1239
        %v1241 = vpop.f32.mrf.mxu0
        %v1242 = vadd.f32 %v854, %v1241
        %1243 = vmatmul.bf16.gmra.mxu0 %v803
        %v1244 = vpop.f32.mrf.mxu0
        %v1245 = vadd.f32 %v854, %v1244
        %v1246 = vpop.f32.mrf.mxu0
        %v1247 = vadd.f32 %v854, %v1246
        %1248 = vmatmul.bf16.gmra.mxu0 %v805
        %v1249 = vpop.f32.mrf.mxu0
        %v1250 = vadd.f32 %v854, %v1249
        %v1251 = vpop.f32.mrf.mxu0
        %v1252 = vadd.f32 %v854, %v1251
        %1253 = vmatmul.bf16.gmra.mxu0 %v807
        %v1254 = vpop.f32.mrf.mxu0
        %v1255 = vadd.f32 %v854, %v1254
        %v1256 = vpop.f32.mrf.mxu0
        %v1257 = vadd.f32 %v854, %v1256
        %1258 = vmatmul.bf16.gmra.mxu0 %v809
        %v1259 = vpop.f32.mrf.mxu0
        %v1260 = vadd.f32 %v854, %v1259
        %v1261 = vpop.f32.mrf.mxu0
        %v1262 = vadd.f32 %v854, %v1261
        %1263 = vmatmul.bf16.gmra.mxu0 %v811
        %v1264 = vpop.f32.mrf.mxu0
        %v1265 = vadd.f32 %v854, %v1264
        %v1266 = vpop.f32.mrf.mxu0
        %v1267 = vadd.f32 %v854, %v1266
        %1268 = vmatmul.bf16.gmra.mxu0 %v813
        %v1269 = vpop.f32.mrf.mxu0
        %v1270 = vadd.f32 %v854, %v1269
        %v1271 = vpop.f32.mrf.mxu0
        %v1272 = vadd.f32 %v854, %v1271
        %1273 = vmatmul.bf16.gmra.mxu0 %v815
        %v1274 = vpop.f32.mrf.mxu0
        %v1275 = vadd.f32 %v854, %v1274
        %v1276 = vpop.f32.mrf.mxu0
        %v1277 = vadd.f32 %v854, %v1276
        %1278 = vmatmul.bf16.gmra.mxu0 %v817
        %v1279 = vpop.f32.mrf.mxu0
        %v1280 = vadd.f32 %v854, %v1279
        %v1281 = vpop.f32.mrf.mxu0
        %v1282 = vadd.f32 %v854, %v1281
        %1283 = vdwg.mxu0
        %1284 = vmatpush.bf16.msra.mxu0 %v984
        %1285 = vmatpush.bf16.msra.mxu0 %v982
        %1286 = vmatpush.bf16.msra.mxu0 %v980
        %1287 = vmatpush.bf16.msra.mxu0 %v978
        %1288 = vmatpush.bf16.msra.mxu0 %v976
        %1289 = vmatpush.bf16.msra.mxu0 %v974
        %1290 = vmatpush.bf16.msra.mxu0 %v972
        %1291 = vmatpush.bf16.msra.mxu0 %v970
        %1292 = vmatmul.bf16.gmra.mxu0 %v788
        %v1293 = vpop.f32.mrf.mxu0
        %v1294 = vadd.f32 %v1205, %v1293
        %v1295 = vpop.f32.mrf.mxu0
        %v1296 = vadd.f32 %v1207, %v1295
        %1297 = vmatmul.bf16.gmra.mxu0 %v790
        %v1298 = vpop.f32.mrf.mxu0
        %v1299 = vadd.f32 %v1210, %v1298
        %v1300 = vpop.f32.mrf.mxu0
        %v1301 = vadd.f32 %v1212, %v1300
        %1302 = vmatmul.bf16.gmra.mxu0 %v792
        %v1303 = vpop.f32.mrf.mxu0
        %v1304 = vadd.f32 %v1215, %v1303
        %v1305 = vpop.f32.mrf.mxu0
        %v1306 = vadd.f32 %v1217, %v1305
        %1307 = vmatmul.bf16.gmra.mxu0 %v794
        %v1308 = vpop.f32.mrf.mxu0
        %v1309 = vadd.f32 %v1220, %v1308
        %v1310 = vpop.f32.mrf.mxu0
        %v1311 = vadd.f32 %v1222, %v1310
        %1312 = vmatmul.bf16.gmra.mxu0 %v796
        %v1313 = vpop.f32.mrf.mxu0
        %v1314 = vadd.f32 %v1225, %v1313
        %v1315 = vpop.f32.mrf.mxu0
        %v1316 = vadd.f32 %v1227, %v1315
        %1317 = vmatmul.bf16.gmra.mxu0 %v798
        %v1318 = vpop.f32.mrf.mxu0
        %v1319 = vadd.f32 %v1230, %v1318
        %v1320 = vpop.f32.mrf.mxu0
        %v1321 = vadd.f32 %v1232, %v1320
        %1322 = vmatmul.bf16.gmra.mxu0 %v800
        %v1323 = vpop.f32.mrf.mxu0
        %v1324 = vadd.f32 %v1235, %v1323
        %v1325 = vpop.f32.mrf.mxu0
        %v1326 = vadd.f32 %v1237, %v1325
        %1327 = vmatmul.bf16.gmra.mxu0 %v802
        %v1328 = vpop.f32.mrf.mxu0
        %v1329 = vadd.f32 %v1240, %v1328
        %v1330 = vpop.f32.mrf.mxu0
        %v1331 = vadd.f32 %v1242, %v1330
        %1332 = vmatmul.bf16.gmra.mxu0 %v804
        %v1333 = vpop.f32.mrf.mxu0
        %v1334 = vadd.f32 %v1245, %v1333
        %v1335 = vpop.f32.mrf.mxu0
        %v1336 = vadd.f32 %v1247, %v1335
        %1337 = vmatmul.bf16.gmra.mxu0 %v806
        %v1338 = vpop.f32.mrf.mxu0
        %v1339 = vadd.f32 %v1250, %v1338
        %v1340 = vpop.f32.mrf.mxu0
        %v1341 = vadd.f32 %v1252, %v1340
        %1342 = vmatmul.bf16.gmra.mxu0 %v808
        %v1343 = vpop.f32.mrf.mxu0
        %v1344 = vadd.f32 %v1255, %v1343
        %v1345 = vpop.f32.mrf.mxu0
        %v1346 = vadd.f32 %v1257, %v1345
        %1347 = vmatmul.bf16.gmra.mxu0 %v810
        %v1348 = vpop.f32.mrf.mxu0
        %v1349 = vadd.f32 %v1260, %v1348
        %v1350 = vpop.f32.mrf.mxu0
        %v1351 = vadd.f32 %v1262, %v1350
        %1352 = vmatmul.bf16.gmra.mxu0 %v812
        %v1353 = vpop.f32.mrf.mxu0
        %v1354 = vadd.f32 %v1265, %v1353
        %v1355 = vpop.f32.mrf.mxu0
        %v1356 = vadd.f32 %v1267, %v1355
        %1357 = vmatmul.bf16.gmra.mxu0 %v814
        %v1358 = vpop.f32.mrf.mxu0
        %v1359 = vadd.f32 %v1270, %v1358
        %v1360 = vpop.f32.mrf.mxu0
        %v1361 = vadd.f32 %v1272, %v1360
        %1362 = vmatmul.bf16.gmra.mxu0 %v816
        %v1363 = vpop.f32.mrf.mxu0
        %v1364 = vadd.f32 %v1275, %v1363
        %v1365 = vpop.f32.mrf.mxu0
        %v1366 = vadd.f32 %v1277, %v1365
        %1367 = vmatmul.bf16.gmra.mxu0 %v818
        %v1368 = vpop.f32.mrf.mxu0
        %v1369 = vadd.f32 %v1280, %v1368
        %v1370 = vpop.f32.mrf.mxu0
        %v1371 = vadd.f32 %v1282, %v1370
        %1372 = vdwg.mxu0
        %v1373 = vmax.f32 %v1116, 0.0
        %v1374 = vmax.f32 %v1294, 0.0
        %v1375 = vmax.f32 %v1118, 0.0
        %v1376 = vmax.f32 %v1296, 0.0
        %v1377 = vmax.f32 %v1121, 0.0
        %v1378 = vmax.f32 %v1299, 0.0
        %v1379 = vmax.f32 %v1123, 0.0
        %v1380 = vmax.f32 %v1301, 0.0
        %v1381 = vmax.f32 %v1126, 0.0
        %v1382 = vmax.f32 %v1304, 0.0
        %v1383 = vmax.f32 %v1128, 0.0
        %v1384 = vmax.f32 %v1306, 0.0
        %v1385 = vmax.f32 %v1131, 0.0
        %v1386 = vmax.f32 %v1309, 0.0
        %v1387 = vmax.f32 %v1133, 0.0
        %v1388 = vmax.f32 %v1311, 0.0
        %v1389 = vmax.f32 %v1136, 0.0
        %v1390 = vmax.f32 %v1314, 0.0
        %v1391 = vmax.f32 %v1138, 0.0
        %v1392 = vmax.f32 %v1316, 0.0
        %v1393 = vmax.f32 %v1141, 0.0
        %v1394 = vmax.f32 %v1319, 0.0
        %v1395 = vmax.f32 %v1143, 0.0
        %v1396 = vmax.f32 %v1321, 0.0
        %v1397 = vmax.f32 %v1146, 0.0
        %v1398 = vmax.f32 %v1324, 0.0
        %v1399 = vmax.f32 %v1148, 0.0
        %v1400 = vmax.f32 %v1326, 0.0
        %v1401 = vmax.f32 %v1151, 0.0
        %v1402 = vmax.f32 %v1329, 0.0
        %v1403 = vmax.f32 %v1153, 0.0
        %v1404 = vmax.f32 %v1331, 0.0
        %v1405 = vmax.f32 %v1156, 0.0
        %v1406 = vmax.f32 %v1334, 0.0
        %v1407 = vmax.f32 %v1158, 0.0
        %v1408 = vmax.f32 %v1336, 0.0
        %v1409 = vmax.f32 %v1161, 0.0
        %v1410 = vmax.f32 %v1339, 0.0
        %v1411 = vmax.f32 %v1163, 0.0
        %v1412 = vmax.f32 %v1341, 0.0
        %v1413 = vmax.f32 %v1166, 0.0
        %v1414 = vmax.f32 %v1344, 0.0
        %v1415 = vmax.f32 %v1168, 0.0
        %v1416 = vmax.f32 %v1346, 0.0
        %v1417 = vmax.f32 %v1171, 0.0
        %v1418 = vmax.f32 %v1349, 0.0
        %v1419 = vmax.f32 %v1173, 0.0
        %v1420 = vmax.f32 %v1351, 0.0
        %v1421 = vmax.f32 %v1176, 0.0
        %v1422 = vmax.f32 %v1354, 0.0
        %v1423 = vmax.f32 %v1178, 0.0
        %v1424 = vmax.f32 %v1356, 0.0
        %v1425 = vmax.f32 %v1181, 0.0
        %v1426 = vmax.f32 %v1359, 0.0
        %v1427 = vmax.f32 %v1183, 0.0
        %v1428 = vmax.f32 %v1361, 0.0
        %v1429 = vmax.f32 %v1186, 0.0
        %v1430 = vmax.f32 %v1364, 0.0
        %v1431 = vmax.f32 %v1188, 0.0
        %v1432 = vmax.f32 %v1366, 0.0
        %v1433 = vmax.f32 %v1191, 0.0
        %v1434 = vmax.f32 %v1369, 0.0
        %v1435 = vmax.f32 %v1193, 0.0
        %v1436 = vmax.f32 %v1371, 0.0
        %v1437 = vpack.c.bf16 %v1375, %v1373
        %v1438 = vpack.c.bf16 %v1376, %v1374
        %v1439 = vpack.c.bf16 %v1379, %v1377
        %v1440 = vpack.c.bf16 %v1380, %v1378
        %v1441 = vpack.c.bf16 %v1383, %v1381
        %v1442 = vpack.c.bf16 %v1384, %v1382
        %v1443 = vpack.c.bf16 %v1387, %v1385
        %v1444 = vpack.c.bf16 %v1388, %v1386
        %v1445 = vpack.c.bf16 %v1391, %v1389
        %v1446 = vpack.c.bf16 %v1392, %v1390
        %v1447 = vpack.c.bf16 %v1395, %v1393
        %v1448 = vpack.c.bf16 %v1396, %v1394
        %v1449 = vpack.c.bf16 %v1399, %v1397
        %v1450 = vpack.c.bf16 %v1400, %v1398
        %v1451 = vpack.c.bf16 %v1403, %v1401
        %v1452 = vpack.c.bf16 %v1404, %v1402
        %v1453 = vpack.c.bf16 %v1407, %v1405
        %v1454 = vpack.c.bf16 %v1408, %v1406
        %v1455 = vpack.c.bf16 %v1411, %v1409
        %v1456 = vpack.c.bf16 %v1412, %v1410
        %v1457 = vpack.c.bf16 %v1415, %v1413
        %v1458 = vpack.c.bf16 %v1416, %v1414
        %v1459 = vpack.c.bf16 %v1419, %v1417
        %v1460 = vpack.c.bf16 %v1420, %v1418
        %v1461 = vpack.c.bf16 %v1423, %v1421
        %v1462 = vpack.c.bf16 %v1424, %v1422
        %v1463 = vpack.c.bf16 %v1427, %v1425
        %v1464 = vpack.c.bf16 %v1428, %v1426
        %v1465 = vpack.c.bf16 %v1431, %v1429
        %v1466 = vpack.c.bf16 %v1432, %v1430
        %v1467 = vpack.c.bf16 %v1435, %v1433
        %v1468 = vpack.c.bf16 %v1436, %v1434
        %v1469 = vld [vmem:[#allocation2] sm:$0xff]
        %v1470 = vld [vmem:[#allocation2 + $0x8] sm:$0xff]
        %v1471 = vld [vmem:[#allocation2 + $0x10] sm:$0xff]
        %v1472 = vld [vmem:[#allocation2 + $0x18] sm:$0xff]
        %v1473 = vld [vmem:[#allocation2 + $0x20] sm:$0xff]
        %v1474 = vld [vmem:[#allocation2 + $0x28] sm:$0xff]
        %v1475 = vld [vmem:[#allocation2 + $0x30] sm:$0xff]
        %v1476 = vld [vmem:[#allocation2 + $0x38] sm:$0xff]
        %v1477 = vld [vmem:[#allocation2 + $0x40] sm:$0xff]
        %v1478 = vld [vmem:[#allocation2 + $0x48] sm:$0xff]
        %v1479 = vld [vmem:[#allocation2 + $0x50] sm:$0xff]
        %v1480 = vld [vmem:[#allocation2 + $0x58] sm:$0xff]
        %v1481 = vld [vmem:[#allocation2 + $0x60] sm:$0xff]
        %v1482 = vld [vmem:[#allocation2 + $0x68] sm:$0xff]
        %v1483 = vld [vmem:[#allocation2 + $0x70] sm:$0xff]
        %v1484 = vld [vmem:[#allocation2 + $0x78] sm:$0xff]
        %v1485 = vld [vmem:[#allocation2 + $0x80] sm:$0xff]
        %v1486 = vld [vmem:[#allocation2 + $0x88] sm:$0xff]
        %v1487 = vld [vmem:[#allocation2 + $0x90] sm:$0xff]
        %v1488 = vld [vmem:[#allocation2 + $0x98] sm:$0xff]
        %v1489 = vld [vmem:[#allocation2 + $0xa0] sm:$0xff]
        %v1490 = vld [vmem:[#allocation2 + $0xa8] sm:$0xff]
        %v1491 = vld [vmem:[#allocation2 + $0xb0] sm:$0xff]
        %v1492 = vld [vmem:[#allocation2 + $0xb8] sm:$0xff]
        %v1493 = vld [vmem:[#allocation2 + $0xc0] sm:$0xff]
        %v1494 = vld [vmem:[#allocation2 + $0xc8] sm:$0xff]
        %v1495 = vld [vmem:[#allocation2 + $0xd0] sm:$0xff]
        %v1496 = vld [vmem:[#allocation2 + $0xd8] sm:$0xff]
        %v1497 = vld [vmem:[#allocation2 + $0xe0] sm:$0xff]
        %v1498 = vld [vmem:[#allocation2 + $0xe8] sm:$0xff]
        %v1499 = vld [vmem:[#allocation2 + $0xf0] sm:$0xff]
        %v1500 = vld [vmem:[#allocation2 + $0xf8] sm:$0xff]
        %v1501 = vld [vmem:[%s6] sm:$0x3]
        %v1503 = vperm.slane %v1501, 0
        %v1504 = vperm.slane %v1501, 1
        %v1539 = vunpack.c.l.b16 %v1469
        %v1540 = vunpack.c.h.b16 %v1469
        %v1541 = vunpack.c.l.b16 %v1470
        %v1542 = vunpack.c.h.b16 %v1470
        %v1543 = vunpack.c.l.b16 %v1471
        %v1544 = vunpack.c.h.b16 %v1471
        %v1545 = vunpack.c.l.b16 %v1472
        %v1546 = vunpack.c.h.b16 %v1472
        %v1547 = vunpack.c.l.b16 %v1473
        %v1548 = vunpack.c.h.b16 %v1473
        %v1549 = vunpack.c.l.b16 %v1474
        %v1550 = vunpack.c.h.b16 %v1474
        %v1551 = vunpack.c.l.b16 %v1475
        %v1552 = vunpack.c.h.b16 %v1475
        %v1553 = vunpack.c.l.b16 %v1476
        %v1554 = vunpack.c.h.b16 %v1476
        %v1555 = vunpack.c.l.b16 %v1477
        %v1556 = vunpack.c.h.b16 %v1477
        %v1557 = vunpack.c.l.b16 %v1478
        %v1558 = vunpack.c.h.b16 %v1478
        %v1559 = vunpack.c.l.b16 %v1479
        %v1560 = vunpack.c.h.b16 %v1479
        %v1561 = vunpack.c.l.b16 %v1480
        %v1562 = vunpack.c.h.b16 %v1480
        %v1563 = vunpack.c.l.b16 %v1481
        %v1564 = vunpack.c.h.b16 %v1481
        %v1565 = vunpack.c.l.b16 %v1482
        %v1566 = vunpack.c.h.b16 %v1482
        %v1567 = vunpack.c.l.b16 %v1483
        %v1568 = vunpack.c.h.b16 %v1483
        %v1569 = vunpack.c.l.b16 %v1484
        %v1570 = vunpack.c.h.b16 %v1484
        %v1571 = vunpack.c.l.b16 %v1485
        %v1572 = vunpack.c.h.b16 %v1485
        %v1573 = vunpack.c.l.b16 %v1486
        %v1574 = vunpack.c.h.b16 %v1486
        %v1575 = vunpack.c.l.b16 %v1487
        %v1576 = vunpack.c.h.b16 %v1487
        %v1577 = vunpack.c.l.b16 %v1488
        %v1578 = vunpack.c.h.b16 %v1488
        %v1579 = vunpack.c.l.b16 %v1489
        %v1580 = vunpack.c.h.b16 %v1489
        %v1581 = vunpack.c.l.b16 %v1490
        %v1582 = vunpack.c.h.b16 %v1490
        %v1583 = vunpack.c.l.b16 %v1491
        %v1584 = vunpack.c.h.b16 %v1491
        %v1585 = vunpack.c.l.b16 %v1492
        %v1586 = vunpack.c.h.b16 %v1492
        %v1587 = vunpack.c.l.b16 %v1493
        %v1588 = vunpack.c.h.b16 %v1493
        %v1589 = vunpack.c.l.b16 %v1494
        %v1590 = vunpack.c.h.b16 %v1494
        %v1591 = vunpack.c.l.b16 %v1495
        %v1592 = vunpack.c.h.b16 %v1495
        %v1593 = vunpack.c.l.b16 %v1496
        %v1594 = vunpack.c.h.b16 %v1496
        %v1595 = vunpack.c.l.b16 %v1497
        %v1596 = vunpack.c.h.b16 %v1497
        %v1597 = vunpack.c.l.b16 %v1498
        %v1598 = vunpack.c.h.b16 %v1498
        %v1599 = vunpack.c.l.b16 %v1499
        %v1600 = vunpack.c.h.b16 %v1499
        %v1601 = vunpack.c.l.b16 %v1500
        %v1602 = vunpack.c.h.b16 %v1500
        %v1603 = vpack.c.b16 %v1541, %v1539
        %v1604 = vpack.c.b16 %v1542, %v1540
        %v1605 = vpack.c.b16 %v1545, %v1543
        %v1606 = vpack.c.b16 %v1546, %v1544
        %v1607 = vpack.c.b16 %v1549, %v1547
        %v1608 = vpack.c.b16 %v1550, %v1548
        %v1609 = vpack.c.b16 %v1553, %v1551
        %v1610 = vpack.c.b16 %v1554, %v1552
        %v1611 = vpack.c.b16 %v1557, %v1555
        %v1612 = vpack.c.b16 %v1558, %v1556
        %v1613 = vpack.c.b16 %v1561, %v1559
        %v1614 = vpack.c.b16 %v1562, %v1560
        %v1615 = vpack.c.b16 %v1565, %v1563
        %v1616 = vpack.c.b16 %v1566, %v1564
        %v1617 = vpack.c.b16 %v1569, %v1567
        %v1618 = vpack.c.b16 %v1570, %v1568
        %v1619 = vpack.c.b16 %v1573, %v1571
        %v1620 = vpack.c.b16 %v1574, %v1572
        %v1621 = vpack.c.b16 %v1577, %v1575
        %v1622 = vpack.c.b16 %v1578, %v1576
        %v1623 = vpack.c.b16 %v1581, %v1579
        %v1624 = vpack.c.b16 %v1582, %v1580
        %v1625 = vpack.c.b16 %v1585, %v1583
        %v1626 = vpack.c.b16 %v1586, %v1584
        %v1627 = vpack.c.b16 %v1589, %v1587
        %v1628 = vpack.c.b16 %v1590, %v1588
        %v1629 = vpack.c.b16 %v1593, %v1591
        %v1630 = vpack.c.b16 %v1594, %v1592
        %v1631 = vpack.c.b16 %v1597, %v1595
        %v1632 = vpack.c.b16 %v1598, %v1596
        %v1633 = vpack.c.b16 %v1601, %v1599
        %v1634 = vpack.c.b16 %v1602, %v1600
        %1667 = vmatpush.bf16.msra.mxu0 %v1617
        %1668 = vmatpush.bf16.msra.mxu0 %v1615
        %1669 = vmatpush.bf16.msra.mxu0 %v1613
        %1670 = vmatpush.bf16.msra.mxu0 %v1611
        %1671 = vmatpush.bf16.msra.mxu0 %v1609
        %1672 = vmatpush.bf16.msra.mxu0 %v1607
        %1673 = vmatpush.bf16.msra.mxu0 %v1605
        %1674 = vmatpush.bf16.msra.mxu0 %v1603
        %1675 = vmatmul.bf16.gmra.mxu0 %v1437
        %v1676 = vpop.f32.mrf.mxu0
        %v1677 = vadd.f32 %v1503, %v1676
        %v1678 = vpop.f32.mrf.mxu0
        %v1679 = vadd.f32 %v1503, %v1678
        %1680 = vmatmul.bf16.gmra.mxu0 %v1439
        %v1681 = vpop.f32.mrf.mxu0
        %v1682 = vadd.f32 %v1503, %v1681
        %v1683 = vpop.f32.mrf.mxu0
        %v1684 = vadd.f32 %v1503, %v1683
        %1685 = vmatmul.bf16.gmra.mxu0 %v1441
        %v1686 = vpop.f32.mrf.mxu0
        %v1687 = vadd.f32 %v1503, %v1686
        %v1688 = vpop.f32.mrf.mxu0
        %v1689 = vadd.f32 %v1503, %v1688
        %1690 = vmatmul.bf16.gmra.mxu0 %v1443
        %v1691 = vpop.f32.mrf.mxu0
        %v1692 = vadd.f32 %v1503, %v1691
        %v1693 = vpop.f32.mrf.mxu0
        %v1694 = vadd.f32 %v1503, %v1693
        %1695 = vmatmul.bf16.gmra.mxu0 %v1445
        %v1696 = vpop.f32.mrf.mxu0
        %v1697 = vadd.f32 %v1503, %v1696
        %v1698 = vpop.f32.mrf.mxu0
        %v1699 = vadd.f32 %v1503, %v1698
        %1700 = vmatmul.bf16.gmra.mxu0 %v1447
        %v1701 = vpop.f32.mrf.mxu0
        %v1702 = vadd.f32 %v1503, %v1701
        %v1703 = vpop.f32.mrf.mxu0
        %v1704 = vadd.f32 %v1503, %v1703
        %1705 = vmatmul.bf16.gmra.mxu0 %v1449
        %v1706 = vpop.f32.mrf.mxu0
        %v1707 = vadd.f32 %v1503, %v1706
        %v1708 = vpop.f32.mrf.mxu0
        %v1709 = vadd.f32 %v1503, %v1708
        %1710 = vmatmul.bf16.gmra.mxu0 %v1451
        %v1711 = vpop.f32.mrf.mxu0
        %v1712 = vadd.f32 %v1503, %v1711
        %v1713 = vpop.f32.mrf.mxu0
        %v1714 = vadd.f32 %v1503, %v1713
        %1715 = vmatmul.bf16.gmra.mxu0 %v1453
        %v1716 = vpop.f32.mrf.mxu0
        %v1717 = vadd.f32 %v1503, %v1716
        %v1718 = vpop.f32.mrf.mxu0
        %v1719 = vadd.f32 %v1503, %v1718
        %1720 = vmatmul.bf16.gmra.mxu0 %v1455
        %v1721 = vpop.f32.mrf.mxu0
        %v1722 = vadd.f32 %v1503, %v1721
        %v1723 = vpop.f32.mrf.mxu0
        %v1724 = vadd.f32 %v1503, %v1723
        %1725 = vmatmul.bf16.gmra.mxu0 %v1457
        %v1726 = vpop.f32.mrf.mxu0
        %v1727 = vadd.f32 %v1503, %v1726
        %v1728 = vpop.f32.mrf.mxu0
        %v1729 = vadd.f32 %v1503, %v1728
        %1730 = vmatmul.bf16.gmra.mxu0 %v1459
        %v1731 = vpop.f32.mrf.mxu0
        %v1732 = vadd.f32 %v1503, %v1731
        %v1733 = vpop.f32.mrf.mxu0
        %v1734 = vadd.f32 %v1503, %v1733
        %1735 = vmatmul.bf16.gmra.mxu0 %v1461
        %v1736 = vpop.f32.mrf.mxu0
        %v1737 = vadd.f32 %v1503, %v1736
        %v1738 = vpop.f32.mrf.mxu0
        %v1739 = vadd.f32 %v1503, %v1738
        %1740 = vmatmul.bf16.gmra.mxu0 %v1463
        %v1741 = vpop.f32.mrf.mxu0
        %v1742 = vadd.f32 %v1503, %v1741
        %v1743 = vpop.f32.mrf.mxu0
        %v1744 = vadd.f32 %v1503, %v1743
        %1745 = vmatmul.bf16.gmra.mxu0 %v1465
        %v1746 = vpop.f32.mrf.mxu0
        %v1747 = vadd.f32 %v1503, %v1746
        %v1748 = vpop.f32.mrf.mxu0
        %v1749 = vadd.f32 %v1503, %v1748
        %1750 = vmatmul.bf16.gmra.mxu0 %v1467
        %v1751 = vpop.f32.mrf.mxu0
        %v1752 = vadd.f32 %v1503, %v1751
        %v1753 = vpop.f32.mrf.mxu0
        %v1754 = vadd.f32 %v1503, %v1753
        %1755 = vdwg.mxu0
        %1756 = vmatpush.bf16.msra.mxu0 %v1633
        %1757 = vmatpush.bf16.msra.mxu0 %v1631
        %1758 = vmatpush.bf16.msra.mxu0 %v1629
        %1759 = vmatpush.bf16.msra.mxu0 %v1627
        %1760 = vmatpush.bf16.msra.mxu0 %v1625
        %1761 = vmatpush.bf16.msra.mxu0 %v1623
        %1762 = vmatpush.bf16.msra.mxu0 %v1621
        %1763 = vmatpush.bf16.msra.mxu0 %v1619
        %1764 = vmatmul.bf16.gmra.mxu0 %v1438
        %v1765 = vpop.f32.mrf.mxu0
        %v1766 = vadd.f32 %v1677, %v1765
        %v1767 = vpop.f32.mrf.mxu0
        %v1768 = vadd.f32 %v1679, %v1767
        %1769 = vmatmul.bf16.gmra.mxu0 %v1440
        %v1770 = vpop.f32.mrf.mxu0
        %v1771 = vadd.f32 %v1682, %v1770
        %v1772 = vpop.f32.mrf.mxu0
        %v1773 = vadd.f32 %v1684, %v1772
        %1774 = vmatmul.bf16.gmra.mxu0 %v1442
        %v1775 = vpop.f32.mrf.mxu0
        %v1776 = vadd.f32 %v1687, %v1775
        %v1777 = vpop.f32.mrf.mxu0
        %v1778 = vadd.f32 %v1689, %v1777
        %1779 = vmatmul.bf16.gmra.mxu0 %v1444
        %v1780 = vpop.f32.mrf.mxu0
        %v1781 = vadd.f32 %v1692, %v1780
        %v1782 = vpop.f32.mrf.mxu0
        %v1783 = vadd.f32 %v1694, %v1782
        %1784 = vmatmul.bf16.gmra.mxu0 %v1446
        %v1785 = vpop.f32.mrf.mxu0
        %v1786 = vadd.f32 %v1697, %v1785
        %v1787 = vpop.f32.mrf.mxu0
        %v1788 = vadd.f32 %v1699, %v1787
        %1789 = vmatmul.bf16.gmra.mxu0 %v1448
        %v1790 = vpop.f32.mrf.mxu0
        %v1791 = vadd.f32 %v1702, %v1790
        %v1792 = vpop.f32.mrf.mxu0
        %v1793 = vadd.f32 %v1704, %v1792
        %1794 = vmatmul.bf16.gmra.mxu0 %v1450
        %v1795 = vpop.f32.mrf.mxu0
        %v1796 = vadd.f32 %v1707, %v1795
        %v1797 = vpop.f32.mrf.mxu0
        %v1798 = vadd.f32 %v1709, %v1797
        %1799 = vmatmul.bf16.gmra.mxu0 %v1452
        %v1800 = vpop.f32.mrf.mxu0
        %v1801 = vadd.f32 %v1712, %v1800
        %v1802 = vpop.f32.mrf.mxu0
        %v1803 = vadd.f32 %v1714, %v1802
        %1804 = vmatmul.bf16.gmra.mxu0 %v1454
        %v1805 = vpop.f32.mrf.mxu0
        %v1806 = vadd.f32 %v1717, %v1805
        %v1807 = vpop.f32.mrf.mxu0
        %v1808 = vadd.f32 %v1719, %v1807
        %1809 = vmatmul.bf16.gmra.mxu0 %v1456
        %v1810 = vpop.f32.mrf.mxu0
        %v1811 = vadd.f32 %v1722, %v1810
        %v1812 = vpop.f32.mrf.mxu0
        %v1813 = vadd.f32 %v1724, %v1812
        %1814 = vmatmul.bf16.gmra.mxu0 %v1458
        %v1815 = vpop.f32.mrf.mxu0
        %v1816 = vadd.f32 %v1727, %v1815
        %v1817 = vpop.f32.mrf.mxu0
        %v1818 = vadd.f32 %v1729, %v1817
        %1819 = vmatmul.bf16.gmra.mxu0 %v1460
        %v1820 = vpop.f32.mrf.mxu0
        %v1821 = vadd.f32 %v1732, %v1820
        %v1822 = vpop.f32.mrf.mxu0
        %v1823 = vadd.f32 %v1734, %v1822
        %1824 = vmatmul.bf16.gmra.mxu0 %v1462
        %v1825 = vpop.f32.mrf.mxu0
        %v1826 = vadd.f32 %v1737, %v1825
        %v1827 = vpop.f32.mrf.mxu0
        %v1828 = vadd.f32 %v1739, %v1827
        %1829 = vmatmul.bf16.gmra.mxu0 %v1464
        %v1830 = vpop.f32.mrf.mxu0
        %v1831 = vadd.f32 %v1742, %v1830
        %v1832 = vpop.f32.mrf.mxu0
        %v1833 = vadd.f32 %v1744, %v1832
        %1834 = vmatmul.bf16.gmra.mxu0 %v1466
        %v1835 = vpop.f32.mrf.mxu0
        %v1836 = vadd.f32 %v1747, %v1835
        %v1837 = vpop.f32.mrf.mxu0
        %v1838 = vadd.f32 %v1749, %v1837
        %1839 = vmatmul.bf16.gmra.mxu0 %v1468
        %v1840 = vpop.f32.mrf.mxu0
        %v1841 = vadd.f32 %v1752, %v1840
        %v1842 = vpop.f32.mrf.mxu0
        %v1843 = vadd.f32 %v1754, %v1842
        %1844 = vdwg.mxu0
        %1845 = vmatpush.bf16.msra.mxu0 %v1618
        %1846 = vmatpush.bf16.msra.mxu0 %v1616
        %1847 = vmatpush.bf16.msra.mxu0 %v1614
        %1848 = vmatpush.bf16.msra.mxu0 %v1612
        %1849 = vmatpush.bf16.msra.mxu0 %v1610
        %1850 = vmatpush.bf16.msra.mxu0 %v1608
        %1851 = vmatpush.bf16.msra.mxu0 %v1606
        %1852 = vmatpush.bf16.msra.mxu0 %v1604
        %1853 = vmatmul.bf16.gmra.mxu0 %v1437
        %v1854 = vpop.f32.mrf.mxu0
        %v1855 = vadd.f32 %v1504, %v1854
        %v1856 = vpop.f32.mrf.mxu0
        %v1857 = vadd.f32 %v1504, %v1856
        %1858 = vmatmul.bf16.gmra.mxu0 %v1439
        %v1859 = vpop.f32.mrf.mxu0
        %v1860 = vadd.f32 %v1504, %v1859
        %v1861 = vpop.f32.mrf.mxu0
        %v1862 = vadd.f32 %v1504, %v1861
        %1863 = vmatmul.bf16.gmra.mxu0 %v1441
        %v1864 = vpop.f32.mrf.mxu0
        %v1865 = vadd.f32 %v1504, %v1864
        %v1866 = vpop.f32.mrf.mxu0
        %v1867 = vadd.f32 %v1504, %v1866
        %1868 = vmatmul.bf16.gmra.mxu0 %v1443
        %v1869 = vpop.f32.mrf.mxu0
        %v1870 = vadd.f32 %v1504, %v1869
        %v1871 = vpop.f32.mrf.mxu0
        %v1872 = vadd.f32 %v1504, %v1871
        %1873 = vmatmul.bf16.gmra.mxu0 %v1445
        %v1874 = vpop.f32.mrf.mxu0
        %v1875 = vadd.f32 %v1504, %v1874
        %v1876 = vpop.f32.mrf.mxu0
        %v1877 = vadd.f32 %v1504, %v1876
        %1878 = vmatmul.bf16.gmra.mxu0 %v1447
        %v1879 = vpop.f32.mrf.mxu0
        %v1880 = vadd.f32 %v1504, %v1879
        %v1881 = vpop.f32.mrf.mxu0
        %v1882 = vadd.f32 %v1504, %v1881
        %1883 = vmatmul.bf16.gmra.mxu0 %v1449
        %v1884 = vpop.f32.mrf.mxu0
        %v1885 = vadd.f32 %v1504, %v1884
        %v1886 = vpop.f32.mrf.mxu0
        %v1887 = vadd.f32 %v1504, %v1886
        %1888 = vmatmul.bf16.gmra.mxu0 %v1451
        %v1889 = vpop.f32.mrf.mxu0
        %v1890 = vadd.f32 %v1504, %v1889
        %v1891 = vpop.f32.mrf.mxu0
        %v1892 = vadd.f32 %v1504, %v1891
        %1893 = vmatmul.bf16.gmra.mxu0 %v1453
        %v1894 = vpop.f32.mrf.mxu0
        %v1895 = vadd.f32 %v1504, %v1894
        %v1896 = vpop.f32.mrf.mxu0
        %v1897 = vadd.f32 %v1504, %v1896
        %1898 = vmatmul.bf16.gmra.mxu0 %v1455
        %v1899 = vpop.f32.mrf.mxu0
        %v1900 = vadd.f32 %v1504, %v1899
        %v1901 = vpop.f32.mrf.mxu0
        %v1902 = vadd.f32 %v1504, %v1901
        %1903 = vmatmul.bf16.gmra.mxu0 %v1457
        %v1904 = vpop.f32.mrf.mxu0
        %v1905 = vadd.f32 %v1504, %v1904
        %v1906 = vpop.f32.mrf.mxu0
        %v1907 = vadd.f32 %v1504, %v1906
        %1908 = vmatmul.bf16.gmra.mxu0 %v1459
        %v1909 = vpop.f32.mrf.mxu0
        %v1910 = vadd.f32 %v1504, %v1909
        %v1911 = vpop.f32.mrf.mxu0
        %v1912 = vadd.f32 %v1504, %v1911
        %1913 = vmatmul.bf16.gmra.mxu0 %v1461
        %v1914 = vpop.f32.mrf.mxu0
        %v1915 = vadd.f32 %v1504, %v1914
        %v1916 = vpop.f32.mrf.mxu0
        %v1917 = vadd.f32 %v1504, %v1916
        %1918 = vmatmul.bf16.gmra.mxu0 %v1463
        %v1919 = vpop.f32.mrf.mxu0
        %v1920 = vadd.f32 %v1504, %v1919
        %v1921 = vpop.f32.mrf.mxu0
        %v1922 = vadd.f32 %v1504, %v1921
        %1923 = vmatmul.bf16.gmra.mxu0 %v1465
        %v1924 = vpop.f32.mrf.mxu0
        %v1925 = vadd.f32 %v1504, %v1924
        %v1926 = vpop.f32.mrf.mxu0
        %v1927 = vadd.f32 %v1504, %v1926
        %1928 = vmatmul.bf16.gmra.mxu0 %v1467
        %v1929 = vpop.f32.mrf.mxu0
        %v1930 = vadd.f32 %v1504, %v1929
        %v1931 = vpop.f32.mrf.mxu0
        %v1932 = vadd.f32 %v1504, %v1931
        %1933 = vdwg.mxu0
        %1934 = vmatpush.bf16.msra.mxu0 %v1634
        %1935 = vmatpush.bf16.msra.mxu0 %v1632
        %1936 = vmatpush.bf16.msra.mxu0 %v1630
        %1937 = vmatpush.bf16.msra.mxu0 %v1628
        %1938 = vmatpush.bf16.msra.mxu0 %v1626
        %1939 = vmatpush.bf16.msra.mxu0 %v1624
        %1940 = vmatpush.bf16.msra.mxu0 %v1622
        %1941 = vmatpush.bf16.msra.mxu0 %v1620
        %1942 = vmatmul.bf16.gmra.mxu0 %v1438
        %v1943 = vpop.f32.mrf.mxu0
        %v1944 = vadd.f32 %v1855, %v1943
        %v1945 = vpop.f32.mrf.mxu0
        %v1946 = vadd.f32 %v1857, %v1945
        %1947 = vmatmul.bf16.gmra.mxu0 %v1440
        %v1948 = vpop.f32.mrf.mxu0
        %v1949 = vadd.f32 %v1860, %v1948
        %v1950 = vpop.f32.mrf.mxu0
        %v1951 = vadd.f32 %v1862, %v1950
        %1952 = vmatmul.bf16.gmra.mxu0 %v1442
        %v1953 = vpop.f32.mrf.mxu0
        %v1954 = vadd.f32 %v1865, %v1953
        %v1955 = vpop.f32.mrf.mxu0
        %v1956 = vadd.f32 %v1867, %v1955
        %1957 = vmatmul.bf16.gmra.mxu0 %v1444
        %v1958 = vpop.f32.mrf.mxu0
        %v1959 = vadd.f32 %v1870, %v1958
        %v1960 = vpop.f32.mrf.mxu0
        %v1961 = vadd.f32 %v1872, %v1960
        %1962 = vmatmul.bf16.gmra.mxu0 %v1446
        %v1963 = vpop.f32.mrf.mxu0
        %v1964 = vadd.f32 %v1875, %v1963
        %v1965 = vpop.f32.mrf.mxu0
        %v1966 = vadd.f32 %v1877, %v1965
        %1967 = vmatmul.bf16.gmra.mxu0 %v1448
        %v1968 = vpop.f32.mrf.mxu0
        %v1969 = vadd.f32 %v1880, %v1968
        %v1970 = vpop.f32.mrf.mxu0
        %v1971 = vadd.f32 %v1882, %v1970
        %1972 = vmatmul.bf16.gmra.mxu0 %v1450
        %v1973 = vpop.f32.mrf.mxu0
        %v1974 = vadd.f32 %v1885, %v1973
        %v1975 = vpop.f32.mrf.mxu0
        %v1976 = vadd.f32 %v1887, %v1975
        %1977 = vmatmul.bf16.gmra.mxu0 %v1452
        %v1978 = vpop.f32.mrf.mxu0
        %v1979 = vadd.f32 %v1890, %v1978
        %v1980 = vpop.f32.mrf.mxu0
        %v1981 = vadd.f32 %v1892, %v1980
        %1982 = vmatmul.bf16.gmra.mxu0 %v1454
        %v1983 = vpop.f32.mrf.mxu0
        %v1984 = vadd.f32 %v1895, %v1983
        %v1985 = vpop.f32.mrf.mxu0
        %v1986 = vadd.f32 %v1897, %v1985
        %1987 = vmatmul.bf16.gmra.mxu0 %v1456
        %v1988 = vpop.f32.mrf.mxu0
        %v1989 = vadd.f32 %v1900, %v1988
        %v1990 = vpop.f32.mrf.mxu0
        %v1991 = vadd.f32 %v1902, %v1990
        %1992 = vmatmul.bf16.gmra.mxu0 %v1458
        %v1993 = vpop.f32.mrf.mxu0
        %v1994 = vadd.f32 %v1905, %v1993
        %v1995 = vpop.f32.mrf.mxu0
        %v1996 = vadd.f32 %v1907, %v1995
        %1997 = vmatmul.bf16.gmra.mxu0 %v1460
        %v1998 = vpop.f32.mrf.mxu0
        %v1999 = vadd.f32 %v1910, %v1998
        %v2000 = vpop.f32.mrf.mxu0
        %v2001 = vadd.f32 %v1912, %v2000
        %2002 = vmatmul.bf16.gmra.mxu0 %v1462
        %v2003 = vpop.f32.mrf.mxu0
        %v2004 = vadd.f32 %v1915, %v2003
        %v2005 = vpop.f32.mrf.mxu0
        %v2006 = vadd.f32 %v1917, %v2005
        %2007 = vmatmul.bf16.gmra.mxu0 %v1464
        %v2008 = vpop.f32.mrf.mxu0
        %v2009 = vadd.f32 %v1920, %v2008
        %v2010 = vpop.f32.mrf.mxu0
        %v2011 = vadd.f32 %v1922, %v2010
        %2012 = vmatmul.bf16.gmra.mxu0 %v1466
        %v2013 = vpop.f32.mrf.mxu0
        %v2014 = vadd.f32 %v1925, %v2013
        %v2015 = vpop.f32.mrf.mxu0
        %v2016 = vadd.f32 %v1927, %v2015
        %2017 = vmatmul.bf16.gmra.mxu0 %v1468
        %v2018 = vpop.f32.mrf.mxu0
        %v2019 = vadd.f32 %v1930, %v2018
        %v2020 = vpop.f32.mrf.mxu0
        %v2021 = vadd.f32 %v1932, %v2020
        %2022 = vdwg.mxu0
        %v2023 = vmax.f32 %v1766, 0.0
        %v2024 = vmax.f32 %v1944, 0.0
        %v2025 = vmax.f32 %v1768, 0.0
        %v2026 = vmax.f32 %v1946, 0.0
        %v2027 = vmax.f32 %v1771, 0.0
        %v2028 = vmax.f32 %v1949, 0.0
        %v2029 = vmax.f32 %v1773, 0.0
        %v2030 = vmax.f32 %v1951, 0.0
        %v2031 = vmax.f32 %v1776, 0.0
        %v2032 = vmax.f32 %v1954, 0.0
        %v2033 = vmax.f32 %v1778, 0.0
        %v2034 = vmax.f32 %v1956, 0.0
        %v2035 = vmax.f32 %v1781, 0.0
        %v2036 = vmax.f32 %v1959, 0.0
        %v2037 = vmax.f32 %v1783, 0.0
        %v2038 = vmax.f32 %v1961, 0.0
        %v2039 = vmax.f32 %v1786, 0.0
        %v2040 = vmax.f32 %v1964, 0.0
        %v2041 = vmax.f32 %v1788, 0.0
        %v2042 = vmax.f32 %v1966, 0.0
        %v2043 = vmax.f32 %v1791, 0.0
        %v2044 = vmax.f32 %v1969, 0.0
        %v2045 = vmax.f32 %v1793, 0.0
        %v2046 = vmax.f32 %v1971, 0.0
        %v2047 = vmax.f32 %v1796, 0.0
        %v2048 = vmax.f32 %v1974, 0.0
        %v2049 = vmax.f32 %v1798, 0.0
        %v2050 = vmax.f32 %v1976, 0.0
        %v2051 = vmax.f32 %v1801, 0.0
        %v2052 = vmax.f32 %v1979, 0.0
        %v2053 = vmax.f32 %v1803, 0.0
        %v2054 = vmax.f32 %v1981, 0.0
        %v2055 = vmax.f32 %v1806, 0.0
        %v2056 = vmax.f32 %v1984, 0.0
        %v2057 = vmax.f32 %v1808, 0.0
        %v2058 = vmax.f32 %v1986, 0.0
        %v2059 = vmax.f32 %v1811, 0.0
        %v2060 = vmax.f32 %v1989, 0.0
        %v2061 = vmax.f32 %v1813, 0.0
        %v2062 = vmax.f32 %v1991, 0.0
        %v2063 = vmax.f32 %v1816, 0.0
        %v2064 = vmax.f32 %v1994, 0.0
        %v2065 = vmax.f32 %v1818, 0.0
        %v2066 = vmax.f32 %v1996, 0.0
        %v2067 = vmax.f32 %v1821, 0.0
        %v2068 = vmax.f32 %v1999, 0.0
        %v2069 = vmax.f32 %v1823, 0.0
        %v2070 = vmax.f32 %v2001, 0.0
        %v2071 = vmax.f32 %v1826, 0.0
        %v2072 = vmax.f32 %v2004, 0.0
        %v2073 = vmax.f32 %v1828, 0.0
        %v2074 = vmax.f32 %v2006, 0.0
        %v2075 = vmax.f32 %v1831, 0.0
        %v2076 = vmax.f32 %v2009, 0.0
        %v2077 = vmax.f32 %v1833, 0.0
        %v2078 = vmax.f32 %v2011, 0.0
        %v2079 = vmax.f32 %v1836, 0.0
        %v2080 = vmax.f32 %v2014, 0.0
        %v2081 = vmax.f32 %v1838, 0.0
        %v2082 = vmax.f32 %v2016, 0.0
        %v2083 = vmax.f32 %v1841, 0.0
        %v2084 = vmax.f32 %v2019, 0.0
        %v2085 = vmax.f32 %v1843, 0.0
        %v2086 = vmax.f32 %v2021, 0.0
        %v2087 = vpack.c.bf16 %v2025, %v2023
        %v2088 = vpack.c.bf16 %v2026, %v2024
        %v2089 = vpack.c.bf16 %v2029, %v2027
        %v2090 = vpack.c.bf16 %v2030, %v2028
        %v2091 = vpack.c.bf16 %v2033, %v2031
        %v2092 = vpack.c.bf16 %v2034, %v2032
        %v2093 = vpack.c.bf16 %v2037, %v2035
        %v2094 = vpack.c.bf16 %v2038, %v2036
        %v2095 = vpack.c.bf16 %v2041, %v2039
        %v2096 = vpack.c.bf16 %v2042, %v2040
        %v2097 = vpack.c.bf16 %v2045, %v2043
        %v2098 = vpack.c.bf16 %v2046, %v2044
        %v2099 = vpack.c.bf16 %v2049, %v2047
        %v2100 = vpack.c.bf16 %v2050, %v2048
        %v2101 = vpack.c.bf16 %v2053, %v2051
        %v2102 = vpack.c.bf16 %v2054, %v2052
        %v2103 = vpack.c.bf16 %v2057, %v2055
        %v2104 = vpack.c.bf16 %v2058, %v2056
        %v2105 = vpack.c.bf16 %v2061, %v2059
        %v2106 = vpack.c.bf16 %v2062, %v2060
        %v2107 = vpack.c.bf16 %v2065, %v2063
        %v2108 = vpack.c.bf16 %v2066, %v2064
        %v2109 = vpack.c.bf16 %v2069, %v2067
        %v2110 = vpack.c.bf16 %v2070, %v2068
        %v2111 = vpack.c.bf16 %v2073, %v2071
        %v2112 = vpack.c.bf16 %v2074, %v2072
        %v2113 = vpack.c.bf16 %v2077, %v2075
        %v2114 = vpack.c.bf16 %v2078, %v2076
        %v2115 = vpack.c.bf16 %v2081, %v2079
        %v2116 = vpack.c.bf16 %v2082, %v2080
        %v2117 = vpack.c.bf16 %v2085, %v2083
        %v2118 = vpack.c.bf16 %v2086, %v2084
        %v2119 = vld [vmem:[%s7] sm:$0xf]
        %v2120 = vld [vmem:[%s7 + $0x4] sm:$0xf]
        %v2121 = vld [vmem:[%s7 + $0x8] sm:$0xf]
        %v2122 = vld [vmem:[%s7 + $0xc] sm:$0xf]
        %v2123 = vld [vmem:[%s7 + $0x10] sm:$0xf]
        %v2124 = vld [vmem:[%s7 + $0x14] sm:$0xf]
        %v2125 = vld [vmem:[%s7 + $0x18] sm:$0xf]
        %v2126 = vld [vmem:[%s7 + $0x1c] sm:$0xf]
        %v2127 = vld [vmem:[%s7 + $0x20] sm:$0xf]
        %v2128 = vld [vmem:[%s7 + $0x24] sm:$0xf]
        %v2129 = vld [vmem:[%s7 + $0x28] sm:$0xf]
        %v2130 = vld [vmem:[%s7 + $0x2c] sm:$0xf]
        %v2131 = vld [vmem:[%s7 + $0x30] sm:$0xf]
        %v2132 = vld [vmem:[%s7 + $0x34] sm:$0xf]
        %v2133 = vld [vmem:[%s7 + $0x38] sm:$0xf]
        %v2134 = vld [vmem:[%s7 + $0x3c] sm:$0xf]
        %v2135 = vld [vmem:[%s7 + $0x40] sm:$0xf]
        %v2136 = vld [vmem:[%s7 + $0x44] sm:$0xf]
        %v2137 = vld [vmem:[%s7 + $0x48] sm:$0xf]
        %v2138 = vld [vmem:[%s7 + $0x4c] sm:$0xf]
        %v2139 = vld [vmem:[%s7 + $0x50] sm:$0xf]
        %v2140 = vld [vmem:[%s7 + $0x54] sm:$0xf]
        %v2141 = vld [vmem:[%s7 + $0x58] sm:$0xf]
        %v2142 = vld [vmem:[%s7 + $0x5c] sm:$0xf]
        %v2143 = vld [vmem:[%s7 + $0x60] sm:$0xf]
        %v2144 = vld [vmem:[%s7 + $0x64] sm:$0xf]
        %v2145 = vld [vmem:[%s7 + $0x68] sm:$0xf]
        %v2146 = vld [vmem:[%s7 + $0x6c] sm:$0xf]
        %v2147 = vld [vmem:[%s7 + $0x70] sm:$0xf]
        %v2148 = vld [vmem:[%s7 + $0x74] sm:$0xf]
        %v2149 = vld [vmem:[%s7 + $0x78] sm:$0xf]
        %v2150 = vld [vmem:[%s7 + $0x7c] sm:$0xf]
        %v2151 = vld [vmem:[%s8] sm:$0x1]
        %v2153 = vperm.slane %v2151, 0
        %v2187 = vunpack.c.l.b16 %v2119
        %v2188 = vunpack.c.l.b16 %v2120
        %v2189 = vunpack.c.l.b16 %v2121
        %v2190 = vunpack.c.l.b16 %v2122
        %v2191 = vunpack.c.l.b16 %v2123
        %v2192 = vunpack.c.l.b16 %v2124
        %v2193 = vunpack.c.l.b16 %v2125
        %v2194 = vunpack.c.l.b16 %v2126
        %v2195 = vunpack.c.l.b16 %v2127
        %v2196 = vunpack.c.l.b16 %v2128
        %v2197 = vunpack.c.l.b16 %v2129
        %v2198 = vunpack.c.l.b16 %v2130
        %v2199 = vunpack.c.l.b16 %v2131
        %v2200 = vunpack.c.l.b16 %v2132
        %v2201 = vunpack.c.l.b16 %v2133
        %v2202 = vunpack.c.l.b16 %v2134
        %v2203 = vunpack.c.l.b16 %v2135
        %v2204 = vunpack.c.l.b16 %v2136
        %v2205 = vunpack.c.l.b16 %v2137
        %v2206 = vunpack.c.l.b16 %v2138
        %v2207 = vunpack.c.l.b16 %v2139
        %v2208 = vunpack.c.l.b16 %v2140
        %v2209 = vunpack.c.l.b16 %v2141
        %v2210 = vunpack.c.l.b16 %v2142
        %v2211 = vunpack.c.l.b16 %v2143
        %v2212 = vunpack.c.l.b16 %v2144
        %v2213 = vunpack.c.l.b16 %v2145
        %v2214 = vunpack.c.l.b16 %v2146
        %v2215 = vunpack.c.l.b16 %v2147
        %v2216 = vunpack.c.l.b16 %v2148
        %v2217 = vunpack.c.l.b16 %v2149
        %v2218 = vunpack.c.l.b16 %v2150
        %v2219 = vpack.c.b16 %v2188, %v2187
        %v2220 = vpack.c.b16 %v2190, %v2189
        %v2221 = vpack.c.b16 %v2192, %v2191
        %v2222 = vpack.c.b16 %v2194, %v2193
        %v2223 = vpack.c.b16 %v2196, %v2195
        %v2224 = vpack.c.b16 %v2198, %v2197
        %v2225 = vpack.c.b16 %v2200, %v2199
        %v2226 = vpack.c.b16 %v2202, %v2201
        %v2227 = vpack.c.b16 %v2204, %v2203
        %v2228 = vpack.c.b16 %v2206, %v2205
        %v2229 = vpack.c.b16 %v2208, %v2207
        %v2230 = vpack.c.b16 %v2210, %v2209
        %v2231 = vpack.c.b16 %v2212, %v2211
        %v2232 = vpack.c.b16 %v2214, %v2213
        %v2233 = vpack.c.b16 %v2216, %v2215
        %v2234 = vpack.c.b16 %v2218, %v2217
        %2251 = vmatpush.bf16.msra.mxu0 %v2226
        %2252 = vmatpush.bf16.msra.mxu0 %v2225
        %2253 = vmatpush.bf16.msra.mxu0 %v2224
        %2254 = vmatpush.bf16.msra.mxu0 %v2223
        %2255 = vmatpush.bf16.msra.mxu0 %v2222
        %2256 = vmatpush.bf16.msra.mxu0 %v2221
        %2257 = vmatpush.bf16.msra.mxu0 %v2220
        %2258 = vmatpush.bf16.msra.mxu0 %v2219
        %2259 = vmatmul.bf16.gmra.mxu0 %v2087
        %v2260 = vpop.f32.mrf.mxu0
        %v2261 = vadd.f32 %v2153, %v2260
        %v2262 = vpop.f32.mrf.mxu0
        %v2263 = vadd.f32 %v2153, %v2262
        %2264 = vmatmul.bf16.gmra.mxu0 %v2089
        %v2265 = vpop.f32.mrf.mxu0
        %v2266 = vadd.f32 %v2153, %v2265
        %v2267 = vpop.f32.mrf.mxu0
        %v2268 = vadd.f32 %v2153, %v2267
        %2269 = vmatmul.bf16.gmra.mxu0 %v2091
        %v2270 = vpop.f32.mrf.mxu0
        %v2271 = vadd.f32 %v2153, %v2270
        %v2272 = vpop.f32.mrf.mxu0
        %v2273 = vadd.f32 %v2153, %v2272
        %2274 = vmatmul.bf16.gmra.mxu0 %v2093
        %v2275 = vpop.f32.mrf.mxu0
        %v2276 = vadd.f32 %v2153, %v2275
        %v2277 = vpop.f32.mrf.mxu0
        %v2278 = vadd.f32 %v2153, %v2277
        %2279 = vmatmul.bf16.gmra.mxu0 %v2095
        %v2280 = vpop.f32.mrf.mxu0
        %v2281 = vadd.f32 %v2153, %v2280
        %v2282 = vpop.f32.mrf.mxu0
        %v2283 = vadd.f32 %v2153, %v2282
        %2284 = vmatmul.bf16.gmra.mxu0 %v2097
        %v2285 = vpop.f32.mrf.mxu0
        %v2286 = vadd.f32 %v2153, %v2285
        %v2287 = vpop.f32.mrf.mxu0
        %v2288 = vadd.f32 %v2153, %v2287
        %2289 = vmatmul.bf16.gmra.mxu0 %v2099
        %v2290 = vpop.f32.mrf.mxu0
        %v2291 = vadd.f32 %v2153, %v2290
        %v2292 = vpop.f32.mrf.mxu0
        %v2293 = vadd.f32 %v2153, %v2292
        %2294 = vmatmul.bf16.gmra.mxu0 %v2101
        %v2295 = vpop.f32.mrf.mxu0
        %v2296 = vadd.f32 %v2153, %v2295
        %v2297 = vpop.f32.mrf.mxu0
        %v2298 = vadd.f32 %v2153, %v2297
        %2299 = vmatmul.bf16.gmra.mxu0 %v2103
        %v2300 = vpop.f32.mrf.mxu0
        %v2301 = vadd.f32 %v2153, %v2300
        %v2302 = vpop.f32.mrf.mxu0
        %v2303 = vadd.f32 %v2153, %v2302
        %2304 = vmatmul.bf16.gmra.mxu0 %v2105
        %v2305 = vpop.f32.mrf.mxu0
        %v2306 = vadd.f32 %v2153, %v2305
        %v2307 = vpop.f32.mrf.mxu0
        %v2308 = vadd.f32 %v2153, %v2307
        %2309 = vmatmul.bf16.gmra.mxu0 %v2107
        %v2310 = vpop.f32.mrf.mxu0
        %v2311 = vadd.f32 %v2153, %v2310
        %v2312 = vpop.f32.mrf.mxu0
        %v2313 = vadd.f32 %v2153, %v2312
        %2314 = vmatmul.bf16.gmra.mxu0 %v2109
        %v2315 = vpop.f32.mrf.mxu0
        %v2316 = vadd.f32 %v2153, %v2315
        %v2317 = vpop.f32.mrf.mxu0
        %v2318 = vadd.f32 %v2153, %v2317
        %2319 = vmatmul.bf16.gmra.mxu0 %v2111
        %v2320 = vpop.f32.mrf.mxu0
        %v2321 = vadd.f32 %v2153, %v2320
        %v2322 = vpop.f32.mrf.mxu0
        %v2323 = vadd.f32 %v2153, %v2322
        %2324 = vmatmul.bf16.gmra.mxu0 %v2113
        %v2325 = vpop.f32.mrf.mxu0
        %v2326 = vadd.f32 %v2153, %v2325
        %v2327 = vpop.f32.mrf.mxu0
        %v2328 = vadd.f32 %v2153, %v2327
        %2329 = vmatmul.bf16.gmra.mxu0 %v2115
        %v2330 = vpop.f32.mrf.mxu0
        %v2331 = vadd.f32 %v2153, %v2330
        %v2332 = vpop.f32.mrf.mxu0
        %v2333 = vadd.f32 %v2153, %v2332
        %2334 = vmatmul.bf16.gmra.mxu0 %v2117
        %v2335 = vpop.f32.mrf.mxu0
        %v2336 = vadd.f32 %v2153, %v2335
        %v2337 = vpop.f32.mrf.mxu0
        %v2338 = vadd.f32 %v2153, %v2337
        %2339 = vdwg.mxu0
        %2340 = vmatpush.bf16.msra.mxu0 %v2234
        %2341 = vmatpush.bf16.msra.mxu0 %v2233
        %2342 = vmatpush.bf16.msra.mxu0 %v2232
        %2343 = vmatpush.bf16.msra.mxu0 %v2231
        %2344 = vmatpush.bf16.msra.mxu0 %v2230
        %2345 = vmatpush.bf16.msra.mxu0 %v2229
        %2346 = vmatpush.bf16.msra.mxu0 %v2228
        %2347 = vmatpush.bf16.msra.mxu0 %v2227
        %2348 = vmatmul.bf16.gmra.mxu0 %v2088
        %v2349 = vpop.f32.mrf.mxu0
        %v2350 = vadd.f32 %v2261, %v2349
        %v2351 = vpop.f32.mrf.mxu0
        %v2352 = vadd.f32 %v2263, %v2351
        %2353 = vmatmul.bf16.gmra.mxu0 %v2090
        %v2354 = vpop.f32.mrf.mxu0
        %v2355 = vadd.f32 %v2266, %v2354
        %v2356 = vpop.f32.mrf.mxu0
        %v2357 = vadd.f32 %v2268, %v2356
        %2358 = vmatmul.bf16.gmra.mxu0 %v2092
        %v2359 = vpop.f32.mrf.mxu0
        %v2360 = vadd.f32 %v2271, %v2359
        %v2361 = vpop.f32.mrf.mxu0
        %v2362 = vadd.f32 %v2273, %v2361
        %2363 = vmatmul.bf16.gmra.mxu0 %v2094
        %v2364 = vpop.f32.mrf.mxu0
        %v2365 = vadd.f32 %v2276, %v2364
        %v2366 = vpop.f32.mrf.mxu0
        %v2367 = vadd.f32 %v2278, %v2366
        %2368 = vmatmul.bf16.gmra.mxu0 %v2096
        %v2369 = vpop.f32.mrf.mxu0
        %v2370 = vadd.f32 %v2281, %v2369
        %v2371 = vpop.f32.mrf.mxu0
        %v2372 = vadd.f32 %v2283, %v2371
        %2373 = vmatmul.bf16.gmra.mxu0 %v2098
        %v2374 = vpop.f32.mrf.mxu0
        %v2375 = vadd.f32 %v2286, %v2374
        %v2376 = vpop.f32.mrf.mxu0
        %v2377 = vadd.f32 %v2288, %v2376
        %2378 = vmatmul.bf16.gmra.mxu0 %v2100
        %v2379 = vpop.f32.mrf.mxu0
        %v2380 = vadd.f32 %v2291, %v2379
        %v2381 = vpop.f32.mrf.mxu0
        %v2382 = vadd.f32 %v2293, %v2381
        %2383 = vmatmul.bf16.gmra.mxu0 %v2102
        %v2384 = vpop.f32.mrf.mxu0
        %v2385 = vadd.f32 %v2296, %v2384
        %v2386 = vpop.f32.mrf.mxu0
        %v2387 = vadd.f32 %v2298, %v2386
        %2388 = vmatmul.bf16.gmra.mxu0 %v2104
        %v2389 = vpop.f32.mrf.mxu0
        %v2390 = vadd.f32 %v2301, %v2389
        %v2391 = vpop.f32.mrf.mxu0
        %v2392 = vadd.f32 %v2303, %v2391
        %2393 = vmatmul.bf16.gmra.mxu0 %v2106
        %v2394 = vpop.f32.mrf.mxu0
        %v2395 = vadd.f32 %v2306, %v2394
        %v2396 = vpop.f32.mrf.mxu0
        %v2397 = vadd.f32 %v2308, %v2396
        %2398 = vmatmul.bf16.gmra.mxu0 %v2108
        %v2399 = vpop.f32.mrf.mxu0
        %v2400 = vadd.f32 %v2311, %v2399
        %v2401 = vpop.f32.mrf.mxu0
        %v2402 = vadd.f32 %v2313, %v2401
        %2403 = vmatmul.bf16.gmra.mxu0 %v2110
        %v2404 = vpop.f32.mrf.mxu0
        %v2405 = vadd.f32 %v2316, %v2404
        %v2406 = vpop.f32.mrf.mxu0
        %v2407 = vadd.f32 %v2318, %v2406
        %2408 = vmatmul.bf16.gmra.mxu0 %v2112
        %v2409 = vpop.f32.mrf.mxu0
        %v2410 = vadd.f32 %v2321, %v2409
        %v2411 = vpop.f32.mrf.mxu0
        %v2412 = vadd.f32 %v2323, %v2411
        %2413 = vmatmul.bf16.gmra.mxu0 %v2114
        %v2414 = vpop.f32.mrf.mxu0
        %v2415 = vadd.f32 %v2326, %v2414
        %v2416 = vpop.f32.mrf.mxu0
        %v2417 = vadd.f32 %v2328, %v2416
        %2418 = vmatmul.bf16.gmra.mxu0 %v2116
        %v2419 = vpop.f32.mrf.mxu0
        %v2420 = vadd.f32 %v2331, %v2419
        %v2421 = vpop.f32.mrf.mxu0
        %v2422 = vadd.f32 %v2333, %v2421
        %2423 = vmatmul.bf16.gmra.mxu0 %v2118
        %v2424 = vpop.f32.mrf.mxu0
        %v2425 = vadd.f32 %v2336, %v2424
        %v2426 = vpop.f32.mrf.mxu0
        %v2427 = vadd.f32 %v2338, %v2426
        %2428 = vdwg.mxu0
        %vm2429 = vcmask 31744
        %2430 = vst.msk [vmem:[%s351] sm:$0xff] %vm2429, %v2350
        %2431 = vst.msk [vmem:[%s351 + $0x8] sm:$0xff] %vm2429, %v2352
        %2432 = vst.msk [vmem:[%s351 + $0x10] sm:$0xff] %vm2429, %v2355
        %2433 = vst.msk [vmem:[%s351 + $0x18] sm:$0xff] %vm2429, %v2357
        %2434 = vst.msk [vmem:[%s351 + $0x20] sm:$0xff] %vm2429, %v2360
        %2435 = vst.msk [vmem:[%s351 + $0x28] sm:$0xff] %vm2429, %v2362
        %2436 = vst.msk [vmem:[%s351 + $0x30] sm:$0xff] %vm2429, %v2365
        %2437 = vst.msk [vmem:[%s351 + $0x38] sm:$0xff] %vm2429, %v2367
        %2438 = vst.msk [vmem:[%s351 + $0x40] sm:$0xff] %vm2429, %v2370
        %2439 = vst.msk [vmem:[%s351 + $0x48] sm:$0xff] %vm2429, %v2372
        %2440 = vst.msk [vmem:[%s351 + $0x50] sm:$0xff] %vm2429, %v2375
        %2441 = vst.msk [vmem:[%s351 + $0x58] sm:$0xff] %vm2429, %v2377
        %2442 = vst.msk [vmem:[%s351 + $0x60] sm:$0xff] %vm2429, %v2380
        %2443 = vst.msk [vmem:[%s351 + $0x68] sm:$0xff] %vm2429, %v2382
        %2444 = vst.msk [vmem:[%s351 + $0x70] sm:$0xff] %vm2429, %v2385
        %2445 = vst.msk [vmem:[%s351 + $0x78] sm:$0xff] %vm2429, %v2387
        %2446 = vst.msk [vmem:[%s351 + $0x80] sm:$0xff] %vm2429, %v2390
        %2447 = vst.msk [vmem:[%s351 + $0x88] sm:$0xff] %vm2429, %v2392
        %2448 = vst.msk [vmem:[%s351 + $0x90] sm:$0xff] %vm2429, %v2395
        %2449 = vst.msk [vmem:[%s351 + $0x98] sm:$0xff] %vm2429, %v2397
        %2450 = vst.msk [vmem:[%s351 + $0xa0] sm:$0xff] %vm2429, %v2400
        %2451 = vst.msk [vmem:[%s351 + $0xa8] sm:$0xff] %vm2429, %v2402
        %2452 = vst.msk [vmem:[%s351 + $0xb0] sm:$0xff] %vm2429, %v2405
        %2453 = vst.msk [vmem:[%s351 + $0xb8] sm:$0xff] %vm2429, %v2407
        %2454 = vst.msk [vmem:[%s351 + $0xc0] sm:$0xff] %vm2429, %v2410
        %2455 = vst.msk [vmem:[%s351 + $0xc8] sm:$0xff] %vm2429, %v2412
        %2456 = vst.msk [vmem:[%s351 + $0xd0] sm:$0xff] %vm2429, %v2415
        %2457 = vst.msk [vmem:[%s351 + $0xd8] sm:$0xff] %vm2429, %v2417
        %2458 = vst.msk [vmem:[%s351 + $0xe0] sm:$0xff] %vm2429, %v2420
        %2459 = vst.msk [vmem:[%s351 + $0xe8] sm:$0xff] %vm2429, %v2422
        %2460 = vst.msk [vmem:[%s351 + $0xf0] sm:$0xff] %vm2429, %v2425
        %2461 = vst.msk [vmem:[%s351 + $0xf8] sm:$0xff] %vm2429, %v2427
        %s2462 = smul.u32 32, %s21
        %p2463 = scmp.lt.s32.totalorder %s2462, 63
        %s2464 = scalar_select %p2463, %s2462, 63
        %s2465 = smul.addr %s2464, 8
        %s2466 = scalar_lea.vmem %s9, %s2465
        // Predicated region
        $region61: #{tpu_custom_call.1} parent=55 // pred_check
          %p2467 = pneg %p233
        $region62: #{tpu_custom_call.1} parent=55 // pred_check_branch
          %2469 = sbr.rel (%p2467) target = $region64
        $region63: #{tpu_custom_call.1} parent=55 // pred_region
          %s2470 = smul.u32 32, %s21
        $region64: #{tpu_custom_call.1} parent=55 // pred_fallthru
          _
      $region56: #{tpu_custom_call.1} parent=5 // pred_fallthru
        _
      %p2471 = scmp.le.s32.totalorder 2, %s16
      // Predicated region
      $region65: #{tpu_custom_call.1} parent=5 // pred_check
        %p2472 = pneg %p2471
      $region66: #{tpu_custom_call.1} parent=5 // pred_check_branch
        %2474 = sbr.rel (%p2472) target = $region68
      $region67: #{tpu_custom_call.1} parent=5 // pred_region
        %s2475 = ssub.s32 %s16, 2
        // Predicated region
        $region69: #{tpu_custom_call.1} parent=67 // pred_check
          %p2476 = pneg %p239
        $region70: #{tpu_custom_call.1} parent=67 // pred_check_branch
          %2478 = sbr.rel (%p2476) target = $region72
        $region71: #{tpu_custom_call.1} parent=67 // pred_region
          %s2479 = smul.u32 32, %s22
          %p2480 = scmp.lt.s32.totalorder %s2479, 63
          %s2481 = scalar_select %p2480, %s2479, 63
          %s2482 = smul.addr %s2481, 8
          %s2483 = scalar_lea.vmem %s9, %s2482
        $region72: #{tpu_custom_call.1} parent=67 // pred_fallthru
          _
      $region68: #{tpu_custom_call.1} parent=5 // pred_fallthru
        _
    $region6: #{tpu_custom_call.1} parent=1 // loop_footer
      %s20 = sadd.s32 1, %s16
    $region7: #{tpu_custom_call.1} parent=1 // loop_footer_branch
      %15 = sbr.rel target = $region3
    $region8: #{tpu_custom_call.1} parent=1 // loop_exit
      _
    %2484 = vsyncpa [#allocation3], 1
    %s2485 = scalar_lea.sflag [#allocation3], 1
    %2486 = vsyncpa %s2485, 1

// kernel: tpu_custom_call.1
$region0: #{tpu_custom_call.1}
  #allocation0 [shape = 'u32[]', space=smem, size = 0x4, offset = 0x4, fixed_abs, tag = 'smem constant byte address 0x4 - core index']
  #allocation1 [shape = 'u32[72,128]{1,0:T(1,128)}', space=vmem, size = 0x9000, scoped, tag = 'internal scratch']
  %s0 = inlined_call_operand.vmem [shape: bf16[512,32], index: 0, kind: input, shape index: {}]
  %s1 = inlined_call_operand.vmem [shape: bf16[32,256], index: 1, kind: input, shape index: {}]
  %s2 = inlined_call_operand.vmem [shape: f32[1,256], index: 2, kind: input, shape index: {}]
  %s3 = inlined_call_operand.vmem [shape: bf16[256,256], index: 3, kind: input, shape index: {}]
  %s4 = inlined_call_operand.vmem [shape: f32[1,256], index: 4, kind: input, shape index: {}]
  %s5 = inlined_call_operand.hbm [shape: bf16[256,256], index: 5, kind: input, shape index: {}]
  %s6 = inlined_call_operand.vmem [shape: f32[1,256], index: 6, kind: input, shape index: {}]
  %s7 = inlined_call_operand.vmem [shape: bf16[256,4], index: 7, kind: input, shape index: {}]
  %s8 = inlined_call_operand.vmem [shape: f32[1,4], index: 8, kind: input, shape index: {}]
  %s9 = inlined_call_operand.vmem [shape: f32[512,4], index: 9, kind: output, shape index: {}]
  %s10 = sld [smem:[#allocation0]]
  $region73: #{tpu_custom_call.1} parent=0
    _
  %s12 = ssub.s32 1, %s10
  %s13 = scalar_select 0, %s12, %s10
  $region1: #{tpu_custom_call.1} parent=0
    #allocation2 [shape = 'u8[131072]{0}', space=vmem, size = 0x20000, scoped, tag = 'input window, operand 5, single buffered']
    #allocation3 [shape = 's32[2]{0}', space=sflag, size = 0x8, scoped, tag = 'scoped memory for tpu_custom_call.1']
    %14 = vsyncpa [#allocation3], 0
    loop: start=0, step=1, limit=4
    $region2: #{tpu_custom_call.1} parent=1 // loop_pre_header
      _
    $region3: #{tpu_custom_call.1} parent=1 // loop_header
      %s16 = sphi 0, %s20
      %p17 = scmp.ge.s32.totalorder %s16, 4
      %s26 = sphi 0, %s28
      %s29 = sphi 0, %s26
      %s30 = sphi 0, %s29
      %s46 = sphi 0, %s30
      %s50 = sphi 0, %s50
      %s52 = sphi 0, %s50
      %s53 = sphi 0, %s52
      %s67 = sphi 0, %s53
      %s71 = sphi 0, %s71
      %s73 = sphi 0, %s71
      %s74 = sphi 0, %s73
      %s88 = sphi 0, %s74
      %s92 = sphi 0, %s92
      %s94 = sphi 0, %s92
      %s95 = sphi 0, %s94
      %s109 = sphi 0, %s95
      %s113 = sphi 0, %s113
      %s115 = sphi 0, %s113
      %s116 = sphi 0, %s115
      %s130 = sphi 0, %s116
      %s134 = sphi 0, %s134
      %s136 = sphi 0, %s134
      %s137 = sphi 0, %s136
      %s151 = sphi 0, %s137
      %s155 = sphi 0, %s155
      %s157 = sphi 0, %s155
      %s158 = sphi 0, %s157
      %s172 = sphi 0, %s158
      %s176 = sphi 0, %s176
      %s178 = sphi 0, %s176
      %s179 = sphi 0, %s178
      %s193 = sphi 0, %s179
      %s197 = sphi 0, %s197
      %s199 = sphi 0, %s197
      %s200 = sphi 0, %s199
      %s214 = sphi 0, %s200
      %s220 = sphi 0, %s222
      %s223 = sphi 0, %s220
      %s224 = sphi 0, %s223
      %s240 = sphi 0, %s224
    $region4: #{tpu_custom_call.1} parent=1 // loop_header_branch
      %19 = sbr.rel (%p17) target = $region8
    $region5: #{tpu_custom_call.1} parent=1 // loop_body
      %s21 = ssub.s32 %s16, 1
      %s22 = ssub.s32 %s16, 2
      %s23 = sadd.s32 %s16, 1
      %s24 = ssub.s32 %s16, %s23
      %p25 = scmp.eq.s32.totalorder %s24, 0
      %s27 = sadd.s32 %s26, 1
      %s28 = scalar_select %p25, %s26, %s27
      %p31 = pneg %p25
      %p32 = scmp.eq.s32.totalorder %s16, 1
      %p33 = por %p31, %p32
      %p34 = scmp.ne.s32.totalorder %s26, %s29
      %p35 = scmp.eq.s32.totalorder %s16, 0
      %p36 = por %p34, %p35
      %p37 = scmp.ne.s32.totalorder %s26, %s29
      %p38 = scmp.eq.s32.totalorder %s21, 1
      %p39 = por %p37, %p38
      %p40 = scmp.ne.s32.totalorder %s29, %s30
      %p41 = scmp.eq.s32.totalorder %s21, 0
      %p42 = por %p40, %p41
      %p43 = scmp.ne.s32.totalorder %s29, %s30
      %p44 = scmp.eq.s32.totalorder %s22, 1
      %p45 = por %p43, %p44
      %p47 = scmp.ne.s32.totalorder %s30, %s46
      %p48 = scmp.eq.s32.totalorder %s22, 0
      %p49 = por %p47, %p48
      %s51 = sadd.s32 %s50, 1
      %p54 = scmp.eq.s32.totalorder %s16, 1
      %p55 = scmp.ne.s32.totalorder %s50, %s52
      %p56 = scmp.eq.s32.totalorder %s16, 0
      %p57 = por %p55, %p56
      %p58 = scmp.ne.s32.totalorder %s50, %s52
      %p59 = scmp.eq.s32.totalorder %s21, 1
      %p60 = por %p58, %p59
      %p61 = scmp.ne.s32.totalorder %s52, %s53
      %p62 = scmp.eq.s32.totalorder %s21, 0
      %p63 = por %p61, %p62
      %p64 = scmp.ne.s32.totalorder %s52, %s53
      %p65 = scmp.eq.s32.totalorder %s22, 1
      %p66 = por %p64, %p65
      %p68 = scmp.ne.s32.totalorder %s53, %s67
      %p69 = scmp.eq.s32.totalorder %s22, 0
      %p70 = por %p68, %p69
      %s72 = sadd.s32 %s71, 1
      %p75 = scmp.eq.s32.totalorder %s16, 1
      %p76 = scmp.ne.s32.totalorder %s71, %s73
      %p77 = scmp.eq.s32.totalorder %s16, 0
      %p78 = por %p76, %p77
      %p79 = scmp.ne.s32.totalorder %s71, %s73
      %p80 = scmp.eq.s32.totalorder %s21, 1
      %p81 = por %p79, %p80
      %p82 = scmp.ne.s32.totalorder %s73, %s74
      %p83 = scmp.eq.s32.totalorder %s21, 0
      %p84 = por %p82, %p83
      %p85 = scmp.ne.s32.totalorder %s73, %s74
      %p86 = scmp.eq.s32.totalorder %s22, 1
      %p87 = por %p85, %p86
      %p89 = scmp.ne.s32.totalorder %s74, %s88
      %p90 = scmp.eq.s32.totalorder %s22, 0
      %p91 = por %p89, %p90
      %s93 = sadd.s32 %s92, 1
      %p96 = scmp.eq.s32.totalorder %s16, 1
      %p97 = scmp.ne.s32.totalorder %s92, %s94
      %p98 = scmp.eq.s32.totalorder %s16, 0
      %p99 = por %p97, %p98
      %p100 = scmp.ne.s32.totalorder %s92, %s94
      %p101 = scmp.eq.s32.totalorder %s21, 1
      %p102 = por %p100, %p101
      %p103 = scmp.ne.s32.totalorder %s94, %s95
      %p104 = scmp.eq.s32.totalorder %s21, 0
      %p105 = por %p103, %p104
      %p106 = scmp.ne.s32.totalorder %s94, %s95
      %p107 = scmp.eq.s32.totalorder %s22, 1
      %p108 = por %p106, %p107
      %p110 = scmp.ne.s32.totalorder %s95, %s109
      %p111 = scmp.eq.s32.totalorder %s22, 0
      %p112 = por %p110, %p111
      %s114 = sadd.s32 %s113, 1
      %p117 = scmp.eq.s32.totalorder %s16, 1
      %p118 = scmp.ne.s32.totalorder %s113, %s115
      %p119 = scmp.eq.s32.totalorder %s16, 0
      %p120 = por %p118, %p119
      %p121 = scmp.ne.s32.totalorder %s113, %s115
      %p122 = scmp.eq.s32.totalorder %s21, 1
      %p123 = por %p121, %p122
      %p124 = scmp.ne.s32.totalorder %s115, %s116
      %p125 = scmp.eq.s32.totalorder %s21, 0
      %p126 = por %p124, %p125
      %p127 = scmp.ne.s32.totalorder %s115, %s116
      %p128 = scmp.eq.s32.totalorder %s22, 1
      %p129 = por %p127, %p128
      %p131 = scmp.ne.s32.totalorder %s116, %s130
      %p132 = scmp.eq.s32.totalorder %s22, 0
      %p133 = por %p131, %p132
      %s135 = sadd.s32 %s134, 1
      %p138 = scmp.eq.s32.totalorder %s16, 1
      %p139 = scmp.ne.s32.totalorder %s134, %s136
      %p140 = scmp.eq.s32.totalorder %s16, 0
      %p141 = por %p139, %p140
      %p142 = scmp.ne.s32.totalorder %s134, %s136
      %p143 = scmp.eq.s32.totalorder %s21, 1
      %p144 = por %p142, %p143
      %p145 = scmp.ne.s32.totalorder %s136, %s137
      %p146 = scmp.eq.s32.totalorder %s21, 0
      %p147 = por %p145, %p146
      %p148 = scmp.ne.s32.totalorder %s136, %s137
      %p149 = scmp.eq.s32.totalorder %s22, 1
      %p150 = por %p148, %p149
      %p152 = scmp.ne.s32.totalorder %s137, %s151
      %p153 = scmp.eq.s32.totalorder %s22, 0
      %p154 = por %p152, %p153
      %s156 = sadd.s32 %s155, 1
      %p159 = scmp.eq.s32.totalorder %s16, 1
      %p160 = scmp.ne.s32.totalorder %s155, %s157
      %p161 = scmp.eq.s32.totalorder %s16, 0
      %p162 = por %p160, %p161
      %p163 = scmp.ne.s32.totalorder %s155, %s157
      %p164 = scmp.eq.s32.totalorder %s21, 1
      %p165 = por %p163, %p164
      %p166 = scmp.ne.s32.totalorder %s157, %s158
      %p167 = scmp.eq.s32.totalorder %s21, 0
      %p168 = por %p166, %p167
      %p169 = scmp.ne.s32.totalorder %s157, %s158
      %p170 = scmp.eq.s32.totalorder %s22, 1
      %p171 = por %p169, %p170
      %p173 = scmp.ne.s32.totalorder %s158, %s172
      %p174 = scmp.eq.s32.totalorder %s22, 0
      %p175 = por %p173, %p174
      %s177 = sadd.s32 %s176, 1
      %p180 = scmp.eq.s32.totalorder %s16, 1
      %p181 = scmp.ne.s32.totalorder %s176, %s178
      %p182 = scmp.eq.s32.totalorder %s16, 0
      %p183 = por %p181, %p182
      %p184 = scmp.ne.s32.totalorder %s176, %s178
      %p185 = scmp.eq.s32.totalorder %s21, 1
      %p186 = por %p184, %p185
      %p187 = scmp.ne.s32.totalorder %s178, %s179
      %p188 = scmp.eq.s32.totalorder %s21, 0
      %p189 = por %p187, %p188
      %p190 = scmp.ne.s32.totalorder %s178, %s179
      %p191 = scmp.eq.s32.totalorder %s22, 1
      %p192 = por %p190, %p191
      %p194 = scmp.ne.s32.totalorder %s179, %s193
      %p195 = scmp.eq.s32.totalorder %s22, 0
      %p196 = por %p194, %p195
      %s198 = sadd.s32 %s197, 1
      %p201 = scmp.eq.s32.totalorder %s16, 1
      %p202 = scmp.ne.s32.totalorder %s197, %s199
      %p203 = scmp.eq.s32.totalorder %s16, 0
      %p204 = por %p202, %p203
      %p205 = scmp.ne.s32.totalorder %s197, %s199
      %p206 = scmp.eq.s32.totalorder %s21, 1
      %p207 = por %p205, %p206
      %p208 = scmp.ne.s32.totalorder %s199, %s200
      %p209 = scmp.eq.s32.totalorder %s21, 0
      %p210 = por %p208, %p209
      %p211 = scmp.ne.s32.totalorder %s199, %s200
      %p212 = scmp.eq.s32.totalorder %s22, 1
      %p213 = por %p211, %p212
      %p215 = scmp.ne.s32.totalorder %s200, %s214
      %p216 = scmp.eq.s32.totalorder %s22, 0
      %p217 = por %p215, %p216
      %s218 = ssub.s32 %s16, %s23
      %p219 = scmp.eq.s32.totalorder %s218, 0
      %s221 = sadd.s32 %s220, 1
      %s222 = scalar_select %p219, %s220, %s221
      %p225 = pneg %p219
      %p226 = scmp.eq.s32.totalorder %s16, 1
      %p227 = por %p225, %p226
      %p228 = scmp.ne.s32.totalorder %s220, %s223
      %p229 = scmp.eq.s32.totalorder %s16, 0
      %p230 = por %p228, %p229
      %p231 = scmp.ne.s32.totalorder %s220, %s223
      %p232 = scmp.eq.s32.totalorder %s21, 1
      %p233 = por %p231, %p232
      %p234 = scmp.ne.s32.totalorder %s223, %s224
      %p235 = scmp.eq.s32.totalorder %s21, 0
      %p236 = por %p234, %p235
      %p237 = scmp.ne.s32.totalorder %s223, %s224
      %p238 = scmp.eq.s32.totalorder %s22, 1
      %p239 = por %p237, %p238
      %p241 = scmp.ne.s32.totalorder %s224, %s240
      %p242 = scmp.eq.s32.totalorder %s22, 0
      %p243 = por %p241, %p242
      %p244 = scmp.le.s32.totalorder 1, %s16
      %p245 = scmp.lt.s32.totalorder %s16, 3
      %p246 = pnand %p244, %p245
      %p247 = pneg %p246
      // Predicated region
      $region9: #{tpu_custom_call.1} parent=5 // pred_check
        _
      $region10: #{tpu_custom_call.1} parent=5 // pred_check_branch
        %249 = sbr.rel (%p246) target = $region12
      $region11: #{tpu_custom_call.1} parent=5 // pred_region
        %s250 = ssub.s32 %s16, 1
        // Predicated region
        $region13: #{tpu_custom_call.1} parent=11 // pred_check
          %p251 = pneg %p63
        $region14: #{tpu_custom_call.1} parent=11 // pred_check_branch
          %253 = sbr.rel (%p251) target = $region16
        $region15: #{tpu_custom_call.1} parent=11 // pred_region
          _
        $region16: #{tpu_custom_call.1} parent=11 // pred_fallthru
          _
        // Predicated region
        $region17: #{tpu_custom_call.1} parent=11 // pred_check
          %p254 = pneg %p84
        $region18: #{tpu_custom_call.1} parent=11 // pred_check_branch
          %256 = sbr.rel (%p254) target = $region20
        $region19: #{tpu_custom_call.1} parent=11 // pred_region
          _
        $region20: #{tpu_custom_call.1} parent=11 // pred_fallthru
          _
        // Predicated region
        $region21: #{tpu_custom_call.1} parent=11 // pred_check
          %p257 = pneg %p105
        $region22: #{tpu_custom_call.1} parent=11 // pred_check_branch
          %259 = sbr.rel (%p257) target = $region24
        $region23: #{tpu_custom_call.1} parent=11 // pred_region
          _
        $region24: #{tpu_custom_call.1} parent=11 // pred_fallthru
          _
        // Predicated region
        $region25: #{tpu_custom_call.1} parent=11 // pred_check
          %p260 = pneg %p126
        $region26: #{tpu_custom_call.1} parent=11 // pred_check_branch
          %262 = sbr.rel (%p260) target = $region28
        $region27: #{tpu_custom_call.1} parent=11 // pred_region
          _
        $region28: #{tpu_custom_call.1} parent=11 // pred_fallthru
          _
        // Predicated region
        $region29: #{tpu_custom_call.1} parent=11 // pred_check
          %p263 = pneg %p147
        $region30: #{tpu_custom_call.1} parent=11 // pred_check_branch
          %265 = sbr.rel (%p263) target = $region32
        $region31: #{tpu_custom_call.1} parent=11 // pred_region
          %267 = vsyncadd [#allocation3], 0
          %s268 = sshll.u32 %s5, 4
          %s269 = int_to_ptr.hbm [resolvable:$true] %s268
          %s270 = sshll.u32 [#allocation2], 4
          %s271 = int_to_ptr.vmem [resolvable:$true] %s270
          %276 = dma.hbm_to_vmem [thread:$0]  %s269, 4096, %s271, [#allocation3], 128, 128, 8
        $region32: #{tpu_custom_call.1} parent=11 // pred_fallthru
          _
        // Predicated region
        $region33: #{tpu_custom_call.1} parent=11 // pred_check
          %p277 = pneg %p168
        $region34: #{tpu_custom_call.1} parent=11 // pred_check_branch
          %279 = sbr.rel (%p277) target = $region36
        $region35: #{tpu_custom_call.1} parent=11 // pred_region
          _
        $region36: #{tpu_custom_call.1} parent=11 // pred_fallthru
          _
        // Predicated region
        $region37: #{tpu_custom_call.1} parent=11 // pred_check
          %p280 = pneg %p189
        $region38: #{tpu_custom_call.1} parent=11 // pred_check_branch
          %282 = sbr.rel (%p280) target = $region40
        $region39: #{tpu_custom_call.1} parent=11 // pred_region
          _
        $region40: #{tpu_custom_call.1} parent=11 // pred_fallthru
          _
        // Predicated region
        $region41: #{tpu_custom_call.1} parent=11 // pred_check
          %p283 = pneg %p210
        $region42: #{tpu_custom_call.1} parent=11 // pred_check_branch
          %285 = sbr.rel (%p283) target = $region44
        $region43: #{tpu_custom_call.1} parent=11 // pred_region
          _
        $region44: #{tpu_custom_call.1} parent=11 // pred_fallthru
          _
      $region12: #{tpu_custom_call.1} parent=5 // pred_fallthru
        _
      %p286 = scmp.lt.s32.totalorder %s16, 2
      // Predicated region
      $region45: #{tpu_custom_call.1} parent=5 // pred_check
        %p287 = pneg %p286
      $region46: #{tpu_custom_call.1} parent=5 // pred_check_branch
        %289 = sbr.rel (%p287) target = $region48
      $region47: #{tpu_custom_call.1} parent=5 // pred_region
        // Predicated region
        $region49: #{tpu_custom_call.1} parent=47 // pred_check
          %p290 = pneg %p36
        $region50: #{tpu_custom_call.1} parent=47 // pred_check_branch
          %292 = sbr.rel (%p290) target = $region52
        $region51: #{tpu_custom_call.1} parent=47 // pred_region
          %s293 = smul.u32 32, %s16
          %p294 = scmp.lt.s32.totalorder %s293, 63
          %s295 = scalar_select %p294, %s293, 63
          %s296 = smul.addr %s295, 4
          %s297 = scalar_lea.vmem %s0, %s296
          %s298 = smul.u32 32, %s16
        $region52: #{tpu_custom_call.1} parent=47 // pred_fallthru
          _
      $region48: #{tpu_custom_call.1} parent=5 // pred_fallthru
        _
      %p299 = scmp.le.s32.totalorder 1, %s16
      %p300 = scmp.lt.s32.totalorder %s16, 3
      %p301 = pnand %p299, %p300
      %p302 = pneg %p301
      // Predicated region
      $region53: #{tpu_custom_call.1} parent=5 // pred_check
        _
      $region54: #{tpu_custom_call.1} parent=5 // pred_check_branch
        %304 = sbr.rel (%p301) target = $region56
      $region55: #{tpu_custom_call.1} parent=5 // pred_region
        %s305 = ssub.s32 %s16, 1
        // Predicated region
        $region57: #{tpu_custom_call.1} parent=55 // pred_check
          %p306 = pneg %p147
        $region58: #{tpu_custom_call.1} parent=55 // pred_check_branch
          %308 = sbr.rel (%p306) target = $region60
        $region59: #{tpu_custom_call.1} parent=55 // pred_region
          %310 = dma.done [#allocation3], 4096
        $region60: #{tpu_custom_call.1} parent=55 // pred_fallthru
          _
        %s311 = smul.u32 32, %s21
        %p312 = scmp.lt.s32.totalorder %s311, 63
        %s313 = scalar_select %p312, %s311, 63
        %s314 = smul.addr %s313, 4
        %s315 = scalar_lea.vmem %s0, %s314
        %p316 = pneg %p42
        %p317 = pneg %p39
        %p318 = pneg %p63
        %p319 = pneg %p60
        %p320 = pneg %p84
        %p321 = pneg %p81
        %p322 = pneg %p105
        %p323 = pneg %p102
        %p324 = pneg %p126
        %p325 = pneg %p123
        %p326 = pneg %p147
        %p327 = pneg %p144
        %p328 = pneg %p168
        %p329 = pneg %p165
        %p330 = pneg %p189
        %p331 = pneg %p186
        %p332 = pneg %p210
        %p333 = pneg %p207
        %p334 = pneg %p236
        %p335 = pneg %p233
        %s336 = smul.u32 32, %s21
        %p337 = scmp.lt.s32.totalorder %s336, 63
        %s338 = scalar_select %p337, %s336, 63
        %s339 = smul.addr %s338, 8
        %s340 = scalar_lea.vmem %s9, %s339
        %s341 = smul.u32 32, %s21
        %p342 = scmp.lt.s32.totalorder %s341, 63
        %s343 = scalar_select %p342, %s341, 63
        %s344 = smul.addr %s343, 4
        %s345 = scalar_lea.vmem %s0, %s344
        %s346 = smul.u32 32, %s21
        %s347 = smul.u32 32, %s21
        %p348 = scmp.lt.s32.totalorder %s347, 63
        %s349 = scalar_select %p348, %s347, 63
        %s350 = smul.addr %s349, 8
        %s351 = scalar_lea.vmem %s9, %s350
        %s352 = smul.u32 32, %s21
        %v354 = vld [vmem:[%s345] sm:$0xf]
        %v355 = vld [vmem:[%s345 + $0x4] sm:$0xf]
        %v356 = vld [vmem:[%s345 + $0x8] sm:$0xf]
        %v357 = vld [vmem:[%s345 + $0xc] sm:$0xf]
        %v358 = vld [vmem:[%s345 + $0x10] sm:$0xf]
        %v359 = vld [vmem:[%s345 + $0x14] sm:$0xf]
        %v360 = vld [vmem:[%s345 + $0x18] sm:$0xf]
        %v361 = vld [vmem:[%s345 + $0x1c] sm:$0xf]
        %v362 = vld [vmem:[%s345 + $0x20] sm:$0xf]
        %v363 = vld [vmem:[%s345 + $0x24] sm:$0xf]
        %v364 = vld [vmem:[%s345 + $0x28] sm:$0xf]
        %v365 = vld [vmem:[%s345 + $0x2c] sm:$0xf]
        %v366 = vld [vmem:[%s345 + $0x30] sm:$0xf]
        %v367 = vld [vmem:[%s345 + $0x34] sm:$0xf]
        %v368 = vld [vmem:[%s345 + $0x38] sm:$0xf]
        %v369 = vld [vmem:[%s345 + $0x3c] sm:$0xf]
        %v370 = vld [vmem:[%s345 + $0x40] sm:$0xf]
        %v371 = vld [vmem:[%s345 + $0x44] sm:$0xf]
        %v372 = vld [vmem:[%s345 + $0x48] sm:$0xf]
        %v373 = vld [vmem:[%s345 + $0x4c] sm:$0xf]
        %v374 = vld [vmem:[%s345 + $0x50] sm:$0xf]
        %v375 = vld [vmem:[%s345 + $0x54] sm:$0xf]
        %v376 = vld [vmem:[%s345 + $0x58] sm:$0xf]
        %v377 = vld [vmem:[%s345 + $0x5c] sm:$0xf]
        %v378 = vld [vmem:[%s345 + $0x60] sm:$0xf]
        %v379 = vld [vmem:[%s345 + $0x64] sm:$0xf]
        %v380 = vld [vmem:[%s345 + $0x68] sm:$0xf]
        %v381 = vld [vmem:[%s345 + $0x6c] sm:$0xf]
        %v382 = vld [vmem:[%s345 + $0x70] sm:$0xf]
        %v383 = vld [vmem:[%s345 + $0x74] sm:$0xf]
        %v384 = vld [vmem:[%s345 + $0x78] sm:$0xf]
        %v385 = vld [vmem:[%s345 + $0x7c] sm:$0xf]
        %v386 = vld [vmem:[%s1] sm:$0xff]
        %v387 = vld [vmem:[%s1 + $0x8] sm:$0xff]
        %v388 = vld [vmem:[%s1 + $0x10] sm:$0xff]
        %v389 = vld [vmem:[%s1 + $0x18] sm:$0xff]
        %v390 = vld [vmem:[%s2] sm:$0x3]
        %v392 = vperm.slane %v390, 0
        %v393 = vperm.slane %v390, 1
        %v428 = vunpack.c.l.b16 %v354
        %v429 = vunpack.c.l.b16 %v355
        %v430 = vunpack.c.l.b16 %v356
        %v431 = vunpack.c.l.b16 %v357
        %v432 = vunpack.c.l.b16 %v358
        %v433 = vunpack.c.l.b16 %v359
        %v434 = vunpack.c.l.b16 %v360
        %v435 = vunpack.c.l.b16 %v361
        %v436 = vunpack.c.l.b16 %v362
        %v437 = vunpack.c.l.b16 %v363
        %v438 = vunpack.c.l.b16 %v364
        %v439 = vunpack.c.l.b16 %v365
        %v440 = vunpack.c.l.b16 %v366
        %v441 = vunpack.c.l.b16 %v367
        %v442 = vunpack.c.l.b16 %v368
        %v443 = vunpack.c.l.b16 %v369
        %v444 = vunpack.c.l.b16 %v370
        %v445 = vunpack.c.l.b16 %v371
        %v446 = vunpack.c.l.b16 %v372
        %v447 = vunpack.c.l.b16 %v373
        %v448 = vunpack.c.l.b16 %v374
        %v449 = vunpack.c.l.b16 %v375
        %v450 = vunpack.c.l.b16 %v376
        %v451 = vunpack.c.l.b16 %v377
        %v452 = vunpack.c.l.b16 %v378
        %v453 = vunpack.c.l.b16 %v379
        %v454 = vunpack.c.l.b16 %v380
        %v455 = vunpack.c.l.b16 %v381
        %v456 = vunpack.c.l.b16 %v382
        %v457 = vunpack.c.l.b16 %v383
        %v458 = vunpack.c.l.b16 %v384
        %v459 = vunpack.c.l.b16 %v385
        %v460 = vpack.c.b16 %v429, %v428
        %v461 = vpack.c.b16 %v431, %v430
        %v462 = vpack.c.b16 %v433, %v432
        %v463 = vpack.c.b16 %v435, %v434
        %v464 = vpack.c.b16 %v437, %v436
        %v465 = vpack.c.b16 %v439, %v438
        %v466 = vpack.c.b16 %v441, %v440
        %v467 = vpack.c.b16 %v443, %v442
        %v468 = vpack.c.b16 %v445, %v444
        %v469 = vpack.c.b16 %v447, %v446
        %v470 = vpack.c.b16 %v449, %v448
        %v471 = vpack.c.b16 %v451, %v450
        %v472 = vpack.c.b16 %v453, %v452
        %v473 = vpack.c.b16 %v455, %v454
        %v474 = vpack.c.b16 %v457, %v456
        %v475 = vpack.c.b16 %v459, %v458
        %v480 = vunpack.c.l.b16 %v386
        %v481 = vunpack.c.h.b16 %v386
        %v482 = vunpack.c.l.b16 %v387
        %v483 = vunpack.c.h.b16 %v387
        %v484 = vunpack.c.l.b16 %v388
        %v485 = vunpack.c.h.b16 %v388
        %v486 = vunpack.c.l.b16 %v389
        %v487 = vunpack.c.h.b16 %v389
        %v488 = vpack.c.b16 %v482, %v480
        %v489 = vpack.c.b16 %v483, %v481
        %v490 = vpack.c.b16 %v486, %v484
        %v491 = vpack.c.b16 %v487, %v485
        %vm496 = vcmask 261120
        %v498 = vsel %vm496, %v460, 0
        %v501 = vsel %vm496, %v461, 0
        %v504 = vsel %vm496, %v462, 0
        %v507 = vsel %vm496, %v463, 0
        %v510 = vsel %vm496, %v464, 0
        %v513 = vsel %vm496, %v465, 0
        %v516 = vsel %vm496, %v466, 0
        %v519 = vsel %vm496, %v467, 0
        %v522 = vsel %vm496, %v468, 0
        %v525 = vsel %vm496, %v469, 0
        %v528 = vsel %vm496, %v470, 0
        %v531 = vsel %vm496, %v471, 0
        %v534 = vsel %vm496, %v472, 0
        %v537 = vsel %vm496, %v473, 0
        %v540 = vsel %vm496, %v474, 0
        %v543 = vsel %vm496, %v475, 0
        %545 = vmatpush.bf16.msra.mxu0 0
        %546 = vmatpush.bf16.msra.mxu0 0
        %547 = vmatpush.bf16.msra.mxu0 0
        %548 = vmatpush.bf16.msra.mxu0 0
        %549 = vmatpush.bf16.msra.mxu0 0
        %550 = vmatpush.bf16.msra.mxu0 0
        %551 = vmatpush.bf16.msra.mxu0 %v490
        %552 = vmatpush.bf16.msra.mxu0 %v488
        %553 = vmatmul.bf16.gmra.mxu0 %v498
        %v554 = vpop.f32.mrf.mxu0
        %v555 = vadd.f32 %v392, %v554
        %v556 = vpop.f32.mrf.mxu0
        %v557 = vadd.f32 %v392, %v556
        %558 = vmatmul.bf16.gmra.mxu0 %v501
        %v559 = vpop.f32.mrf.mxu0
        %v560 = vadd.f32 %v392, %v559
        %v561 = vpop.f32.mrf.mxu0
        %v562 = vadd.f32 %v392, %v561
        %563 = vmatmul.bf16.gmra.mxu0 %v504
        %v564 = vpop.f32.mrf.mxu0
        %v565 = vadd.f32 %v392, %v564
        %v566 = vpop.f32.mrf.mxu0
        %v567 = vadd.f32 %v392, %v566
        %568 = vmatmul.bf16.gmra.mxu0 %v507
        %v569 = vpop.f32.mrf.mxu0
        %v570 = vadd.f32 %v392, %v569
        %v571 = vpop.f32.mrf.mxu0
        %v572 = vadd.f32 %v392, %v571
        %573 = vmatmul.bf16.gmra.mxu0 %v510
        %v574 = vpop.f32.mrf.mxu0
        %v575 = vadd.f32 %v392, %v574
        %v576 = vpop.f32.mrf.mxu0
        %v577 = vadd.f32 %v392, %v576
        %578 = vmatmul.bf16.gmra.mxu0 %v513
        %v579 = vpop.f32.mrf.mxu0
        %v580 = vadd.f32 %v392, %v579
        %v581 = vpop.f32.mrf.mxu0
        %v582 = vadd.f32 %v392, %v581
        %583 = vmatmul.bf16.gmra.mxu0 %v516
        %v584 = vpop.f32.mrf.mxu0
        %v585 = vadd.f32 %v392, %v584
        %v586 = vpop.f32.mrf.mxu0
        %v587 = vadd.f32 %v392, %v586
        %588 = vmatmul.bf16.gmra.mxu0 %v519
        %v589 = vpop.f32.mrf.mxu0
        %v590 = vadd.f32 %v392, %v589
        %v591 = vpop.f32.mrf.mxu0
        %v592 = vadd.f32 %v392, %v591
        %593 = vmatmul.bf16.gmra.mxu0 %v522
        %v594 = vpop.f32.mrf.mxu0
        %v595 = vadd.f32 %v392, %v594
        %v596 = vpop.f32.mrf.mxu0
        %v597 = vadd.f32 %v392, %v596
        %598 = vmatmul.bf16.gmra.mxu0 %v525
        %v599 = vpop.f32.mrf.mxu0
        %v600 = vadd.f32 %v392, %v599
        %v601 = vpop.f32.mrf.mxu0
        %v602 = vadd.f32 %v392, %v601
        %603 = vmatmul.bf16.gmra.mxu0 %v528
        %v604 = vpop.f32.mrf.mxu0
        %v605 = vadd.f32 %v392, %v604
        %v606 = vpop.f32.mrf.mxu0
        %v607 = vadd.f32 %v392, %v606
        %608 = vmatmul.bf16.gmra.mxu0 %v531
        %v609 = vpop.f32.mrf.mxu0
        %v610 = vadd.f32 %v392, %v609
        %v611 = vpop.f32.mrf.mxu0
        %v612 = vadd.f32 %v392, %v611
        %613 = vmatmul.bf16.gmra.mxu0 %v534
        %v614 = vpop.f32.mrf.mxu0
        %v615 = vadd.f32 %v392, %v614
        %v616 = vpop.f32.mrf.mxu0
        %v617 = vadd.f32 %v392, %v616
        %618 = vmatmul.bf16.gmra.mxu0 %v537
        %v619 = vpop.f32.mrf.mxu0
        %v620 = vadd.f32 %v392, %v619
        %v621 = vpop.f32.mrf.mxu0
        %v622 = vadd.f32 %v392, %v621
        %623 = vmatmul.bf16.gmra.mxu0 %v540
        %v624 = vpop.f32.mrf.mxu0
        %v625 = vadd.f32 %v392, %v624
        %v626 = vpop.f32.mrf.mxu0
        %v627 = vadd.f32 %v392, %v626
        %628 = vmatmul.bf16.gmra.mxu0 %v543
        %v629 = vpop.f32.mrf.mxu0
        %v630 = vadd.f32 %v392, %v629
        %v631 = vpop.f32.mrf.mxu0
        %v632 = vadd.f32 %v392, %v631
        %633 = vdwg.mxu0
        %634 = vmatpush.bf16.msra.mxu0 0
        %635 = vmatpush.bf16.msra.mxu0 0
        %636 = vmatpush.bf16.msra.mxu0 0
        %637 = vmatpush.bf16.msra.mxu0 0
        %638 = vmatpush.bf16.msra.mxu0 0
        %639 = vmatpush.bf16.msra.mxu0 0
        %640 = vmatpush.bf16.msra.mxu0 %v491
        %641 = vmatpush.bf16.msra.mxu0 %v489
        %642 = vmatmul.bf16.gmra.mxu0 %v498
        %v643 = vpop.f32.mrf.mxu0
        %v644 = vadd.f32 %v393, %v643
        %v645 = vpop.f32.mrf.mxu0
        %v646 = vadd.f32 %v393, %v645
        %647 = vmatmul.bf16.gmra.mxu0 %v501
        %v648 = vpop.f32.mrf.mxu0
        %v649 = vadd.f32 %v393, %v648
        %v650 = vpop.f32.mrf.mxu0
        %v651 = vadd.f32 %v393, %v650
        %652 = vmatmul.bf16.gmra.mxu0 %v504
        %v653 = vpop.f32.mrf.mxu0
        %v654 = vadd.f32 %v393, %v653
        %v655 = vpop.f32.mrf.mxu0
        %v656 = vadd.f32 %v393, %v655
        %657 = vmatmul.bf16.gmra.mxu0 %v507
        %v658 = vpop.f32.mrf.mxu0
        %v659 = vadd.f32 %v393, %v658
        %v660 = vpop.f32.mrf.mxu0
        %v661 = vadd.f32 %v393, %v660
        %662 = vmatmul.bf16.gmra.mxu0 %v510
        %v663 = vpop.f32.mrf.mxu0
        %v664 = vadd.f32 %v393, %v663
        %v665 = vpop.f32.mrf.mxu0
        %v666 = vadd.f32 %v393, %v665
        %667 = vmatmul.bf16.gmra.mxu0 %v513
        %v668 = vpop.f32.mrf.mxu0
        %v669 = vadd.f32 %v393, %v668
        %v670 = vpop.f32.mrf.mxu0
        %v671 = vadd.f32 %v393, %v670
        %672 = vmatmul.bf16.gmra.mxu0 %v516
        %v673 = vpop.f32.mrf.mxu0
        %v674 = vadd.f32 %v393, %v673
        %v675 = vpop.f32.mrf.mxu0
        %v676 = vadd.f32 %v393, %v675
        %677 = vmatmul.bf16.gmra.mxu0 %v519
        %v678 = vpop.f32.mrf.mxu0
        %v679 = vadd.f32 %v393, %v678
        %v680 = vpop.f32.mrf.mxu0
        %v681 = vadd.f32 %v393, %v680
        %682 = vmatmul.bf16.gmra.mxu0 %v522
        %v683 = vpop.f32.mrf.mxu0
        %v684 = vadd.f32 %v393, %v683
        %v685 = vpop.f32.mrf.mxu0
        %v686 = vadd.f32 %v393, %v685
        %687 = vmatmul.bf16.gmra.mxu0 %v525
        %v688 = vpop.f32.mrf.mxu0
        %v689 = vadd.f32 %v393, %v688
        %v690 = vpop.f32.mrf.mxu0
        %v691 = vadd.f32 %v393, %v690
        %692 = vmatmul.bf16.gmra.mxu0 %v528
        %v693 = vpop.f32.mrf.mxu0
        %v694 = vadd.f32 %v393, %v693
        %v695 = vpop.f32.mrf.mxu0
        %v696 = vadd.f32 %v393, %v695
        %697 = vmatmul.bf16.gmra.mxu0 %v531
        %v698 = vpop.f32.mrf.mxu0
        %v699 = vadd.f32 %v393, %v698
        %v700 = vpop.f32.mrf.mxu0
        %v701 = vadd.f32 %v393, %v700
        %702 = vmatmul.bf16.gmra.mxu0 %v534
        %v703 = vpop.f32.mrf.mxu0
        %v704 = vadd.f32 %v393, %v703
        %v705 = vpop.f32.mrf.mxu0
        %v706 = vadd.f32 %v393, %v705
        %707 = vmatmul.bf16.gmra.mxu0 %v537
        %v708 = vpop.f32.mrf.mxu0
        %v709 = vadd.f32 %v393, %v708
        %v710 = vpop.f32.mrf.mxu0
        %v711 = vadd.f32 %v393, %v710
        %712 = vmatmul.bf16.gmra.mxu0 %v540
        %v713 = vpop.f32.mrf.mxu0
        %v714 = vadd.f32 %v393, %v713
        %v715 = vpop.f32.mrf.mxu0
        %v716 = vadd.f32 %v393, %v715
        %717 = vmatmul.bf16.gmra.mxu0 %v543
        %v718 = vpop.f32.mrf.mxu0
        %v719 = vadd.f32 %v393, %v718
        %v720 = vpop.f32.mrf.mxu0
        %v721 = vadd.f32 %v393, %v720
        %722 = vdwg.mxu0
        %v723 = vmax.f32 %v555, 0.0
        %v724 = vmax.f32 %v644, 0.0
        %v725 = vmax.f32 %v557, 0.0
        %v726 = vmax.f32 %v646, 0.0
        %v727 = vmax.f32 %v560, 0.0
        %v728 = vmax.f32 %v649, 0.0
        %v729 = vmax.f32 %v562, 0.0
        %v730 = vmax.f32 %v651, 0.0
        %v731 = vmax.f32 %v565, 0.0
        %v732 = vmax.f32 %v654, 0.0
        %v733 = vmax.f32 %v567, 0.0
        %v734 = vmax.f32 %v656, 0.0
        %v735 = vmax.f32 %v570, 0.0
        %v736 = vmax.f32 %v659, 0.0
        %v737 = vmax.f32 %v572, 0.0
        %v738 = vmax.f32 %v661, 0.0
        %v739 = vmax.f32 %v575, 0.0
        %v740 = vmax.f32 %v664, 0.0
        %v741 = vmax.f32 %v577, 0.0
        %v742 = vmax.f32 %v666, 0.0
        %v743 = vmax.f32 %v580, 0.0
        %v744 = vmax.f32 %v669, 0.0
        %v745 = vmax.f32 %v582, 0.0
        %v746 = vmax.f32 %v671, 0.0
        %v747 = vmax.f32 %v585, 0.0
        %v748 = vmax.f32 %v674, 0.0
        %v749 = vmax.f32 %v587, 0.0
        %v750 = vmax.f32 %v676, 0.0
        %v751 = vmax.f32 %v590, 0.0
        %v752 = vmax.f32 %v679, 0.0
        %v753 = vmax.f32 %v592, 0.0
        %v754 = vmax.f32 %v681, 0.0
        %v755 = vmax.f32 %v595, 0.0
        %v756 = vmax.f32 %v684, 0.0
        %v757 = vmax.f32 %v597, 0.0
        %v758 = vmax.f32 %v686, 0.0
        %v759 = vmax.f32 %v600, 0.0
        %v760 = vmax.f32 %v689, 0.0
        %v761 = vmax.f32 %v602, 0.0
        %v762 = vmax.f32 %v691, 0.0
        %v763 = vmax.f32 %v605, 0.0
        %v764 = vmax.f32 %v694, 0.0
        %v765 = vmax.f32 %v607, 0.0
        %v766 = vmax.f32 %v696, 0.0
        %v767 = vmax.f32 %v610, 0.0
        %v768 = vmax.f32 %v699, 0.0
        %v769 = vmax.f32 %v612, 0.0
        %v770 = vmax.f32 %v701, 0.0
        %v771 = vmax.f32 %v615, 0.0
        %v772 = vmax.f32 %v704, 0.0
        %v773 = vmax.f32 %v617, 0.0
        %v774 = vmax.f32 %v706, 0.0
        %v775 = vmax.f32 %v620, 0.0
        %v776 = vmax.f32 %v709, 0.0
        %v777 = vmax.f32 %v622, 0.0
        %v778 = vmax.f32 %v711, 0.0
        %v779 = vmax.f32 %v625, 0.0
        %v780 = vmax.f32 %v714, 0.0
        %v781 = vmax.f32 %v627, 0.0
        %v782 = vmax.f32 %v716, 0.0
        %v783 = vmax.f32 %v630, 0.0
        %v784 = vmax.f32 %v719, 0.0
        %v785 = vmax.f32 %v632, 0.0
        %v786 = vmax.f32 %v721, 0.0
        %v787 = vpack.c.bf16 %v725, %v723
        %v788 = vpack.c.bf16 %v726, %v724
        %v789 = vpack.c.bf16 %v729, %v727
        %v790 = vpack.c.bf16 %v730, %v728
        %v791 = vpack.c.bf16 %v733, %v731
        %v792 = vpack.c.bf16 %v734, %v732
        %v793 = vpack.c.bf16 %v737, %v735
        %v794 = vpack.c.bf16 %v738, %v736
        %v795 = vpack.c.bf16 %v741, %v739
        %v796 = vpack.c.bf16 %v742, %v740
        %v797 = vpack.c.bf16 %v745, %v743
        %v798 = vpack.c.bf16 %v746, %v744
        %v799 = vpack.c.bf16 %v749, %v747
        %v800 = vpack.c.bf16 %v750, %v748
        %v801 = vpack.c.bf16 %v753, %v751
        %v802 = vpack.c.bf16 %v754, %v752
        %v803 = vpack.c.bf16 %v757, %v755
        %v804 = vpack.c.bf16 %v758, %v756
        %v805 = vpack.c.bf16 %v761, %v759
        %v806 = vpack.c.bf16 %v762, %v760
        %v807 = vpack.c.bf16 %v765, %v763
        %v808 = vpack.c.bf16 %v766, %v764
        %v809 = vpack.c.bf16 %v769, %v767
        %v810 = vpack.c.bf16 %v770, %v768
        %v811 = vpack.c.bf16 %v773, %v771
        %v812 = vpack.c.bf16 %v774, %v772
        %v813 = vpack.c.bf16 %v777, %v775
        %v814 = vpack.c.bf16 %v778, %v776
        %v815 = vpack.c.bf16 %v781, %v779
        %v816 = vpack.c.bf16 %v782, %v780
        %v817 = vpack.c.bf16 %v785, %v783
        %v818 = vpack.c.bf16 %v786, %v784
        %v819 = vld [vmem:[%s3] sm:$0xff]
        %v820 = vld [vmem:[%s3 + $0x8] sm:$0xff]
        %v821 = vld [vmem:[%s3 + $0x10] sm:$0xff]
        %v822 = vld [vmem:[%s3 + $0x18] sm:$0xff]
        %v823 = vld [vmem:[%s3 + $0x20] sm:$0xff]
        %v824 = vld [vmem:[%s3 + $0x28] sm:$0xff]
        %v825 = vld [vmem:[%s3 + $0x30] sm:$0xff]
        %v826 = vld [vmem:[%s3 + $0x38] sm:$0xff]
        %v827 = vld [vmem:[%s3 + $0x40] sm:$0xff]
        %v828 = vld [vmem:[%s3 + $0x48] sm:$0xff]
        %v829 = vld [vmem:[%s3 + $0x50] sm:$0xff]
        %v830 = vld [vmem:[%s3 + $0x58] sm:$0xff]
        %v831 = vld [vmem:[%s3 + $0x60] sm:$0xff]
        %v832 = vld [vmem:[%s3 + $0x68] sm:$0xff]
        %v833 = vld [vmem:[%s3 + $0x70] sm:$0xff]
        %v834 = vld [vmem:[%s3 + $0x78] sm:$0xff]
        %v835 = vld [vmem:[%s3 + $0x80] sm:$0xff]
        %v836 = vld [vmem:[%s3 + $0x88] sm:$0xff]
        %v837 = vld [vmem:[%s3 + $0x90] sm:$0xff]
        %v838 = vld [vmem:[%s3 + $0x98] sm:$0xff]
        %v839 = vld [vmem:[%s3 + $0xa0] sm:$0xff]
        %v840 = vld [vmem:[%s3 + $0xa8] sm:$0xff]
        %v841 = vld [vmem:[%s3 + $0xb0] sm:$0xff]
        %v842 = vld [vmem:[%s3 + $0xb8] sm:$0xff]
        %v843 = vld [vmem:[%s3 + $0xc0] sm:$0xff]
        %v844 = vld [vmem:[%s3 + $0xc8] sm:$0xff]
        %v845 = vld [vmem:[%s3 + $0xd0] sm:$0xff]
        %v846 = vld [vmem:[%s3 + $0xd8] sm:$0xff]
        %v847 = vld [vmem:[%s3 + $0xe0] sm:$0xff]
        %v848 = vld [vmem:[%s3 + $0xe8] sm:$0xff]
        %v849 = vld [vmem:[%s3 + $0xf0] sm:$0xff]
        %v850 = vld [vmem:[%s3 + $0xf8] sm:$0xff]
        %v851 = vld [vmem:[%s4] sm:$0x3]
        %v853 = vperm.slane %v851, 0
        %v854 = vperm.slane %v851, 1
        %v889 = vunpack.c.l.b16 %v819
        %v890 = vunpack.c.h.b16 %v819
        %v891 = vunpack.c.l.b16 %v820
        %v892 = vunpack.c.h.b16 %v820
        %v893 = vunpack.c.l.b16 %v821
        %v894 = vunpack.c.h.b16 %v821
        %v895 = vunpack.c.l.b16 %v822
        %v896 = vunpack.c.h.b16 %v822
        %v897 = vunpack.c.l.b16 %v823
        %v898 = vunpack.c.h.b16 %v823
        %v899 = vunpack.c.l.b16 %v824
        %v900 = vunpack.c.h.b16 %v824
        %v901 = vunpack.c.l.b16 %v825
        %v902 = vunpack.c.h.b16 %v825
        %v903 = vunpack.c.l.b16 %v826
        %v904 = vunpack.c.h.b16 %v826
        %v905 = vunpack.c.l.b16 %v827
        %v906 = vunpack.c.h.b16 %v827
        %v907 = vunpack.c.l.b16 %v828
        %v908 = vunpack.c.h.b16 %v828
        %v909 = vunpack.c.l.b16 %v829
        %v910 = vunpack.c.h.b16 %v829
        %v911 = vunpack.c.l.b16 %v830
        %v912 = vunpack.c.h.b16 %v830
        %v913 = vunpack.c.l.b16 %v831
        %v914 = vunpack.c.h.b16 %v831
        %v915 = vunpack.c.l.b16 %v832
        %v916 = vunpack.c.h.b16 %v832
        %v917 = vunpack.c.l.b16 %v833
        %v918 = vunpack.c.h.b16 %v833
        %v919 = vunpack.c.l.b16 %v834
        %v920 = vunpack.c.h.b16 %v834
        %v921 = vunpack.c.l.b16 %v835
        %v922 = vunpack.c.h.b16 %v835
        %v923 = vunpack.c.l.b16 %v836
        %v924 = vunpack.c.h.b16 %v836
        %v925 = vunpack.c.l.b16 %v837
        %v926 = vunpack.c.h.b16 %v837
        %v927 = vunpack.c.l.b16 %v838
        %v928 = vunpack.c.h.b16 %v838
        %v929 = vunpack.c.l.b16 %v839
        %v930 = vunpack.c.h.b16 %v839
        %v931 = vunpack.c.l.b16 %v840
        %v932 = vunpack.c.h.b16 %v840
        %v933 = vunpack.c.l.b16 %v841
        %v934 = vunpack.c.h.b16 %v841
        %v935 = vunpack.c.l.b16 %v842
        %v936 = vunpack.c.h.b16 %v842
        %v937 = vunpack.c.l.b16 %v843
        %v938 = vunpack.c.h.b16 %v843
        %v939 = vunpack.c.l.b16 %v844
        %v940 = vunpack.c.h.b16 %v844
        %v941 = vunpack.c.l.b16 %v845
        %v942 = vunpack.c.h.b16 %v845
        %v943 = vunpack.c.l.b16 %v846
        %v944 = vunpack.c.h.b16 %v846
        %v945 = vunpack.c.l.b16 %v847
        %v946 = vunpack.c.h.b16 %v847
        %v947 = vunpack.c.l.b16 %v848
        %v948 = vunpack.c.h.b16 %v848
        %v949 = vunpack.c.l.b16 %v849
        %v950 = vunpack.c.h.b16 %v849
        %v951 = vunpack.c.l.b16 %v850
        %v952 = vunpack.c.h.b16 %v850
        %v953 = vpack.c.b16 %v891, %v889
        %v954 = vpack.c.b16 %v892, %v890
        %v955 = vpack.c.b16 %v895, %v893
        %v956 = vpack.c.b16 %v896, %v894
        %v957 = vpack.c.b16 %v899, %v897
        %v958 = vpack.c.b16 %v900, %v898
        %v959 = vpack.c.b16 %v903, %v901
        %v960 = vpack.c.b16 %v904, %v902
        %v961 = vpack.c.b16 %v907, %v905
        %v962 = vpack.c.b16 %v908, %v906
        %v963 = vpack.c.b16 %v911, %v909
        %v964 = vpack.c.b16 %v912, %v910
        %v965 = vpack.c.b16 %v915, %v913
        %v966 = vpack.c.b16 %v916, %v914
        %v967 = vpack.c.b16 %v919, %v917
        %v968 = vpack.c.b16 %v920, %v918
        %v969 = vpack.c.b16 %v923, %v921
        %v970 = vpack.c.b16 %v924, %v922
        %v971 = vpack.c.b16 %v927, %v925
        %v972 = vpack.c.b16 %v928, %v926
        %v973 = vpack.c.b16 %v931, %v929
        %v974 = vpack.c.b16 %v932, %v930
        %v975 = vpack.c.b16 %v935, %v933
        %v976 = vpack.c.b16 %v936, %v934
        %v977 = vpack.c.b16 %v939, %v937
        %v978 = vpack.c.b16 %v940, %v938
        %v979 = vpack.c.b16 %v943, %v941
        %v980 = vpack.c.b16 %v944, %v942
        %v981 = vpack.c.b16 %v947, %v945
        %v982 = vpack.c.b16 %v948, %v946
        %v983 = vpack.c.b16 %v951, %v949
        %v984 = vpack.c.b16 %v952, %v950
        %1017 = vmatpush.bf16.msra.mxu0 %v967
        %1018 = vmatpush.bf16.msra.mxu0 %v965
        %1019 = vmatpush.bf16.msra.mxu0 %v963
        %1020 = vmatpush.bf16.msra.mxu0 %v961
        %1021 = vmatpush.bf16.msra.mxu0 %v959
        %1022 = vmatpush.bf16.msra.mxu0 %v957
        %1023 = vmatpush.bf16.msra.mxu0 %v955
        %1024 = vmatpush.bf16.msra.mxu0 %v953
        %1025 = vmatmul.bf16.gmra.mxu0 %v787
        %v1026 = vpop.f32.mrf.mxu0
        %v1027 = vadd.f32 %v853, %v1026
        %v1028 = vpop.f32.mrf.mxu0
        %v1029 = vadd.f32 %v853, %v1028
        %1030 = vmatmul.bf16.gmra.mxu0 %v789
        %v1031 = vpop.f32.mrf.mxu0
        %v1032 = vadd.f32 %v853, %v1031
        %v1033 = vpop.f32.mrf.mxu0
        %v1034 = vadd.f32 %v853, %v1033
        %1035 = vmatmul.bf16.gmra.mxu0 %v791
        %v1036 = vpop.f32.mrf.mxu0
        %v1037 = vadd.f32 %v853, %v1036
        %v1038 = vpop.f32.mrf.mxu0
        %v1039 = vadd.f32 %v853, %v1038
        %1040 = vmatmul.bf16.gmra.mxu0 %v793
        %v1041 = vpop.f32.mrf.mxu0
        %v1042 = vadd.f32 %v853, %v1041
        %v1043 = vpop.f32.mrf.mxu0
        %v1044 = vadd.f32 %v853, %v1043
        %1045 = vmatmul.bf16.gmra.mxu0 %v795
        %v1046 = vpop.f32.mrf.mxu0
        %v1047 = vadd.f32 %v853, %v1046
        %v1048 = vpop.f32.mrf.mxu0
        %v1049 = vadd.f32 %v853, %v1048
        %1050 = vmatmul.bf16.gmra.mxu0 %v797
        %v1051 = vpop.f32.mrf.mxu0
        %v1052 = vadd.f32 %v853, %v1051
        %v1053 = vpop.f32.mrf.mxu0
        %v1054 = vadd.f32 %v853, %v1053
        %1055 = vmatmul.bf16.gmra.mxu0 %v799
        %v1056 = vpop.f32.mrf.mxu0
        %v1057 = vadd.f32 %v853, %v1056
        %v1058 = vpop.f32.mrf.mxu0
        %v1059 = vadd.f32 %v853, %v1058
        %1060 = vmatmul.bf16.gmra.mxu0 %v801
        %v1061 = vpop.f32.mrf.mxu0
        %v1062 = vadd.f32 %v853, %v1061
        %v1063 = vpop.f32.mrf.mxu0
        %v1064 = vadd.f32 %v853, %v1063
        %1065 = vmatmul.bf16.gmra.mxu0 %v803
        %v1066 = vpop.f32.mrf.mxu0
        %v1067 = vadd.f32 %v853, %v1066
        %v1068 = vpop.f32.mrf.mxu0
        %v1069 = vadd.f32 %v853, %v1068
        %1070 = vmatmul.bf16.gmra.mxu0 %v805
        %v1071 = vpop.f32.mrf.mxu0
        %v1072 = vadd.f32 %v853, %v1071
        %v1073 = vpop.f32.mrf.mxu0
        %v1074 = vadd.f32 %v853, %v1073
        %1075 = vmatmul.bf16.gmra.mxu0 %v807
        %v1076 = vpop.f32.mrf.mxu0
        %v1077 = vadd.f32 %v853, %v1076
        %v1078 = vpop.f32.mrf.mxu0
        %v1079 = vadd.f32 %v853, %v1078
        %1080 = vmatmul.bf16.gmra.mxu0 %v809
        %v1081 = vpop.f32.mrf.mxu0
        %v1082 = vadd.f32 %v853, %v1081
        %v1083 = vpop.f32.mrf.mxu0
        %v1084 = vadd.f32 %v853, %v1083
        %1085 = vmatmul.bf16.gmra.mxu0 %v811
        %v1086 = vpop.f32.mrf.mxu0
        %v1087 = vadd.f32 %v853, %v1086
        %v1088 = vpop.f32.mrf.mxu0
        %v1089 = vadd.f32 %v853, %v1088
        %1090 = vmatmul.bf16.gmra.mxu0 %v813
        %v1091 = vpop.f32.mrf.mxu0
        %v1092 = vadd.f32 %v853, %v1091
        %v1093 = vpop.f32.mrf.mxu0
        %v1094 = vadd.f32 %v853, %v1093
        %1095 = vmatmul.bf16.gmra.mxu0 %v815
        %v1096 = vpop.f32.mrf.mxu0
        %v1097 = vadd.f32 %v853, %v1096
        %v1098 = vpop.f32.mrf.mxu0
        %v1099 = vadd.f32 %v853, %v1098
        %1100 = vmatmul.bf16.gmra.mxu0 %v817
        %v1101 = vpop.f32.mrf.mxu0
        %v1102 = vadd.f32 %v853, %v1101
        %v1103 = vpop.f32.mrf.mxu0
        %v1104 = vadd.f32 %v853, %v1103
        %1105 = vdwg.mxu0
        %1106 = vmatpush.bf16.msra.mxu0 %v983
        %1107 = vmatpush.bf16.msra.mxu0 %v981
        %1108 = vmatpush.bf16.msra.mxu0 %v979
        %1109 = vmatpush.bf16.msra.mxu0 %v977
        %1110 = vmatpush.bf16.msra.mxu0 %v975
        %1111 = vmatpush.bf16.msra.mxu0 %v973
        %1112 = vmatpush.bf16.msra.mxu0 %v971
        %1113 = vmatpush.bf16.msra.mxu0 %v969
        %1114 = vmatmul.bf16.gmra.mxu0 %v788
        %v1115 = vpop.f32.mrf.mxu0
        %v1116 = vadd.f32 %v1027, %v1115
        %v1117 = vpop.f32.mrf.mxu0
        %v1118 = vadd.f32 %v1029, %v1117
        %1119 = vmatmul.bf16.gmra.mxu0 %v790
        %v1120 = vpop.f32.mrf.mxu0
        %v1121 = vadd.f32 %v1032, %v1120
        %v1122 = vpop.f32.mrf.mxu0
        %v1123 = vadd.f32 %v1034, %v1122
        %1124 = vmatmul.bf16.gmra.mxu0 %v792
        %v1125 = vpop.f32.mrf.mxu0
        %v1126 = vadd.f32 %v1037, %v1125
        %v1127 = vpop.f32.mrf.mxu0
        %v1128 = vadd.f32 %v1039, %v1127
        %1129 = vmatmul.bf16.gmra.mxu0 %v794
        %v1130 = vpop.f32.mrf.mxu0
        %v1131 = vadd.f32 %v1042, %v1130
        %v1132 = vpop.f32.mrf.mxu0
        %v1133 = vadd.f32 %v1044, %v1132
        %1134 = vmatmul.bf16.gmra.mxu0 %v796
        %v1135 = vpop.f32.mrf.mxu0
        %v1136 = vadd.f32 %v1047, %v1135
        %v1137 = vpop.f32.mrf.mxu0
        %v1138 = vadd.f32 %v1049, %v1137
        %1139 = vmatmul.bf16.gmra.mxu0 %v798
        %v1140 = vpop.f32.mrf.mxu0
        %v1141 = vadd.f32 %v1052, %v1140
        %v1142 = vpop.f32.mrf.mxu0
        %v1143 = vadd.f32 %v1054, %v1142
        %1144 = vmatmul.bf16.gmra.mxu0 %v800
        %v1145 = vpop.f32.mrf.mxu0
        %v1146 = vadd.f32 %v1057, %v1145
        %v1147 = vpop.f32.mrf.mxu0
        %v1148 = vadd.f32 %v1059, %v1147
        %1149 = vmatmul.bf16.gmra.mxu0 %v802
        %v1150 = vpop.f32.mrf.mxu0
        %v1151 = vadd.f32 %v1062, %v1150
        %v1152 = vpop.f32.mrf.mxu0
        %v1153 = vadd.f32 %v1064, %v1152
        %1154 = vmatmul.bf16.gmra.mxu0 %v804
        %v1155 = vpop.f32.mrf.mxu0
        %v1156 = vadd.f32 %v1067, %v1155
        %v1157 = vpop.f32.mrf.mxu0
        %v1158 = vadd.f32 %v1069, %v1157
        %1159 = vmatmul.bf16.gmra.mxu0 %v806
        %v1160 = vpop.f32.mrf.mxu0
        %v1161 = vadd.f32 %v1072, %v1160
        %v1162 = vpop.f32.mrf.mxu0
        %v1163 = vadd.f32 %v1074, %v1162
        %1164 = vmatmul.bf16.gmra.mxu0 %v808
        %v1165 = vpop.f32.mrf.mxu0
        %v1166 = vadd.f32 %v1077, %v1165
        %v1167 = vpop.f32.mrf.mxu0
        %v1168 = vadd.f32 %v1079, %v1167
        %1169 = vmatmul.bf16.gmra.mxu0 %v810
        %v1170 = vpop.f32.mrf.mxu0
        %v1171 = vadd.f32 %v1082, %v1170
        %v1172 = vpop.f32.mrf.mxu0
        %v1173 = vadd.f32 %v1084, %v1172
        %1174 = vmatmul.bf16.gmra.mxu0 %v812
        %v1175 = vpop.f32.mrf.mxu0
        %v1176 = vadd.f32 %v1087, %v1175
        %v1177 = vpop.f32.mrf.mxu0
        %v1178 = vadd.f32 %v1089, %v1177
        %1179 = vmatmul.bf16.gmra.mxu0 %v814
        %v1180 = vpop.f32.mrf.mxu0
        %v1181 = vadd.f32 %v1092, %v1180
        %v1182 = vpop.f32.mrf.mxu0
        %v1183 = vadd.f32 %v1094, %v1182
        %1184 = vmatmul.bf16.gmra.mxu0 %v816
        %v1185 = vpop.f32.mrf.mxu0
        %v1186 = vadd.f32 %v1097, %v1185
        %v1187 = vpop.f32.mrf.mxu0
        %v1188 = vadd.f32 %v1099, %v1187
        %1189 = vmatmul.bf16.gmra.mxu0 %v818
        %v1190 = vpop.f32.mrf.mxu0
        %v1191 = vadd.f32 %v1102, %v1190
        %v1192 = vpop.f32.mrf.mxu0
        %v1193 = vadd.f32 %v1104, %v1192
        %1194 = vdwg.mxu0
        %1195 = vmatpush.bf16.msra.mxu0 %v968
        %1196 = vmatpush.bf16.msra.mxu0 %v966
        %1197 = vmatpush.bf16.msra.mxu0 %v964
        %1198 = vmatpush.bf16.msra.mxu0 %v962
        %1199 = vmatpush.bf16.msra.mxu0 %v960
        %1200 = vmatpush.bf16.msra.mxu0 %v958
        %1201 = vmatpush.bf16.msra.mxu0 %v956
        %1202 = vmatpush.bf16.msra.mxu0 %v954
        %1203 = vmatmul.bf16.gmra.mxu0 %v787
        %v1204 = vpop.f32.mrf.mxu0
        %v1205 = vadd.f32 %v854, %v1204
        %v1206 = vpop.f32.mrf.mxu0
        %v1207 = vadd.f32 %v854, %v1206
        %1208 = vmatmul.bf16.gmra.mxu0 %v789
        %v1209 = vpop.f32.mrf.mxu0
        %v1210 = vadd.f32 %v854, %v1209
        %v1211 = vpop.f32.mrf.mxu0
        %v1212 = vadd.f32 %v854, %v1211
        %1213 = vmatmul.bf16.gmra.mxu0 %v791
        %v1214 = vpop.f32.mrf.mxu0
        %v1215 = vadd.f32 %v854, %v1214
        %v1216 = vpop.f32.mrf.mxu0
        %v1217 = vadd.f32 %v854, %v1216
        %1218 = vmatmul.bf16.gmra.mxu0 %v793
        %v1219 = vpop.f32.mrf.mxu0
        %v1220 = vadd.f32 %v854, %v1219
        %v1221 = vpop.f32.mrf.mxu0
        %v1222 = vadd.f32 %v854, %v1221
        %1223 = vmatmul.bf16.gmra.mxu0 %v795
        %v1224 = vpop.f32.mrf.mxu0
        %v1225 = vadd.f32 %v854, %v1224
        %v1226 = vpop.f32.mrf.mxu0
        %v1227 = vadd.f32 %v854, %v1226
        %1228 = vmatmul.bf16.gmra.mxu0 %v797
        %v1229 = vpop.f32.mrf.mxu0
        %v1230 = vadd.f32 %v854, %v1229
        %v1231 = vpop.f32.mrf.mxu0
        %v1232 = vadd.f32 %v854, %v1231
        %1233 = vmatmul.bf16.gmra.mxu0 %v799
        %v1234 = vpop.f32.mrf.mxu0
        %v1235 = vadd.f32 %v854, %v1234
        %v1236 = vpop.f32.mrf.mxu0
        %v1237 = vadd.f32 %v854, %v1236
        %1238 = vmatmul.bf16.gmra.mxu0 %v801
        %v1239 = vpop.f32.mrf.mxu0
        %v1240 = vadd.f32 %v854, %v1239
        %v1241 = vpop.f32.mrf.mxu0
        %v1242 = vadd.f32 %v854, %v1241
        %1243 = vmatmul.bf16.gmra.mxu0 %v803
        %v1244 = vpop.f32.mrf.mxu0
        %v1245 = vadd.f32 %v854, %v1244
        %v1246 = vpop.f32.mrf.mxu0
        %v1247 = vadd.f32 %v854, %v1246
        %1248 = vmatmul.bf16.gmra.mxu0 %v805
        %v1249 = vpop.f32.mrf.mxu0
        %v1250 = vadd.f32 %v854, %v1249
        %v1251 = vpop.f32.mrf.mxu0
        %v1252 = vadd.f32 %v854, %v1251
        %1253 = vmatmul.bf16.gmra.mxu0 %v807
        %v1254 = vpop.f32.mrf.mxu0
        %v1255 = vadd.f32 %v854, %v1254
        %v1256 = vpop.f32.mrf.mxu0
        %v1257 = vadd.f32 %v854, %v1256
        %1258 = vmatmul.bf16.gmra.mxu0 %v809
        %v1259 = vpop.f32.mrf.mxu0
        %v1260 = vadd.f32 %v854, %v1259
        %v1261 = vpop.f32.mrf.mxu0
        %v1262 = vadd.f32 %v854, %v1261
        %1263 = vmatmul.bf16.gmra.mxu0 %v811
        %v1264 = vpop.f32.mrf.mxu0
        %v1265 = vadd.f32 %v854, %v1264
        %v1266 = vpop.f32.mrf.mxu0
        %v1267 = vadd.f32 %v854, %v1266
        %1268 = vmatmul.bf16.gmra.mxu0 %v813
        %v1269 = vpop.f32.mrf.mxu0
        %v1270 = vadd.f32 %v854, %v1269
        %v1271 = vpop.f32.mrf.mxu0
        %v1272 = vadd.f32 %v854, %v1271
        %1273 = vmatmul.bf16.gmra.mxu0 %v815
        %v1274 = vpop.f32.mrf.mxu0
        %v1275 = vadd.f32 %v854, %v1274
        %v1276 = vpop.f32.mrf.mxu0
        %v1277 = vadd.f32 %v854, %v1276
        %1278 = vmatmul.bf16.gmra.mxu0 %v817
        %v1279 = vpop.f32.mrf.mxu0
        %v1280 = vadd.f32 %v854, %v1279
        %v1281 = vpop.f32.mrf.mxu0
        %v1282 = vadd.f32 %v854, %v1281
        %1283 = vdwg.mxu0
        %1284 = vmatpush.bf16.msra.mxu0 %v984
        %1285 = vmatpush.bf16.msra.mxu0 %v982
        %1286 = vmatpush.bf16.msra.mxu0 %v980
        %1287 = vmatpush.bf16.msra.mxu0 %v978
        %1288 = vmatpush.bf16.msra.mxu0 %v976
        %1289 = vmatpush.bf16.msra.mxu0 %v974
        %1290 = vmatpush.bf16.msra.mxu0 %v972
        %1291 = vmatpush.bf16.msra.mxu0 %v970
        %1292 = vmatmul.bf16.gmra.mxu0 %v788
        %v1293 = vpop.f32.mrf.mxu0
        %v1294 = vadd.f32 %v1205, %v1293
        %v1295 = vpop.f32.mrf.mxu0
        %v1296 = vadd.f32 %v1207, %v1295
        %1297 = vmatmul.bf16.gmra.mxu0 %v790
        %v1298 = vpop.f32.mrf.mxu0
        %v1299 = vadd.f32 %v1210, %v1298
        %v1300 = vpop.f32.mrf.mxu0
        %v1301 = vadd.f32 %v1212, %v1300
        %1302 = vmatmul.bf16.gmra.mxu0 %v792
        %v1303 = vpop.f32.mrf.mxu0
        %v1304 = vadd.f32 %v1215, %v1303
        %v1305 = vpop.f32.mrf.mxu0
        %v1306 = vadd.f32 %v1217, %v1305
        %1307 = vmatmul.bf16.gmra.mxu0 %v794
        %v1308 = vpop.f32.mrf.mxu0
        %v1309 = vadd.f32 %v1220, %v1308
        %v1310 = vpop.f32.mrf.mxu0
        %v1311 = vadd.f32 %v1222, %v1310
        %1312 = vmatmul.bf16.gmra.mxu0 %v796
        %v1313 = vpop.f32.mrf.mxu0
        %v1314 = vadd.f32 %v1225, %v1313
        %v1315 = vpop.f32.mrf.mxu0
        %v1316 = vadd.f32 %v1227, %v1315
        %1317 = vmatmul.bf16.gmra.mxu0 %v798
        %v1318 = vpop.f32.mrf.mxu0
        %v1319 = vadd.f32 %v1230, %v1318
        %v1320 = vpop.f32.mrf.mxu0
        %v1321 = vadd.f32 %v1232, %v1320
        %1322 = vmatmul.bf16.gmra.mxu0 %v800
        %v1323 = vpop.f32.mrf.mxu0
        %v1324 = vadd.f32 %v1235, %v1323
        %v1325 = vpop.f32.mrf.mxu0
        %v1326 = vadd.f32 %v1237, %v1325
        %1327 = vmatmul.bf16.gmra.mxu0 %v802
        %v1328 = vpop.f32.mrf.mxu0
        %v1329 = vadd.f32 %v1240, %v1328
        %v1330 = vpop.f32.mrf.mxu0
        %v1331 = vadd.f32 %v1242, %v1330
        %1332 = vmatmul.bf16.gmra.mxu0 %v804
        %v1333 = vpop.f32.mrf.mxu0
        %v1334 = vadd.f32 %v1245, %v1333
        %v1335 = vpop.f32.mrf.mxu0
        %v1336 = vadd.f32 %v1247, %v1335
        %1337 = vmatmul.bf16.gmra.mxu0 %v806
        %v1338 = vpop.f32.mrf.mxu0
        %v1339 = vadd.f32 %v1250, %v1338
        %v1340 = vpop.f32.mrf.mxu0
        %v1341 = vadd.f32 %v1252, %v1340
        %1342 = vmatmul.bf16.gmra.mxu0 %v808
        %v1343 = vpop.f32.mrf.mxu0
        %v1344 = vadd.f32 %v1255, %v1343
        %v1345 = vpop.f32.mrf.mxu0
        %v1346 = vadd.f32 %v1257, %v1345
        %1347 = vmatmul.bf16.gmra.mxu0 %v810
        %v1348 = vpop.f32.mrf.mxu0
        %v1349 = vadd.f32 %v1260, %v1348
        %v1350 = vpop.f32.mrf.mxu0
        %v1351 = vadd.f32 %v1262, %v1350
        %1352 = vmatmul.bf16.gmra.mxu0 %v812
        %v1353 = vpop.f32.mrf.mxu0
        %v1354 = vadd.f32 %v1265, %v1353
        %v1355 = vpop.f32.mrf.mxu0
        %v1356 = vadd.f32 %v1267, %v1355
        %1357 = vmatmul.bf16.gmra.mxu0 %v814
        %v1358 = vpop.f32.mrf.mxu0
        %v1359 = vadd.f32 %v1270, %v1358
        %v1360 = vpop.f32.mrf.mxu0
        %v1361 = vadd.f32 %v1272, %v1360
        %1362 = vmatmul.bf16.gmra.mxu0 %v816
        %v1363 = vpop.f32.mrf.mxu0
        %v1364 = vadd.f32 %v1275, %v1363
        %v1365 = vpop.f32.mrf.mxu0
        %v1366 = vadd.f32 %v1277, %v1365
        %1367 = vmatmul.bf16.gmra.mxu0 %v818
        %v1368 = vpop.f32.mrf.mxu0
        %v1369 = vadd.f32 %v1280, %v1368
        %v1370 = vpop.f32.mrf.mxu0
        %v1371 = vadd.f32 %v1282, %v1370
        %1372 = vdwg.mxu0
        %v1373 = vmax.f32 %v1116, 0.0
        %v1374 = vmax.f32 %v1294, 0.0
        %v1375 = vmax.f32 %v1118, 0.0
        %v1376 = vmax.f32 %v1296, 0.0
        %v1377 = vmax.f32 %v1121, 0.0
        %v1378 = vmax.f32 %v1299, 0.0
        %v1379 = vmax.f32 %v1123, 0.0
        %v1380 = vmax.f32 %v1301, 0.0
        %v1381 = vmax.f32 %v1126, 0.0
        %v1382 = vmax.f32 %v1304, 0.0
        %v1383 = vmax.f32 %v1128, 0.0
        %v1384 = vmax.f32 %v1306, 0.0
        %v1385 = vmax.f32 %v1131, 0.0
        %v1386 = vmax.f32 %v1309, 0.0
        %v1387 = vmax.f32 %v1133, 0.0
        %v1388 = vmax.f32 %v1311, 0.0
        %v1389 = vmax.f32 %v1136, 0.0
        %v1390 = vmax.f32 %v1314, 0.0
        %v1391 = vmax.f32 %v1138, 0.0
        %v1392 = vmax.f32 %v1316, 0.0
        %v1393 = vmax.f32 %v1141, 0.0
        %v1394 = vmax.f32 %v1319, 0.0
        %v1395 = vmax.f32 %v1143, 0.0
        %v1396 = vmax.f32 %v1321, 0.0
        %v1397 = vmax.f32 %v1146, 0.0
        %v1398 = vmax.f32 %v1324, 0.0
        %v1399 = vmax.f32 %v1148, 0.0
        %v1400 = vmax.f32 %v1326, 0.0
        %v1401 = vmax.f32 %v1151, 0.0
        %v1402 = vmax.f32 %v1329, 0.0
        %v1403 = vmax.f32 %v1153, 0.0
        %v1404 = vmax.f32 %v1331, 0.0
        %v1405 = vmax.f32 %v1156, 0.0
        %v1406 = vmax.f32 %v1334, 0.0
        %v1407 = vmax.f32 %v1158, 0.0
        %v1408 = vmax.f32 %v1336, 0.0
        %v1409 = vmax.f32 %v1161, 0.0
        %v1410 = vmax.f32 %v1339, 0.0
        %v1411 = vmax.f32 %v1163, 0.0
        %v1412 = vmax.f32 %v1341, 0.0
        %v1413 = vmax.f32 %v1166, 0.0
        %v1414 = vmax.f32 %v1344, 0.0
        %v1415 = vmax.f32 %v1168, 0.0
        %v1416 = vmax.f32 %v1346, 0.0
        %v1417 = vmax.f32 %v1171, 0.0
        %v1418 = vmax.f32 %v1349, 0.0
        %v1419 = vmax.f32 %v1173, 0.0
        %v1420 = vmax.f32 %v1351, 0.0
        %v1421 = vmax.f32 %v1176, 0.0
        %v1422 = vmax.f32 %v1354, 0.0
        %v1423 = vmax.f32 %v1178, 0.0
        %v1424 = vmax.f32 %v1356, 0.0
        %v1425 = vmax.f32 %v1181, 0.0
        %v1426 = vmax.f32 %v1359, 0.0
        %v1427 = vmax.f32 %v1183, 0.0
        %v1428 = vmax.f32 %v1361, 0.0
        %v1429 = vmax.f32 %v1186, 0.0
        %v1430 = vmax.f32 %v1364, 0.0
        %v1431 = vmax.f32 %v1188, 0.0
        %v1432 = vmax.f32 %v1366, 0.0
        %v1433 = vmax.f32 %v1191, 0.0
        %v1434 = vmax.f32 %v1369, 0.0
        %v1435 = vmax.f32 %v1193, 0.0
        %v1436 = vmax.f32 %v1371, 0.0
        %v1437 = vpack.c.bf16 %v1375, %v1373
        %v1438 = vpack.c.bf16 %v1376, %v1374
        %v1439 = vpack.c.bf16 %v1379, %v1377
        %v1440 = vpack.c.bf16 %v1380, %v1378
        %v1441 = vpack.c.bf16 %v1383, %v1381
        %v1442 = vpack.c.bf16 %v1384, %v1382
        %v1443 = vpack.c.bf16 %v1387, %v1385
        %v1444 = vpack.c.bf16 %v1388, %v1386
        %v1445 = vpack.c.bf16 %v1391, %v1389
        %v1446 = vpack.c.bf16 %v1392, %v1390
        %v1447 = vpack.c.bf16 %v1395, %v1393
        %v1448 = vpack.c.bf16 %v1396, %v1394
        %v1449 = vpack.c.bf16 %v1399, %v1397
        %v1450 = vpack.c.bf16 %v1400, %v1398
        %v1451 = vpack.c.bf16 %v1403, %v1401
        %v1452 = vpack.c.bf16 %v1404, %v1402
        %v1453 = vpack.c.bf16 %v1407, %v1405
        %v1454 = vpack.c.bf16 %v1408, %v1406
        %v1455 = vpack.c.bf16 %v1411, %v1409
        %v1456 = vpack.c.bf16 %v1412, %v1410
        %v1457 = vpack.c.bf16 %v1415, %v1413
        %v1458 = vpack.c.bf16 %v1416, %v1414
        %v1459 = vpack.c.bf16 %v1419, %v1417
        %v1460 = vpack.c.bf16 %v1420, %v1418
        %v1461 = vpack.c.bf16 %v1423, %v1421
        %v1462 = vpack.c.bf16 %v1424, %v1422
        %v1463 = vpack.c.bf16 %v1427, %v1425
        %v1464 = vpack.c.bf16 %v1428, %v1426
        %v1465 = vpack.c.bf16 %v1431, %v1429
        %v1466 = vpack.c.bf16 %v1432, %v1430
        %v1467 = vpack.c.bf16 %v1435, %v1433
        %v1468 = vpack.c.bf16 %v1436, %v1434
        %v1469 = vld [vmem:[#allocation2] sm:$0xff]
        %v1470 = vld [vmem:[#allocation2 + $0x8] sm:$0xff]
        %v1471 = vld [vmem:[#allocation2 + $0x10] sm:$0xff]
        %v1472 = vld [vmem:[#allocation2 + $0x18] sm:$0xff]
        %v1473 = vld [vmem:[#allocation2 + $0x20] sm:$0xff]
        %v1474 = vld [vmem:[#allocation2 + $0x28] sm:$0xff]
        %v1475 = vld [vmem:[#allocation2 + $0x30] sm:$0xff]
        %v1476 = vld [vmem:[#allocation2 + $0x38] sm:$0xff]
        %v1477 = vld [vmem:[#allocation2 + $0x40] sm:$0xff]
        %v1478 = vld [vmem:[#allocation2 + $0x48] sm:$0xff]
        %v1479 = vld [vmem:[#allocation2 + $0x50] sm:$0xff]
        %v1480 = vld [vmem:[#allocation2 + $0x58] sm:$0xff]
        %v1481 = vld [vmem:[#allocation2 + $0x60] sm:$0xff]
        %v1482 = vld [vmem:[#allocation2 + $0x68] sm:$0xff]
        %v1483 = vld [vmem:[#allocation2 + $0x70] sm:$0xff]
        %v1484 = vld [vmem:[#allocation2 + $0x78] sm:$0xff]
        %v1485 = vld [vmem:[#allocation2 + $0x80] sm:$0xff]
        %v1486 = vld [vmem:[#allocation2 + $0x88] sm:$0xff]
        %v1487 = vld [vmem:[#allocation2 + $0x90] sm:$0xff]
        %v1488 = vld [vmem:[#allocation2 + $0x98] sm:$0xff]
        %v1489 = vld [vmem:[#allocation2 + $0xa0] sm:$0xff]
        %v1490 = vld [vmem:[#allocation2 + $0xa8] sm:$0xff]
        %v1491 = vld [vmem:[#allocation2 + $0xb0] sm:$0xff]
        %v1492 = vld [vmem:[#allocation2 + $0xb8] sm:$0xff]
        %v1493 = vld [vmem:[#allocation2 + $0xc0] sm:$0xff]
        %v1494 = vld [vmem:[#allocation2 + $0xc8] sm:$0xff]
        %v1495 = vld [vmem:[#allocation2 + $0xd0] sm:$0xff]
        %v1496 = vld [vmem:[#allocation2 + $0xd8] sm:$0xff]
        %v1497 = vld [vmem:[#allocation2 + $0xe0] sm:$0xff]
        %v1498 = vld [vmem:[#allocation2 + $0xe8] sm:$0xff]
        %v1499 = vld [vmem:[#allocation2 + $0xf0] sm:$0xff]
        %v1500 = vld [vmem:[#allocation2 + $0xf8] sm:$0xff]
        %v1501 = vld [vmem:[%s6] sm:$0x3]
        %v1503 = vperm.slane %v1501, 0
        %v1504 = vperm.slane %v1501, 1
        %v1539 = vunpack.c.l.b16 %v1469
        %v1540 = vunpack.c.h.b16 %v1469
        %v1541 = vunpack.c.l.b16 %v1470
        %v1542 = vunpack.c.h.b16 %v1470
        %v1543 = vunpack.c.l.b16 %v1471
        %v1544 = vunpack.c.h.b16 %v1471
        %v1545 = vunpack.c.l.b16 %v1472
        %v1546 = vunpack.c.h.b16 %v1472
        %v1547 = vunpack.c.l.b16 %v1473
        %v1548 = vunpack.c.h.b16 %v1473
        %v1549 = vunpack.c.l.b16 %v1474
        %v1550 = vunpack.c.h.b16 %v1474
        %v1551 = vunpack.c.l.b16 %v1475
        %v1552 = vunpack.c.h.b16 %v1475
        %v1553 = vunpack.c.l.b16 %v1476
        %v1554 = vunpack.c.h.b16 %v1476
        %v1555 = vunpack.c.l.b16 %v1477
        %v1556 = vunpack.c.h.b16 %v1477
        %v1557 = vunpack.c.l.b16 %v1478
        %v1558 = vunpack.c.h.b16 %v1478
        %v1559 = vunpack.c.l.b16 %v1479
        %v1560 = vunpack.c.h.b16 %v1479
        %v1561 = vunpack.c.l.b16 %v1480
        %v1562 = vunpack.c.h.b16 %v1480
        %v1563 = vunpack.c.l.b16 %v1481
        %v1564 = vunpack.c.h.b16 %v1481
        %v1565 = vunpack.c.l.b16 %v1482
        %v1566 = vunpack.c.h.b16 %v1482
        %v1567 = vunpack.c.l.b16 %v1483
        %v1568 = vunpack.c.h.b16 %v1483
        %v1569 = vunpack.c.l.b16 %v1484
        %v1570 = vunpack.c.h.b16 %v1484
        %v1571 = vunpack.c.l.b16 %v1485
        %v1572 = vunpack.c.h.b16 %v1485
        %v1573 = vunpack.c.l.b16 %v1486
        %v1574 = vunpack.c.h.b16 %v1486
        %v1575 = vunpack.c.l.b16 %v1487
        %v1576 = vunpack.c.h.b16 %v1487
        %v1577 = vunpack.c.l.b16 %v1488
        %v1578 = vunpack.c.h.b16 %v1488
        %v1579 = vunpack.c.l.b16 %v1489
        %v1580 = vunpack.c.h.b16 %v1489
        %v1581 = vunpack.c.l.b16 %v1490
        %v1582 = vunpack.c.h.b16 %v1490
        %v1583 = vunpack.c.l.b16 %v1491
        %v1584 = vunpack.c.h.b16 %v1491
        %v1585 = vunpack.c.l.b16 %v1492
        %v1586 = vunpack.c.h.b16 %v1492
        %v1587 = vunpack.c.l.b16 %v1493
        %v1588 = vunpack.c.h.b16 %v1493
        %v1589 = vunpack.c.l.b16 %v1494
        %v1590 = vunpack.c.h.b16 %v1494
        %v1591 = vunpack.c.l.b16 %v1495
        %v1592 = vunpack.c.h.b16 %v1495
        %v1593 = vunpack.c.l.b16 %v1496
        %v1594 = vunpack.c.h.b16 %v1496
        %v1595 = vunpack.c.l.b16 %v1497
        %v1596 = vunpack.c.h.b16 %v1497
        %v1597 = vunpack.c.l.b16 %v1498
        %v1598 = vunpack.c.h.b16 %v1498
        %v1599 = vunpack.c.l.b16 %v1499
        %v1600 = vunpack.c.h.b16 %v1499
        %v1601 = vunpack.c.l.b16 %v1500
        %v1602 = vunpack.c.h.b16 %v1500
        %v1603 = vpack.c.b16 %v1541, %v1539
        %v1604 = vpack.c.b16 %v1542, %v1540
        %v1605 = vpack.c.b16 %v1545, %v1543
        %v1606 = vpack.c.b16 %v1546, %v1544
        %v1607 = vpack.c.b16 %v1549, %v1547
        %v1608 = vpack.c.b16 %v1550, %v1548
        %v1609 = vpack.c.b16 %v1553, %v1551
        %v1610 = vpack.c.b16 %v1554, %v1552
        %v1611 = vpack.c.b16 %v1557, %v1555
        %v1612 = vpack.c.b16 %v1558, %v1556
        %v1613 = vpack.c.b16 %v1561, %v1559
        %v1614 = vpack.c.b16 %v1562, %v1560
        %v1615 = vpack.c.b16 %v1565, %v1563
        %v1616 = vpack.c.b16 %v1566, %v1564
        %v1617 = vpack.c.b16 %v1569, %v1567
        %v1618 = vpack.c.b16 %v1570, %v1568
        %v1619 = vpack.c.b16 %v1573, %v1571
        %v1620 = vpack.c.b16 %v1574, %v1572
        %v1621 = vpack.c.b16 %v1577, %v1575
        %v1622 = vpack.c.b16 %v1578, %v1576
        %v1623 = vpack.c.b16 %v1581, %v1579
        %v1624 = vpack.c.b16 %v1582, %v1580
        %v1625 = vpack.c.b16 %v1585, %v1583
        %v1626 = vpack.c.b16 %v1586, %v1584
        %v1627 = vpack.c.b16 %v1589, %v1587
        %v1628 = vpack.c.b16 %v1590, %v1588
        %v1629 = vpack.c.b16 %v1593, %v1591
        %v1630 = vpack.c.b16 %v1594, %v1592
        %v1631 = vpack.c.b16 %v1597, %v1595
        %v1632 = vpack.c.b16 %v1598, %v1596
        %v1633 = vpack.c.b16 %v1601, %v1599
        %v1634 = vpack.c.b16 %v1602, %v1600
        %1667 = vmatpush.bf16.msra.mxu0 %v1617
        %1668 = vmatpush.bf16.msra.mxu0 %v1615
        %1669 = vmatpush.bf16.msra.mxu0 %v1613
        %1670 = vmatpush.bf16.msra.mxu0 %v1611
        %1671 = vmatpush.bf16.msra.mxu0 %v1609
        %1672 = vmatpush.bf16.msra.mxu0 %v1607
        %1673 = vmatpush.bf16.msra.mxu0 %v1605
        %1674 = vmatpush.bf16.msra.mxu0 %v1603
        %1675 = vmatmul.bf16.gmra.mxu0 %v1437
        %v1676 = vpop.f32.mrf.mxu0
        %v1677 = vadd.f32 %v1503, %v1676
        %v1678 = vpop.f32.mrf.mxu0
        %v1679 = vadd.f32 %v1503, %v1678
        %1680 = vmatmul.bf16.gmra.mxu0 %v1439
        %v1681 = vpop.f32.mrf.mxu0
        %v1682 = vadd.f32 %v1503, %v1681
        %v1683 = vpop.f32.mrf.mxu0
        %v1684 = vadd.f32 %v1503, %v1683
        %1685 = vmatmul.bf16.gmra.mxu0 %v1441
        %v1686 = vpop.f32.mrf.mxu0
        %v1687 = vadd.f32 %v1503, %v1686
        %v1688 = vpop.f32.mrf.mxu0
        %v1689 = vadd.f32 %v1503, %v1688
        %1690 = vmatmul.bf16.gmra.mxu0 %v1443
        %v1691 = vpop.f32.mrf.mxu0
        %v1692 = vadd.f32 %v1503, %v1691
        %v1693 = vpop.f32.mrf.mxu0
        %v1694 = vadd.f32 %v1503, %v1693
        %1695 = vmatmul.bf16.gmra.mxu0 %v1445
        %v1696 = vpop.f32.mrf.mxu0
        %v1697 = vadd.f32 %v1503, %v1696
        %v1698 = vpop.f32.mrf.mxu0
        %v1699 = vadd.f32 %v1503, %v1698
        %1700 = vmatmul.bf16.gmra.mxu0 %v1447
        %v1701 = vpop.f32.mrf.mxu0
        %v1702 = vadd.f32 %v1503, %v1701
        %v1703 = vpop.f32.mrf.mxu0
        %v1704 = vadd.f32 %v1503, %v1703
        %1705 = vmatmul.bf16.gmra.mxu0 %v1449
        %v1706 = vpop.f32.mrf.mxu0
        %v1707 = vadd.f32 %v1503, %v1706
        %v1708 = vpop.f32.mrf.mxu0
        %v1709 = vadd.f32 %v1503, %v1708
        %1710 = vmatmul.bf16.gmra.mxu0 %v1451
        %v1711 = vpop.f32.mrf.mxu0
        %v1712 = vadd.f32 %v1503, %v1711
        %v1713 = vpop.f32.mrf.mxu0
        %v1714 = vadd.f32 %v1503, %v1713
        %1715 = vmatmul.bf16.gmra.mxu0 %v1453
        %v1716 = vpop.f32.mrf.mxu0
        %v1717 = vadd.f32 %v1503, %v1716
        %v1718 = vpop.f32.mrf.mxu0
        %v1719 = vadd.f32 %v1503, %v1718
        %1720 = vmatmul.bf16.gmra.mxu0 %v1455
        %v1721 = vpop.f32.mrf.mxu0
        %v1722 = vadd.f32 %v1503, %v1721
        %v1723 = vpop.f32.mrf.mxu0
        %v1724 = vadd.f32 %v1503, %v1723
        %1725 = vmatmul.bf16.gmra.mxu0 %v1457
        %v1726 = vpop.f32.mrf.mxu0
        %v1727 = vadd.f32 %v1503, %v1726
        %v1728 = vpop.f32.mrf.mxu0
        %v1729 = vadd.f32 %v1503, %v1728
        %1730 = vmatmul.bf16.gmra.mxu0 %v1459
        %v1731 = vpop.f32.mrf.mxu0
        %v1732 = vadd.f32 %v1503, %v1731
        %v1733 = vpop.f32.mrf.mxu0
        %v1734 = vadd.f32 %v1503, %v1733
        %1735 = vmatmul.bf16.gmra.mxu0 %v1461
        %v1736 = vpop.f32.mrf.mxu0
        %v1737 = vadd.f32 %v1503, %v1736
        %v1738 = vpop.f32.mrf.mxu0
        %v1739 = vadd.f32 %v1503, %v1738
        %1740 = vmatmul.bf16.gmra.mxu0 %v1463
        %v1741 = vpop.f32.mrf.mxu0
        %v1742 = vadd.f32 %v1503, %v1741
        %v1743 = vpop.f32.mrf.mxu0
        %v1744 = vadd.f32 %v1503, %v1743
        %1745 = vmatmul.bf16.gmra.mxu0 %v1465
        %v1746 = vpop.f32.mrf.mxu0
        %v1747 = vadd.f32 %v1503, %v1746
        %v1748 = vpop.f32.mrf.mxu0
        %v1749 = vadd.f32 %v1503, %v1748
        %1750 = vmatmul.bf16.gmra.mxu0 %v1467
        %v1751 = vpop.f32.mrf.mxu0
        %v1752 = vadd.f32 %v1503, %v1751
        %v1753 = vpop.f32.mrf.mxu0
        %v1754 = vadd.f32 %v1503, %v1753
        %1755 = vdwg.mxu0
        %1756 = vmatpush.bf16.msra.mxu0 %v1633
        %1757 = vmatpush.bf16.msra.mxu0 %v1631
        %1758 = vmatpush.bf16.msra.mxu0 %v1629
        %1759 = vmatpush.bf16.msra.mxu0 %v1627
        %1760 = vmatpush.bf16.msra.mxu0 %v1625
        %1761 = vmatpush.bf16.msra.mxu0 %v1623
        %1762 = vmatpush.bf16.msra.mxu0 %v1621
        %1763 = vmatpush.bf16.msra.mxu0 %v1619
        %1764 = vmatmul.bf16.gmra.mxu0 %v1438
        %v1765 = vpop.f32.mrf.mxu0
        %v1766 = vadd.f32 %v1677, %v1765
        %v1767 = vpop.f32.mrf.mxu0
        %v1768 = vadd.f32 %v1679, %v1767
        %1769 = vmatmul.bf16.gmra.mxu0 %v1440
        %v1770 = vpop.f32.mrf.mxu0
        %v1771 = vadd.f32 %v1682, %v1770
        %v1772 = vpop.f32.mrf.mxu0
        %v1773 = vadd.f32 %v1684, %v1772
        %1774 = vmatmul.bf16.gmra.mxu0 %v1442
        %v1775 = vpop.f32.mrf.mxu0
        %v1776 = vadd.f32 %v1687, %v1775
        %v1777 = vpop.f32.mrf.mxu0
        %v1778 = vadd.f32 %v1689, %v1777
        %1779 = vmatmul.bf16.gmra.mxu0 %v1444
        %v1780 = vpop.f32.mrf.mxu0
        %v1781 = vadd.f32 %v1692, %v1780
        %v1782 = vpop.f32.mrf.mxu0
        %v1783 = vadd.f32 %v1694, %v1782
        %1784 = vmatmul.bf16.gmra.mxu0 %v1446
        %v1785 = vpop.f32.mrf.mxu0
        %v1786 = vadd.f32 %v1697, %v1785
        %v1787 = vpop.f32.mrf.mxu0
        %v1788 = vadd.f32 %v1699, %v1787
        %1789 = vmatmul.bf16.gmra.mxu0 %v1448
        %v1790 = vpop.f32.mrf.mxu0
        %v1791 = vadd.f32 %v1702, %v1790
        %v1792 = vpop.f32.mrf.mxu0
        %v1793 = vadd.f32 %v1704, %v1792
        %1794 = vmatmul.bf16.gmra.mxu0 %v1450
        %v1795 = vpop.f32.mrf.mxu0
        %v1796 = vadd.f32 %v1707, %v1795
        %v1797 = vpop.f32.mrf.mxu0
        %v1798 = vadd.f32 %v1709, %v1797
        %1799 = vmatmul.bf16.gmra.mxu0 %v1452
        %v1800 = vpop.f32.mrf.mxu0
        %v1801 = vadd.f32 %v1712, %v1800
        %v1802 = vpop.f32.mrf.mxu0
        %v1803 = vadd.f32 %v1714, %v1802
        %1804 = vmatmul.bf16.gmra.mxu0 %v1454
        %v1805 = vpop.f32.mrf.mxu0
        %v1806 = vadd.f32 %v1717, %v1805
        %v1807 = vpop.f32.mrf.mxu0
        %v1808 = vadd.f32 %v1719, %v1807
        %1809 = vmatmul.bf16.gmra.mxu0 %v1456
        %v1810 = vpop.f32.mrf.mxu0
        %v1811 = vadd.f32 %v1722, %v1810
        %v1812 = vpop.f32.mrf.mxu0
        %v1813 = vadd.f32 %v1724, %v1812
        %1814 = vmatmul.bf16.gmra.mxu0 %v1458
        %v1815 = vpop.f32.mrf.mxu0
        %v1816 = vadd.f32 %v1727, %v1815
        %v1817 = vpop.f32.mrf.mxu0
        %v1818 = vadd.f32 %v1729, %v1817
        %1819 = vmatmul.bf16.gmra.mxu0 %v1460
        %v1820 = vpop.f32.mrf.mxu0
        %v1821 = vadd.f32 %v1732, %v1820
        %v1822 = vpop.f32.mrf.mxu0
        %v1823 = vadd.f32 %v1734, %v1822
        %1824 = vmatmul.bf16.gmra.mxu0 %v1462
        %v1825 = vpop.f32.mrf.mxu0
        %v1826 = vadd.f32 %v1737, %v1825
        %v1827 = vpop.f32.mrf.mxu0
        %v1828 = vadd.f32 %v1739, %v1827
        %1829 = vmatmul.bf16.gmra.mxu0 %v1464
        %v1830 = vpop.f32.mrf.mxu0
        %v1831 = vadd.f32 %v1742, %v1830
        %v1832 = vpop.f32.mrf.mxu0
        %v1833 = vadd.f32 %v1744, %v1832
        %1834 = vmatmul.bf16.gmra.mxu0 %v1466
        %v1835 = vpop.f32.mrf.mxu0
        %v1836 = vadd.f32 %v1747, %v1835
        %v1837 = vpop.f32.mrf.mxu0
        %v1838 = vadd.f32 %v1749, %v1837
        %1839 = vmatmul.bf16.gmra.mxu0 %v1468
        %v1840 = vpop.f32.mrf.mxu0
        %v1841 = vadd.f32 %v1752, %v1840
        %v1842 = vpop.f32.mrf.mxu0
        %v1843 = vadd.f32 %v1754, %v1842
        %1844 = vdwg.mxu0
        %1845 = vmatpush.bf16.msra.mxu0 %v1618
        %1846 = vmatpush.bf16.msra.mxu0 %v1616
        %1847 = vmatpush.bf16.msra.mxu0 %v1614
        %1848 = vmatpush.bf16.msra.mxu0 %v1612
        %1849 = vmatpush.bf16.msra.mxu0 %v1610
        %1850 = vmatpush.bf16.msra.mxu0 %v1608
        %1851 = vmatpush.bf16.msra.mxu0 %v1606
        %1852 = vmatpush.bf16.msra.mxu0 %v1604
        %1853 = vmatmul.bf16.gmra.mxu0 %v1437
        %v1854 = vpop.f32.mrf.mxu0
        %v1855 = vadd.f32 %v1504, %v1854
        %v1856 = vpop.f32.mrf.mxu0
        %v1857 = vadd.f32 %v1504, %v1856
        %1858 = vmatmul.bf16.gmra.mxu0 %v1439
        %v1859 = vpop.f32.mrf.mxu0
        %v1860 = vadd.f32 %v1504, %v1859
        %v1861 = vpop.f32.mrf.mxu0
        %v1862 = vadd.f32 %v1504, %v1861
        %1863 = vmatmul.bf16.gmra.mxu0 %v1441
        %v1864 = vpop.f32.mrf.mxu0
        %v1865 = vadd.f32 %v1504, %v1864
        %v1866 = vpop.f32.mrf.mxu0
        %v1867 = vadd.f32 %v1504, %v1866
        %1868 = vmatmul.bf16.gmra.mxu0 %v1443
        %v1869 = vpop.f32.mrf.mxu0
        %v1870 = vadd.f32 %v1504, %v1869
        %v1871 = vpop.f32.mrf.mxu0
        %v1872 = vadd.f32 %v1504, %v1871
        %1873 = vmatmul.bf16.gmra.mxu0 %v1445
        %v1874 = vpop.f32.mrf.mxu0
        %v1875 = vadd.f32 %v1504, %v1874
        %v1876 = vpop.f32.mrf.mxu0
        %v1877 = vadd.f32 %v1504, %v1876
        %1878 = vmatmul.bf16.gmra.mxu0 %v1447
        %v1879 = vpop.f32.mrf.mxu0
        %v1880 = vadd.f32 %v1504, %v1879
        %v1881 = vpop.f32.mrf.mxu0
        %v1882 = vadd.f32 %v1504, %v1881
        %1883 = vmatmul.bf16.gmra.mxu0 %v1449
        %v1884 = vpop.f32.mrf.mxu0
        %v1885 = vadd.f32 %v1504, %v1884
        %v1886 = vpop.f32.mrf.mxu0
        %v1887 = vadd.f32 %v1504, %v1886
        %1888 = vmatmul.bf16.gmra.mxu0 %v1451
        %v1889 = vpop.f32.mrf.mxu0
        %v1890 = vadd.f32 %v1504, %v1889
        %v1891 = vpop.f32.mrf.mxu0
        %v1892 = vadd.f32 %v1504, %v1891
        %1893 = vmatmul.bf16.gmra.mxu0 %v1453
        %v1894 = vpop.f32.mrf.mxu0
        %v1895 = vadd.f32 %v1504, %v1894
        %v1896 = vpop.f32.mrf.mxu0
        %v1897 = vadd.f32 %v1504, %v1896
        %1898 = vmatmul.bf16.gmra.mxu0 %v1455
        %v1899 = vpop.f32.mrf.mxu0
        %v1900 = vadd.f32 %v1504, %v1899
        %v1901 = vpop.f32.mrf.mxu0
        %v1902 = vadd.f32 %v1504, %v1901
        %1903 = vmatmul.bf16.gmra.mxu0 %v1457
        %v1904 = vpop.f32.mrf.mxu0
        %v1905 = vadd.f32 %v1504, %v1904
        %v1906 = vpop.f32.mrf.mxu0
        %v1907 = vadd.f32 %v1504, %v1906
        %1908 = vmatmul.bf16.gmra.mxu0 %v1459
        %v1909 = vpop.f32.mrf.mxu0
        %v1910 = vadd.f32 %v1504, %v1909
        %v1911 = vpop.f32.mrf.mxu0
        %v1912 = vadd.f32 %v1504, %v1911
        %1913 = vmatmul.bf16.gmra.mxu0 %v1461
        %v1914 = vpop.f32.mrf.mxu0
        %v1915 = vadd.f32 %v1504, %v1914
        %v1916 = vpop.f32.mrf.mxu0
        %v1917 = vadd.f32 %v1504, %v1916
        %1918 = vmatmul.bf16.gmra.mxu0 %v1463
        %v1919 = vpop.f32.mrf.mxu0
        %v1920 = vadd.f32 %v1504, %v1919
        %v1921 = vpop.f32.mrf.mxu0
        %v1922 = vadd.f32 %v1504, %v1921
        %1923 = vmatmul.bf16.gmra.mxu0 %v1465
        %v1924 = vpop.f32.mrf.mxu0
        %v1925 = vadd.f32 %v1504, %v1924
        %v1926 = vpop.f32.mrf.mxu0
        %v1927 = vadd.f32 %v1504, %v1926
        %1928 = vmatmul.bf16.gmra.mxu0 %v1467
        %v1929 = vpop.f32.mrf.mxu0
        %v1930 = vadd.f32 %v1504, %v1929
        %v1931 = vpop.f32.mrf.mxu0
        %v1932 = vadd.f32 %v1504, %v1931
        %1933 = vdwg.mxu0
        %1934 = vmatpush.bf16.msra.mxu0 %v1634
        %1935 = vmatpush.bf16.msra.mxu0 %v1632
        %1936 = vmatpush.bf16.msra.mxu0 %v1630
        %1937 = vmatpush.bf16.msra.mxu0 %v1628
        %1938 = vmatpush.bf16.msra.mxu0 %v1626
        %1939 = vmatpush.bf16.msra.mxu0 %v1624
        %1940 = vmatpush.bf16.msra.mxu0 %v1622
        %1941 = vmatpush.bf16.msra.mxu0 %v1620
        %1942 = vmatmul.bf16.gmra.mxu0 %v1438
        %v1943 = vpop.f32.mrf.mxu0
        %v1944 = vadd.f32 %v1855, %v1943
        %v1945 = vpop.f32.mrf.mxu0
        %v1946 = vadd.f32 %v1857, %v1945
        %1947 = vmatmul.bf16.gmra.mxu0 %v1440
        %v1948 = vpop.f32.mrf.mxu0
        %v1949 = vadd.f32 %v1860, %v1948
        %v1950 = vpop.f32.mrf.mxu0
        %v1951 = vadd.f32 %v1862, %v1950
        %1952 = vmatmul.bf16.gmra.mxu0 %v1442
        %v1953 = vpop.f32.mrf.mxu0
        %v1954 = vadd.f32 %v1865, %v1953
        %v1955 = vpop.f32.mrf.mxu0
        %v1956 = vadd.f32 %v1867, %v1955
        %1957 = vmatmul.bf16.gmra.mxu0 %v1444
        %v1958 = vpop.f32.mrf.mxu0
        %v1959 = vadd.f32 %v1870, %v1958
        %v1960 = vpop.f32.mrf.mxu0
        %v1961 = vadd.f32 %v1872, %v1960
        %1962 = vmatmul.bf16.gmra.mxu0 %v1446
        %v1963 = vpop.f32.mrf.mxu0
        %v1964 = vadd.f32 %v1875, %v1963
        %v1965 = vpop.f32.mrf.mxu0
        %v1966 = vadd.f32 %v1877, %v1965
        %1967 = vmatmul.bf16.gmra.mxu0 %v1448
        %v1968 = vpop.f32.mrf.mxu0
        %v1969 = vadd.f32 %v1880, %v1968
        %v1970 = vpop.f32.mrf.mxu0
        %v1971 = vadd.f32 %v1882, %v1970
        %1972 = vmatmul.bf16.gmra.mxu0 %v1450
        %v1973 = vpop.f32.mrf.mxu0
        %v1974 = vadd.f32 %v1885, %v1973
        %v1975 = vpop.f32.mrf.mxu0
        %v1976 = vadd.f32 %v1887, %v1975
        %1977 = vmatmul.bf16.gmra.mxu0 %v1452
        %v1978 = vpop.f32.mrf.mxu0
        %v1979 = vadd.f32 %v1890, %v1978
        %v1980 = vpop.f32.mrf.mxu0
        %v1981 = vadd.f32 %v1892, %v1980
        %1982 = vmatmul.bf16.gmra.mxu0 %v1454
        %v1983 = vpop.f32.mrf.mxu0
        %v1984 = vadd.f32 %v1895, %v1983
        %v1985 = vpop.f32.mrf.mxu0
        %v1986 = vadd.f32 %v1897, %v1985
        %1987 = vmatmul.bf16.gmra.mxu0 %v1456
        %v1988 = vpop.f32.mrf.mxu0
        %v1989 = vadd.f32 %v1900, %v1988
        %v1990 = vpop.f32.mrf.mxu0
        %v1991 = vadd.f32 %v1902, %v1990
        %1992 = vmatmul.bf16.gmra.mxu0 %v1458
        %v1993 = vpop.f32.mrf.mxu0
        %v1994 = vadd.f32 %v1905, %v1993
        %v1995 = vpop.f32.mrf.mxu0
        %v1996 = vadd.f32 %v1907, %v1995
        %1997 = vmatmul.bf16.gmra.mxu0 %v1460
        %v1998 = vpop.f32.mrf.mxu0
        %v1999 = vadd.f32 %v1910, %v1998
        %v2000 = vpop.f32.mrf.mxu0
        %v2001 = vadd.f32 %v1912, %v2000
        %2002 = vmatmul.bf16.gmra.mxu0 %v1462
        %v2003 = vpop.f32.mrf.mxu0
        %v2004 = vadd.f32 %v1915, %v2003
        %v2005 = vpop.f32.mrf.mxu0
        %v2006 = vadd.f32 %v1917, %v2005
        %2007 = vmatmul.bf16.gmra.mxu0 %v1464
        %v2008 = vpop.f32.mrf.mxu0
        %v2009 = vadd.f32 %v1920, %v2008
        %v2010 = vpop.f32.mrf.mxu0
        %v2011 = vadd.f32 %v1922, %v2010
        %2012 = vmatmul.bf16.gmra.mxu0 %v1466
        %v2013 = vpop.f32.mrf.mxu0
        %v2014 = vadd.f32 %v1925, %v2013
        %v2015 = vpop.f32.mrf.mxu0
        %v2016 = vadd.f32 %v1927, %v2015
        %2017 = vmatmul.bf16.gmra.mxu0 %v1468
        %v2018 = vpop.f32.mrf.mxu0
        %v2019 = vadd.f32 %v1930, %v2018
        %v2020 = vpop.f32.mrf.mxu0
        %v2021 = vadd.f32 %v1932, %v2020
        %2022 = vdwg.mxu0
        %v2023 = vmax.f32 %v1766, 0.0
        %v2024 = vmax.f32 %v1944, 0.0
        %v2025 = vmax.f32 %v1768, 0.0
        %v2026 = vmax.f32 %v1946, 0.0
        %v2027 = vmax.f32 %v1771, 0.0
        %v2028 = vmax.f32 %v1949, 0.0
        %v2029 = vmax.f32 %v1773, 0.0
        %v2030 = vmax.f32 %v1951, 0.0
        %v2031 = vmax.f32 %v1776, 0.0
        %v2032 = vmax.f32 %v1954, 0.0
        %v2033 = vmax.f32 %v1778, 0.0
        %v2034 = vmax.f32 %v1956, 0.0
        %v2035 = vmax.f32 %v1781, 0.0
        %v2036 = vmax.f32 %v1959, 0.0
        %v2037 = vmax.f32 %v1783, 0.0
        %v2038 = vmax.f32 %v1961, 0.0
        %v2039 = vmax.f32 %v1786, 0.0
        %v2040 = vmax.f32 %v1964, 0.0
        %v2041 = vmax.f32 %v1788, 0.0
        %v2042 = vmax.f32 %v1966, 0.0
        %v2043 = vmax.f32 %v1791, 0.0
        %v2044 = vmax.f32 %v1969, 0.0
        %v2045 = vmax.f32 %v1793, 0.0
        %v2046 = vmax.f32 %v1971, 0.0
        %v2047 = vmax.f32 %v1796, 0.0
        %v2048 = vmax.f32 %v1974, 0.0
        %v2049 = vmax.f32 %v1798, 0.0
        %v2050 = vmax.f32 %v1976, 0.0
        %v2051 = vmax.f32 %v1801, 0.0
        %v2052 = vmax.f32 %v1979, 0.0
        %v2053 = vmax.f32 %v1803, 0.0
        %v2054 = vmax.f32 %v1981, 0.0
        %v2055 = vmax.f32 %v1806, 0.0
        %v2056 = vmax.f32 %v1984, 0.0
        %v2057 = vmax.f32 %v1808, 0.0
        %v2058 = vmax.f32 %v1986, 0.0
        %v2059 = vmax.f32 %v1811, 0.0
        %v2060 = vmax.f32 %v1989, 0.0
        %v2061 = vmax.f32 %v1813, 0.0
        %v2062 = vmax.f32 %v1991, 0.0
        %v2063 = vmax.f32 %v1816, 0.0
        %v2064 = vmax.f32 %v1994, 0.0
        %v2065 = vmax.f32 %v1818, 0.0
        %v2066 = vmax.f32 %v1996, 0.0
        %v2067 = vmax.f32 %v1821, 0.0
        %v2068 = vmax.f32 %v1999, 0.0
        %v2069 = vmax.f32 %v1823, 0.0
        %v2070 = vmax.f32 %v2001, 0.0
        %v2071 = vmax.f32 %v1826, 0.0
        %v2072 = vmax.f32 %v2004, 0.0
        %v2073 = vmax.f32 %v1828, 0.0
        %v2074 = vmax.f32 %v2006, 0.0
        %v2075 = vmax.f32 %v1831, 0.0
        %v2076 = vmax.f32 %v2009, 0.0
        %v2077 = vmax.f32 %v1833, 0.0
        %v2078 = vmax.f32 %v2011, 0.0
        %v2079 = vmax.f32 %v1836, 0.0
        %v2080 = vmax.f32 %v2014, 0.0
        %v2081 = vmax.f32 %v1838, 0.0
        %v2082 = vmax.f32 %v2016, 0.0
        %v2083 = vmax.f32 %v1841, 0.0
        %v2084 = vmax.f32 %v2019, 0.0
        %v2085 = vmax.f32 %v1843, 0.0
        %v2086 = vmax.f32 %v2021, 0.0
        %v2087 = vpack.c.bf16 %v2025, %v2023
        %v2088 = vpack.c.bf16 %v2026, %v2024
        %v2089 = vpack.c.bf16 %v2029, %v2027
        %v2090 = vpack.c.bf16 %v2030, %v2028
        %v2091 = vpack.c.bf16 %v2033, %v2031
        %v2092 = vpack.c.bf16 %v2034, %v2032
        %v2093 = vpack.c.bf16 %v2037, %v2035
        %v2094 = vpack.c.bf16 %v2038, %v2036
        %v2095 = vpack.c.bf16 %v2041, %v2039
        %v2096 = vpack.c.bf16 %v2042, %v2040
        %v2097 = vpack.c.bf16 %v2045, %v2043
        %v2098 = vpack.c.bf16 %v2046, %v2044
        %v2099 = vpack.c.bf16 %v2049, %v2047
        %v2100 = vpack.c.bf16 %v2050, %v2048
        %v2101 = vpack.c.bf16 %v2053, %v2051
        %v2102 = vpack.c.bf16 %v2054, %v2052
        %v2103 = vpack.c.bf16 %v2057, %v2055
        %v2104 = vpack.c.bf16 %v2058, %v2056
        %v2105 = vpack.c.bf16 %v2061, %v2059
        %v2106 = vpack.c.bf16 %v2062, %v2060
        %v2107 = vpack.c.bf16 %v2065, %v2063
        %v2108 = vpack.c.bf16 %v2066, %v2064
        %v2109 = vpack.c.bf16 %v2069, %v2067
        %v2110 = vpack.c.bf16 %v2070, %v2068
        %v2111 = vpack.c.bf16 %v2073, %v2071
        %v2112 = vpack.c.bf16 %v2074, %v2072
        %v2113 = vpack.c.bf16 %v2077, %v2075
        %v2114 = vpack.c.bf16 %v2078, %v2076
        %v2115 = vpack.c.bf16 %v2081, %v2079
        %v2116 = vpack.c.bf16 %v2082, %v2080
        %v2117 = vpack.c.bf16 %v2085, %v2083
        %v2118 = vpack.c.bf16 %v2086, %v2084
        %v2119 = vld [vmem:[%s7] sm:$0xf]
        %v2120 = vld [vmem:[%s7 + $0x4] sm:$0xf]
        %v2121 = vld [vmem:[%s7 + $0x8] sm:$0xf]
        %v2122 = vld [vmem:[%s7 + $0xc] sm:$0xf]
        %v2123 = vld [vmem:[%s7 + $0x10] sm:$0xf]
        %v2124 = vld [vmem:[%s7 + $0x14] sm:$0xf]
        %v2125 = vld [vmem:[%s7 + $0x18] sm:$0xf]
        %v2126 = vld [vmem:[%s7 + $0x1c] sm:$0xf]
        %v2127 = vld [vmem:[%s7 + $0x20] sm:$0xf]
        %v2128 = vld [vmem:[%s7 + $0x24] sm:$0xf]
        %v2129 = vld [vmem:[%s7 + $0x28] sm:$0xf]
        %v2130 = vld [vmem:[%s7 + $0x2c] sm:$0xf]
        %v2131 = vld [vmem:[%s7 + $0x30] sm:$0xf]
        %v2132 = vld [vmem:[%s7 + $0x34] sm:$0xf]
        %v2133 = vld [vmem:[%s7 + $0x38] sm:$0xf]
        %v2134 = vld [vmem:[%s7 + $0x3c] sm:$0xf]
        %v2135 = vld [vmem:[%s7 + $0x40] sm:$0xf]
        %v2136 = vld [vmem:[%s7 + $0x44] sm:$0xf]
        %v2137 = vld [vmem:[%s7 + $0x48] sm:$0xf]
        %v2138 = vld [vmem:[%s7 + $0x4c] sm:$0xf]
        %v2139 = vld [vmem:[%s7 + $0x50] sm:$0xf]
        %v2140 = vld [vmem:[%s7 + $0x54] sm:$0xf]
        %v2141 = vld [vmem:[%s7 + $0x58] sm:$0xf]
        %v2142 = vld [vmem:[%s7 + $0x5c] sm:$0xf]
        %v2143 = vld [vmem:[%s7 + $0x60] sm:$0xf]
        %v2144 = vld [vmem:[%s7 + $0x64] sm:$0xf]
        %v2145 = vld [vmem:[%s7 + $0x68] sm:$0xf]
        %v2146 = vld [vmem:[%s7 + $0x6c] sm:$0xf]
        %v2147 = vld [vmem:[%s7 + $0x70] sm:$0xf]
        %v2148 = vld [vmem:[%s7 + $0x74] sm:$0xf]
        %v2149 = vld [vmem:[%s7 + $0x78] sm:$0xf]
        %v2150 = vld [vmem:[%s7 + $0x7c] sm:$0xf]
        %v2151 = vld [vmem:[%s8] sm:$0x1]
        %v2153 = vperm.slane %v2151, 0
        %v2187 = vunpack.c.l.b16 %v2119
        %v2188 = vunpack.c.l.b16 %v2120
        %v2189 = vunpack.c.l.b16 %v2121
        %v2190 = vunpack.c.l.b16 %v2122
        %v2191 = vunpack.c.l.b16 %v2123
        %v2192 = vunpack.c.l.b16 %v2124
        %v2193 = vunpack.c.l.b16 %v2125
        %v2194 = vunpack.c.l.b16 %v2126
        %v2195 = vunpack.c.l.b16 %v2127
        %v2196 = vunpack.c.l.b16 %v2128
        %v2197 = vunpack.c.l.b16 %v2129
        %v2198 = vunpack.c.l.b16 %v2130
        %v2199 = vunpack.c.l.b16 %v2131
        %v2200 = vunpack.c.l.b16 %v2132
        %v2201 = vunpack.c.l.b16 %v2133
        %v2202 = vunpack.c.l.b16 %v2134
        %v2203 = vunpack.c.l.b16 %v2135
        %v2204 = vunpack.c.l.b16 %v2136
        %v2205 = vunpack.c.l.b16 %v2137
        %v2206 = vunpack.c.l.b16 %v2138
        %v2207 = vunpack.c.l.b16 %v2139
        %v2208 = vunpack.c.l.b16 %v2140
        %v2209 = vunpack.c.l.b16 %v2141
        %v2210 = vunpack.c.l.b16 %v2142
        %v2211 = vunpack.c.l.b16 %v2143
        %v2212 = vunpack.c.l.b16 %v2144
        %v2213 = vunpack.c.l.b16 %v2145
        %v2214 = vunpack.c.l.b16 %v2146
        %v2215 = vunpack.c.l.b16 %v2147
        %v2216 = vunpack.c.l.b16 %v2148
        %v2217 = vunpack.c.l.b16 %v2149
        %v2218 = vunpack.c.l.b16 %v2150
        %v2219 = vpack.c.b16 %v2188, %v2187
        %v2220 = vpack.c.b16 %v2190, %v2189
        %v2221 = vpack.c.b16 %v2192, %v2191
        %v2222 = vpack.c.b16 %v2194, %v2193
        %v2223 = vpack.c.b16 %v2196, %v2195
        %v2224 = vpack.c.b16 %v2198, %v2197
        %v2225 = vpack.c.b16 %v2200, %v2199
        %v2226 = vpack.c.b16 %v2202, %v2201
        %v2227 = vpack.c.b16 %v2204, %v2203
        %v2228 = vpack.c.b16 %v2206, %v2205
        %v2229 = vpack.c.b16 %v2208, %v2207
        %v2230 = vpack.c.b16 %v2210, %v2209
        %v2231 = vpack.c.b16 %v2212, %v2211
        %v2232 = vpack.c.b16 %v2214, %v2213
        %v2233 = vpack.c.b16 %v2216, %v2215
        %v2234 = vpack.c.b16 %v2218, %v2217
        %2251 = vmatpush.bf16.msra.mxu0 %v2226
        %2252 = vmatpush.bf16.msra.mxu0 %v2225
        %2253 = vmatpush.bf16.msra.mxu0 %v2224
        %2254 = vmatpush.bf16.msra.mxu0 %v2223
        %2255 = vmatpush.bf16.msra.mxu0 %v2222
        %2256 = vmatpush.bf16.msra.mxu0 %v2221
        %2257 = vmatpush.bf16.msra.mxu0 %v2220
        %2258 = vmatpush.bf16.msra.mxu0 %v2219
        %2259 = vmatmul.bf16.gmra.mxu0 %v2087
        %v2260 = vpop.f32.mrf.mxu0
        %v2261 = vadd.f32 %v2153, %v2260
        %v2262 = vpop.f32.mrf.mxu0
        %v2263 = vadd.f32 %v2153, %v2262
        %2264 = vmatmul.bf16.gmra.mxu0 %v2089
        %v2265 = vpop.f32.mrf.mxu0
        %v2266 = vadd.f32 %v2153, %v2265
        %v2267 = vpop.f32.mrf.mxu0
        %v2268 = vadd.f32 %v2153, %v2267
        %2269 = vmatmul.bf16.gmra.mxu0 %v2091
        %v2270 = vpop.f32.mrf.mxu0
        %v2271 = vadd.f32 %v2153, %v2270
        %v2272 = vpop.f32.mrf.mxu0
        %v2273 = vadd.f32 %v2153, %v2272
        %2274 = vmatmul.bf16.gmra.mxu0 %v2093
        %v2275 = vpop.f32.mrf.mxu0
        %v2276 = vadd.f32 %v2153, %v2275
        %v2277 = vpop.f32.mrf.mxu0
        %v2278 = vadd.f32 %v2153, %v2277
        %2279 = vmatmul.bf16.gmra.mxu0 %v2095
        %v2280 = vpop.f32.mrf.mxu0
        %v2281 = vadd.f32 %v2153, %v2280
        %v2282 = vpop.f32.mrf.mxu0
        %v2283 = vadd.f32 %v2153, %v2282
        %2284 = vmatmul.bf16.gmra.mxu0 %v2097
        %v2285 = vpop.f32.mrf.mxu0
        %v2286 = vadd.f32 %v2153, %v2285
        %v2287 = vpop.f32.mrf.mxu0
        %v2288 = vadd.f32 %v2153, %v2287
        %2289 = vmatmul.bf16.gmra.mxu0 %v2099
        %v2290 = vpop.f32.mrf.mxu0
        %v2291 = vadd.f32 %v2153, %v2290
        %v2292 = vpop.f32.mrf.mxu0
        %v2293 = vadd.f32 %v2153, %v2292
        %2294 = vmatmul.bf16.gmra.mxu0 %v2101
        %v2295 = vpop.f32.mrf.mxu0
        %v2296 = vadd.f32 %v2153, %v2295
        %v2297 = vpop.f32.mrf.mxu0
        %v2298 = vadd.f32 %v2153, %v2297
        %2299 = vmatmul.bf16.gmra.mxu0 %v2103
        %v2300 = vpop.f32.mrf.mxu0
        %v2301 = vadd.f32 %v2153, %v2300
        %v2302 = vpop.f32.mrf.mxu0
        %v2303 = vadd.f32 %v2153, %v2302
        %2304 = vmatmul.bf16.gmra.mxu0 %v2105
        %v2305 = vpop.f32.mrf.mxu0
        %v2306 = vadd.f32 %v2153, %v2305
        %v2307 = vpop.f32.mrf.mxu0
        %v2308 = vadd.f32 %v2153, %v2307
        %2309 = vmatmul.bf16.gmra.mxu0 %v2107
        %v2310 = vpop.f32.mrf.mxu0
        %v2311 = vadd.f32 %v2153, %v2310
        %v2312 = vpop.f32.mrf.mxu0
        %v2313 = vadd.f32 %v2153, %v2312
        %2314 = vmatmul.bf16.gmra.mxu0 %v2109
        %v2315 = vpop.f32.mrf.mxu0
        %v2316 = vadd.f32 %v2153, %v2315
        %v2317 = vpop.f32.mrf.mxu0
        %v2318 = vadd.f32 %v2153, %v2317
        %2319 = vmatmul.bf16.gmra.mxu0 %v2111
        %v2320 = vpop.f32.mrf.mxu0
        %v2321 = vadd.f32 %v2153, %v2320
        %v2322 = vpop.f32.mrf.mxu0
        %v2323 = vadd.f32 %v2153, %v2322
        %2324 = vmatmul.bf16.gmra.mxu0 %v2113
        %v2325 = vpop.f32.mrf.mxu0
        %v2326 = vadd.f32 %v2153, %v2325
        %v2327 = vpop.f32.mrf.mxu0
        %v2328 = vadd.f32 %v2153, %v2327
        %2329 = vmatmul.bf16.gmra.mxu0 %v2115
        %v2330 = vpop.f32.mrf.mxu0
        %v2331 = vadd.f32 %v2153, %v2330
        %v2332 = vpop.f32.mrf.mxu0
        %v2333 = vadd.f32 %v2153, %v2332
        %2334 = vmatmul.bf16.gmra.mxu0 %v2117
        %v2335 = vpop.f32.mrf.mxu0
        %v2336 = vadd.f32 %v2153, %v2335
        %v2337 = vpop.f32.mrf.mxu0
        %v2338 = vadd.f32 %v2153, %v2337
        %2339 = vdwg.mxu0
        %2340 = vmatpush.bf16.msra.mxu0 %v2234
        %2341 = vmatpush.bf16.msra.mxu0 %v2233
        %2342 = vmatpush.bf16.msra.mxu0 %v2232
        %2343 = vmatpush.bf16.msra.mxu0 %v2231
        %2344 = vmatpush.bf16.msra.mxu0 %v2230
        %2345 = vmatpush.bf16.msra.mxu0 %v2229
        %2346 = vmatpush.bf16.msra.mxu0 %v2228
        %2347 = vmatpush.bf16.msra.mxu0 %v2227
        %2348 = vmatmul.bf16.gmra.mxu0 %v2088
        %v2349 = vpop.f32.mrf.mxu0
        %v2350 = vadd.f32 %v2261, %v2349
        %v2351 = vpop.f32.mrf.mxu0
        %v2352 = vadd.f32 %v2263, %v2351
        %2353 = vmatmul.bf16.gmra.mxu0 %v2090
        %v2354 = vpop.f32.mrf.mxu0
        %v2355 = vadd.f32 %v2266, %v2354
        %v2356 = vpop.f32.mrf.mxu0
        %v2357 = vadd.f32 %v2268, %v2356
        %2358 = vmatmul.bf16.gmra.mxu0 %v2092
        %v2359 = vpop.f32.mrf.mxu0
        %v2360 = vadd.f32 %v2271, %v2359
        %v2361 = vpop.f32.mrf.mxu0
        %v2362 = vadd.f32 %v2273, %v2361
        %2363 = vmatmul.bf16.gmra.mxu0 %v2094
        %v2364 = vpop.f32.mrf.mxu0
        %v2365 = vadd.f32 %v2276, %v2364
        %v2366 = vpop.f32.mrf.mxu0
        %v2367 = vadd.f32 %v2278, %v2366
        %2368 = vmatmul.bf16.gmra.mxu0 %v2096
        %v2369 = vpop.f32.mrf.mxu0
        %v2370 = vadd.f32 %v2281, %v2369
        %v2371 = vpop.f32.mrf.mxu0
        %v2372 = vadd.f32 %v2283, %v2371
        %2373 = vmatmul.bf16.gmra.mxu0 %v2098
        %v2374 = vpop.f32.mrf.mxu0
        %v2375 = vadd.f32 %v2286, %v2374
        %v2376 = vpop.f32.mrf.mxu0
        %v2377 = vadd.f32 %v2288, %v2376
        %2378 = vmatmul.bf16.gmra.mxu0 %v2100
        %v2379 = vpop.f32.mrf.mxu0
        %v2380 = vadd.f32 %v2291, %v2379
        %v2381 = vpop.f32.mrf.mxu0
        %v2382 = vadd.f32 %v2293, %v2381
        %2383 = vmatmul.bf16.gmra.mxu0 %v2102
        %v2384 = vpop.f32.mrf.mxu0
        %v2385 = vadd.f32 %v2296, %v2384
        %v2386 = vpop.f32.mrf.mxu0
        %v2387 = vadd.f32 %v2298, %v2386
        %2388 = vmatmul.bf16.gmra.mxu0 %v2104
        %v2389 = vpop.f32.mrf.mxu0
        %v2390 = vadd.f32 %v2301, %v2389
        %v2391 = vpop.f32.mrf.mxu0
        %v2392 = vadd.f32 %v2303, %v2391
        %2393 = vmatmul.bf16.gmra.mxu0 %v2106
        %v2394 = vpop.f32.mrf.mxu0
        %v2395 = vadd.f32 %v2306, %v2394
        %v2396 = vpop.f32.mrf.mxu0
        %v2397 = vadd.f32 %v2308, %v2396
        %2398 = vmatmul.bf16.gmra.mxu0 %v2108
        %v2399 = vpop.f32.mrf.mxu0
        %v2400 = vadd.f32 %v2311, %v2399
        %v2401 = vpop.f32.mrf.mxu0
        %v2402 = vadd.f32 %v2313, %v2401
        %2403 = vmatmul.bf16.gmra.mxu0 %v2110
        %v2404 = vpop.f32.mrf.mxu0
        %v2405 = vadd.f32 %v2316, %v2404
        %v2406 = vpop.f32.mrf.mxu0
        %v2407 = vadd.f32 %v2318, %v2406
        %2408 = vmatmul.bf16.gmra.mxu0 %v2112
        %v2409 = vpop.f32.mrf.mxu0
        %v2410 = vadd.f32 %v2321, %v2409
        %v2411 = vpop.f32.mrf.mxu0
        %v2412 = vadd.f32 %v2323, %v2411
        %2413 = vmatmul.bf16.gmra.mxu0 %v2114
        %v2414 = vpop.f32.mrf.mxu0
        %v2415 = vadd.f32 %v2326, %v2414
        %v2416 = vpop.f32.mrf.mxu0
        %v2417 = vadd.f32 %v2328, %v2416
        %2418 = vmatmul.bf16.gmra.mxu0 %v2116
        %v2419 = vpop.f32.mrf.mxu0
        %v2420 = vadd.f32 %v2331, %v2419
        %v2421 = vpop.f32.mrf.mxu0
        %v2422 = vadd.f32 %v2333, %v2421
        %2423 = vmatmul.bf16.gmra.mxu0 %v2118
        %v2424 = vpop.f32.mrf.mxu0
        %v2425 = vadd.f32 %v2336, %v2424
        %v2426 = vpop.f32.mrf.mxu0
        %v2427 = vadd.f32 %v2338, %v2426
        %2428 = vdwg.mxu0
        %vm2429 = vcmask 31744
        %2430 = vst.msk [vmem:[%s351] sm:$0xff] %vm2429, %v2350
        %2431 = vst.msk [vmem:[%s351 + $0x8] sm:$0xff] %vm2429, %v2352
        %2432 = vst.msk [vmem:[%s351 + $0x10] sm:$0xff] %vm2429, %v2355
        %2433 = vst.msk [vmem:[%s351 + $0x18] sm:$0xff] %vm2429, %v2357
        %2434 = vst.msk [vmem:[%s351 + $0x20] sm:$0xff] %vm2429, %v2360
        %2435 = vst.msk [vmem:[%s351 + $0x28] sm:$0xff] %vm2429, %v2362
        %2436 = vst.msk [vmem:[%s351 + $0x30] sm:$0xff] %vm2429, %v2365
        %2437 = vst.msk [vmem:[%s351 + $0x38] sm:$0xff] %vm2429, %v2367
        %2438 = vst.msk [vmem:[%s351 + $0x40] sm:$0xff] %vm2429, %v2370
        %2439 = vst.msk [vmem:[%s351 + $0x48] sm:$0xff] %vm2429, %v2372
        %2440 = vst.msk [vmem:[%s351 + $0x50] sm:$0xff] %vm2429, %v2375
        %2441 = vst.msk [vmem:[%s351 + $0x58] sm:$0xff] %vm2429, %v2377
        %2442 = vst.msk [vmem:[%s351 + $0x60] sm:$0xff] %vm2429, %v2380
        %2443 = vst.msk [vmem:[%s351 + $0x68] sm:$0xff] %vm2429, %v2382
        %2444 = vst.msk [vmem:[%s351 + $0x70] sm:$0xff] %vm2429, %v2385
        %2445 = vst.msk [vmem:[%s351 + $0x78] sm:$0xff] %vm2429, %v2387
        %2446 = vst.msk [vmem:[%s351 + $0x80] sm:$0xff] %vm2429, %v2390
        %2447 = vst.msk [vmem:[%s351 + $0x88] sm:$0xff] %vm2429, %v2392
        %2448 = vst.msk [vmem:[%s351 + $0x90] sm:$0xff] %vm2429, %v2395
        %2449 = vst.msk [vmem:[%s351 + $0x98] sm:$0xff] %vm2429, %v2397
        %2450 = vst.msk [vmem:[%s351 + $0xa0] sm:$0xff] %vm2429, %v2400
        %2451 = vst.msk [vmem:[%s351 + $0xa8] sm:$0xff] %vm2429, %v2402
        %2452 = vst.msk [vmem:[%s351 + $0xb0] sm:$0xff] %vm2429, %v2405
        %2453 = vst.msk [vmem:[%s351 + $0xb8] sm:$0xff] %vm2429, %v2407
        %2454 = vst.msk [vmem:[%s351 + $0xc0] sm:$0xff] %vm2429, %v2410
        %2455 = vst.msk [vmem:[%s351 + $0xc8] sm:$0xff] %vm2429, %v2412
        %2456 = vst.msk [vmem:[%s351 + $0xd0] sm:$0xff] %vm2429, %v2415
        %2457 = vst.msk [vmem:[%s351 + $0xd8] sm:$0xff] %vm2429, %v2417
        %2458 = vst.msk [vmem:[%s351 + $0xe0] sm:$0xff] %vm2429, %v2420
        %2459 = vst.msk [vmem:[%s351 + $0xe8] sm:$0xff] %vm2429, %v2422
        %2460 = vst.msk [vmem:[%s351 + $0xf0] sm:$0xff] %vm2429, %v2425
        %2461 = vst.msk [vmem:[%s351 + $0xf8] sm:$0xff] %vm2429, %v2427
        %s2462 = smul.u32 32, %s21
        %p2463 = scmp.lt.s32.totalorder %s2462, 63
        %s2464 = scalar_select %p2463, %s2462, 63
        %s2465 = smul.addr %s2464, 8
        %s2466 = scalar_lea.vmem %s9, %s2465
        // Predicated region
        $region61: #{tpu_custom_call.1} parent=55 // pred_check
          %p2467 = pneg %p233
        $region62: #{tpu_custom_call.1} parent=55 // pred_check_branch
          %2469 = sbr.rel (%p2467) target = $region64
        $region63: #{tpu_custom_call.1} parent=55 // pred_region
          %s2470 = smul.u32 32, %s21
        $region64: #{tpu_custom_call.1} parent=55 // pred_fallthru
          _
      $region56: #{tpu_custom_call.1} parent=5 // pred_fallthru
        _
      %p2471 = scmp.le.s32.totalorder 2, %s16
      // Predicated region
      $region65: #{tpu_custom_call.1} parent=5 // pred_check
        %p2472 = pneg %p2471
      $region66: #{tpu_custom_call.1} parent=5 // pred_check_branch
        %2474 = sbr.rel (%p2472) target = $region68
      $region67: #{tpu_custom_call.1} parent=5 // pred_region
        %s2475 = ssub.s32 %s16, 2
        // Predicated region
        $region69: #{tpu_custom_call.1} parent=67 // pred_check
          %p2476 = pneg %p239
        $region70: #{tpu_custom_call.1} parent=67 // pred_check_branch
          %2478 = sbr.rel (%p2476) target = $region72
        $region71: #{tpu_custom_call.1} parent=67 // pred_region
          %s2479 = smul.u32 32, %s22
          %p2480 = scmp.lt.s32.totalorder %s2479, 63
          %s2481 = scalar_select %p2480, %s2479, 63
          %s2482 = smul.addr %s2481, 8
          %s2483 = scalar_lea.vmem %s9, %s2482
        $region72: #{tpu_custom_call.1} parent=67 // pred_fallthru
          _
      $region68: #{tpu_custom_call.1} parent=5 // pred_fallthru
        _
    $region6: #{tpu_custom_call.1} parent=1 // loop_footer
      %s20 = sadd.s32 1, %s16
    $region7: #{tpu_custom_call.1} parent=1 // loop_footer_branch
      %15 = sbr.rel target = $region3
    $region8: #{tpu_custom_call.1} parent=1 // loop_exit
      _
    %2484 = vsyncpa [#allocation3], 1
    %s2485 = scalar_lea.sflag [#allocation3], 1
    %2486 = vsyncpa %s2485, 1

</llo_original>
